<compile_context>
chip_gen: v5e
topology: v5e:2x2
jax: 0.10.0
libtpu: 0.0.40
codegen_flags: <defaults>
</compile_context>

<pallas_src>
import functools

import jax
import jax.numpy as jnp
from jax.experimental import pallas as pl
from jax.experimental.pallas import tpu as pltpu


def _round_up(x, m):
    return (x + m - 1) // m * m


# ----------------------------------------------------------------------------
# Exact-style GELU (erf via Abramowitz & Stegun 7.1.26; only exp / mul / add /
# select, all of which lower cleanly to the VPU + EUP).
# ----------------------------------------------------------------------------
def _erf(x):
    p = 0.3275911
    a1, a2, a3, a4, a5 = (0.254829592, -0.284496736, 1.421413741,
                          -1.453152027, 1.061405429)
    sgn = jnp.where(x < 0.0, -1.0, 1.0)
    ax = jnp.abs(x)
    t = 1.0 / (1.0 + p * ax)
    poly = ((((a5 * t + a4) * t + a3) * t + a2) * t + a1) * t
    return sgn * (1.0 - poly * jnp.exp(-ax * ax))


def _gelu(x):
    return 0.5 * x * (1.0 + _erf(x * 0.7071067811865476))


# ----------------------------------------------------------------------------
# Fused GELU + GroupNorm(16, C): one Pallas launch, one batch element per grid
# step, gamma/beta as tiny (G, Cg, 1) arrays broadcast along the lane axis.
# ----------------------------------------------------------------------------
def _sum_over_cg(t, Cg):
    # t: (G, Cg, 1).  Sum the small, static Cg axis with slice-adds so we only
    # ever rely on last-axis (lane) vector reductions in Mosaic.
    acc = t[:, 0:1, :]
    for c in range(1, Cg):
        acc = acc + t[:, c:c + 1, :]
    return acc                                            # (G, 1, 1)


def _gelu_groupnorm_kernel(x_ref, g_ref, b_ref, o_ref, *, Cg, inv_n):
    h = _gelu(x_ref[...])                                  # (G, Cg, HW) f32
    mean = _sum_over_cg(jnp.sum(h, axis=2, keepdims=True), Cg) * inv_n
    d = h - mean
    var = _sum_over_cg(jnp.sum(d * d, axis=2, keepdims=True), Cg) * inv_n
    xn = d * jax.lax.rsqrt(var + 1e-5)
    o_ref[...] = (xn * g_ref[...] + b_ref[...]).astype(o_ref.dtype)


def gelu_group_norm(x, gamma, beta, *, groups=16, out_dtype=jnp.bfloat16):
    B, C, H, W = x.shape
    G = groups
    Cg = C // G
    HW = H * W
    x3 = x.reshape(B * G, Cg, HW).astype(jnp.float32)
    g3 = gamma.reshape(G, Cg, 1).astype(jnp.float32)       # tiny, no HBM maps
    b3 = beta.reshape(G, Cg, 1).astype(jnp.float32)

    kern = functools.partial(_gelu_groupnorm_kernel, Cg=Cg,
                             inv_n=1.0 / float(Cg * HW))
    out = pl.pallas_call(
        kern,
        grid=(B,),
        in_specs=[pl.BlockSpec((G, Cg, HW), lambda b: (b, 0, 0)),
                  pl.BlockSpec((G, Cg, 1), lambda b: (0, 0, 0)),
                  pl.BlockSpec((G, Cg, 1), lambda b: (0, 0, 0))],
        out_specs=pl.BlockSpec((G, Cg, HW), lambda b: (b, 0, 0)),
        out_shape=jax.ShapeDtypeStruct((B * G, Cg, HW), out_dtype),
        compiler_params=pltpu.CompilerParams(
            dimension_semantics=("parallel",)),
    )(x3, g3, b3)
    return out.reshape(B, C, H, W)                          # NCHW, bf16


# ----------------------------------------------------------------------------
# Single-K-block GEMM with f32 bias epilogue: bf16 operands, f32 MXU
# accumulation, bf16 lane-dense writeback.  No accumulator scratch / pl.when.
# ----------------------------------------------------------------------------
def _mm_bias_kernel(a_ref, w_ref, b_ref, o_ref):
    acc = jnp.dot(a_ref[...], w_ref[...], preferred_element_type=jnp.float32)
    o_ref[...] = (acc + b_ref[...]).astype(o_ref.dtype)


def pallas_matmul_bias(a, w, bias, *, out_dtype=jnp.bfloat16):
    """(M, K) @ (K, N) + bias.  K is taken whole (single block, no padding)."""
    M, K = a.shape
    K2, N = w.shape
    assert K == K2
    a = a.astype(jnp.bfloat16)
    w = w.astype(jnp.bfloat16)
    bias = bias.astype(jnp.float32).reshape(1, N)

    tn = 128                                   # lane-dense; N = 4*Cout = 128 here
    Np = _round_up(N, tn)
    if Np != N:
        w = jnp.pad(w, ((0, 0), (0, Np - N)))
        bias = jnp.pad(bias, ((0, 0), (0, Np - N)))

    # Two M tiles so the "parallel" M axis balances across v7x's 2 TensorCores;
    # on single-TC v5e/v6e the second grid step costs ~0.35 us (negligible).
    if M <= 256:
        tm = _round_up(M, 16)
    else:
        tm = _round_up(pl.cdiv(M, 2), 16)
    Mp = _round_up(M, tm)
    if Mp != M:
        a = jnp.pad(a, ((0, Mp - M), (0, 0)))

    out = pl.pallas_call(
        _mm_bias_kernel,
        grid=(Mp // tm, Np // tn),
        in_specs=[pl.BlockSpec((tm, K), lambda i, j: (i, 0)),
                  pl.BlockSpec((K, tn), lambda i, j: (0, j)),
                  pl.BlockSpec((1, tn), lambda i, j: (0, j))],
        out_specs=pl.BlockSpec((tm, tn), lambda i, j: (i, j)),
        out_shape=jax.ShapeDtypeStruct((Mp, Np), out_dtype),
        compiler_params=pltpu.CompilerParams(
            dimension_semantics=("parallel", "parallel")),
    )(a, w, bias)
    return out[:M, :N]


# ----------------------------------------------------------------------------
# ConvTranspose2d(Cin, Cout, 5, stride=2, padding=2, output_padding=1) via
# sub-pixel (phase) decomposition -> one lane-dense bf16 Pallas GEMM.
# ----------------------------------------------------------------------------
def conv_transpose_5x5_s2(hn_nchw, w, bias):
    B, Cin, H, W = hn_nchw.shape
    Cout = w.shape[1]                                  # w: (Cin, Cout, 5, 5)
    Ho, Wo = H + 1, W + 1

    # im2col in bf16, channel-last: 3x3 patches of the zero-padded input.
    # K ordering = (kj, ki, ci).
    # TODO(synk): assemble these 9 shifted windows inside the GEMM kernel
    # instead of materializing the replicated patch tensor in HBM.
    xh = hn_nchw.astype(jnp.bfloat16).transpose(0, 2, 3, 1)   # (B, H, W, Cin)
    xp = jnp.pad(xh, ((0, 0), (1, 2), (1, 2), (0, 0)))
    cols = [xp[:, j:j + Ho, i:i + Wo, :] for j in range(3) for i in range(3)]
    pat = jnp.stack(cols, axis=3)                      # (B, Ho, Wo, 9, Cin)
    pat = pat.reshape(B * Ho * Wo, 9 * Cin)

    # Four phase sub-kernels concatenated along N:  N index = (py, px, cout).
    # wf = flipped/transposed weight; pad to 6x6 so odd phases get a zero tap.
    wf = jnp.flip(w, axis=(2, 3)).transpose(1, 0, 2, 3)        # (Cout, Cin, 5, 5)
    wfp = jnp.pad(wf, ((0, 0), (0, 0), (0, 1), (0, 1)))        # (Cout, Cin, 6, 6)
    w6 = wfp.reshape(Cout, Cin, 3, 2, 3, 2)                    # [co,ci,kj,py,ki,px]
    rhs = w6.transpose(2, 4, 1, 3, 5, 0).reshape(9 * Cin, 4 * Cout)  # (kj,ki,ci)x(py,px,co)
    bias4 = jnp.tile(bias.astype(jnp.float32), 4)              # same bias per phase

    out = pallas_matmul_bias(pat, rhs, bias4)                  # (B*Ho*Wo, 4*Cout) bf16
    out = out.reshape(B, Ho, Wo, 2, 2, Cout)

    # Phase (py, px) output pixel (m, n) comes from patch (m+py, n+px).
    # TODO(synk): fuse this 2x2 interleave + NCHW transpose into a Pallas
    # epilogue kernel (or return NHWC); kept as cheap bf16 XLA glue for now.
    p00 = out[:, 0:H,     0:W,     0, 0, :]
    p01 = out[:, 0:H,     1:W + 1, 0, 1, :]
    p10 = out[:, 1:H + 1, 0:W,     1, 0, :]
    p11 = out[:, 1:H + 1, 1:W + 1, 1, 1, :]
    y = jnp.stack([jnp.stack([p00, p01], axis=3),
                   jnp.stack([p10, p11], axis=3)], axis=2)     # (B, H, 2, W, 2, Cout)
    y = y.reshape(B, 2 * H, 2 * W, Cout).transpose(0, 3, 1, 2)
    return y.astype(jnp.float32)


# ----------------------------------------------------------------------------
# UpSample forward
# ----------------------------------------------------------------------------
def upsample_forward(params, x, target_emb=None):
    del target_emb                           # unused, as in the PyTorch forward
    h = gelu_group_norm(x, params["gn_gamma"], params["gn_beta"], groups=16)
    return conv_transpose_5x5_s2(h, params["convt_w"], params["convt_b"])


# ----------------------------------------------------------------------------
# Pure-JAX reference (PyTorch semantics) for a numerical cross-check.
# ----------------------------------------------------------------------------
def reference_forward(params, x):
    h = jax.nn.gelu(x.astype(jnp.float32), approximate=False)
    B, C, H, W = h.shape
    hr = h.reshape(B, 16, C // 16, H, W)
    mean = hr.mean(axis=(2, 3, 4), keepdims=True)
    var = ((hr - mean) ** 2).mean(axis=(2, 3, 4), keepdims=True)
    hn = ((hr - mean) / jnp.sqrt(var + 1e-5)).reshape(B, C, H, W)
    hn = (hn * params["gn_gamma"][None, :, None, None]
          + params["gn_beta"][None, :, None, None])
    w, b = params["convt_w"], params["convt_b"]
    wf = jnp.flip(w, axis=(2, 3)).transpose(1, 0, 2, 3)        # (Cout, Cin, 5, 5)
    y = jax.lax.conv_general_dilated(
        hn, wf, window_strides=(1, 1), padding=[(2, 3), (2, 3)],
        lhs_dilation=(2, 2), dimension_numbers=("NCHW", "OIHW", "NCHW"))
    return y + b[None, :, None, None]


# ----------------------------------------------------------------------------
if __name__ == "__main__":
    B, C, H, W = 2, 32, 16, 16            # UpSample(in_ch=32); GroupNorm(16, 32)
    key = jax.random.PRNGKey(0)
    kx, kt, kw, kb, kg, kbb = jax.random.split(key, 6)
    x = jax.random.normal(kx, (B, C, H, W), jnp.float32)
    target_emb = jax.random.normal(kt, (B, 128), jnp.float32)   # unused by forward

    params = {
        "gn_gamma": 1.0 + 0.1 * jax.random.normal(kg, (C,), jnp.float32),
        "gn_beta": 0.1 * jax.random.normal(kbb, (C,), jnp.float32),
        # PyTorch ConvTranspose2d weight layout: (Cin, Cout, kH, kW)
        "convt_w": (1.0 / (C * 25) ** 0.5)
                   * jax.random.normal(kw, (C, C, 5, 5), jnp.float32),
        "convt_b": 0.05 * jax.random.normal(kb, (C,), jnp.float32),
    }

    fwd = jax.jit(functools.partial(upsample_forward, params))
    out = jax.block_until_ready(fwd(x, target_emb))
    assert out.shape == (B, C, 2 * H, 2 * W), out.shape
    assert bool(jnp.all(jnp.isfinite(out)))

    ref = reference_forward(params, x)
    err = float(jnp.max(jnp.abs(out - ref)))
    assert err < 5e-2, f"max |pallas - reference| = {err}"   # bf16-GEMM tolerance
    print("KERNEL_OK")
</pallas_src>

<mosaic_0001>
module attributes {stable_mosaic.version = 11 : i64} {
  func.func @_gelu_groupnorm_kernel(%arg0: i32, %arg1: memref<16x2x256xf32, #tpu.memory_space<vmem>>, %arg2: memref<16x2x1xf32, #tpu.memory_space<vmem>>, %arg3: memref<16x2x1xf32, #tpu.memory_space<vmem>>, %arg4: memref<16x2x256xbf16, #tpu.memory_space<vmem>>) attributes {dimension_semantics = [#tpu.dimension_semantics<parallel>], iteration_bounds = array<i64: 2>, scalar_prefetch = 0 : i64, scratch_operands = 0 : i64, tpu.core_type = #tpu.core_type<tc>, window_params = [{transform_indices = @transform_0, window_bounds = array<i64: 16, 2, 256>}, {pipeline_mode = #tpu.pipeline_mode<synchronous>, transform_indices = @transform_1, window_bounds = array<i64: 16, 2, 1>}, {pipeline_mode = #tpu.pipeline_mode<synchronous>, transform_indices = @transform_2, window_bounds = array<i64: 16, 2, 1>}, {transform_indices = @transform_3, window_bounds = array<i64: 16, 2, 256>}]} {
    %c0 = arith.constant 0 : index
    %c0_0 = arith.constant 0 : index
    %c0_1 = arith.constant 0 : index
    %0 = vector.load %arg1[%c0, %c0_0, %c0_1] : memref<16x2x256xf32, #tpu.memory_space<vmem>>, vector<16x2x256xf32>
    %cst = arith.constant 5.000000e-01 : f32
    %1 = vector.broadcast %cst : f32 to vector<16x2x256xf32>
    %2 = arith.mulf %1, %0 : vector<16x2x256xf32>
    %cst_2 = arith.constant 0.707106769 : f32
    %3 = vector.broadcast %cst_2 : f32 to vector<16x2x256xf32>
    %4 = arith.mulf %0, %3 : vector<16x2x256xf32>
    %cst_3 = arith.constant 0.000000e+00 : f32
    %5 = vector.broadcast %cst_3 : f32 to vector<16x2x256xf32>
    %6 = arith.cmpf olt, %4, %5 : vector<16x2x256xf32>
    %cst_4 = arith.constant -1.000000e+00 : f32
    %cst_5 = arith.constant 1.000000e+00 : f32
    %7 = vector.broadcast %cst_4 : f32 to vector<16x2x256xf32>
    %8 = vector.broadcast %cst_5 : f32 to vector<16x2x256xf32>
    %9 = arith.select %6, %7, %8 : vector<16x2x256xi1>, vector<16x2x256xf32>
    %10 = math.absf %4 : vector<16x2x256xf32>
    %cst_6 = arith.constant 0.327591091 : f32
    %11 = vector.broadcast %cst_6 : f32 to vector<16x2x256xf32>
    %12 = arith.mulf %11, %10 : vector<16x2x256xf32>
    %cst_7 = arith.constant 1.000000e+00 : f32
    %13 = vector.broadcast %cst_7 : f32 to vector<16x2x256xf32>
    %14 = arith.addf %13, %12 : vector<16x2x256xf32>
    %cst_8 = arith.constant 1.000000e+00 : f32
    %15 = vector.broadcast %cst_8 : f32 to vector<16x2x256xf32>
    %16 = arith.divf %15, %14 : vector<16x2x256xf32>
    %cst_9 = arith.constant 1.06140542 : f32
    %17 = vector.broadcast %cst_9 : f32 to vector<16x2x256xf32>
    %18 = arith.mulf %17, %16 : vector<16x2x256xf32>
    %cst_10 = arith.constant -1.45315206 : f32
    %19 = vector.broadcast %cst_10 : f32 to vector<16x2x256xf32>
    %20 = arith.addf %18, %19 : vector<16x2x256xf32>
    %21 = arith.mulf %20, %16 : vector<16x2x256xf32>
    %cst_11 = arith.constant 1.42141378 : f32
    %22 = vector.broadcast %cst_11 : f32 to vector<16x2x256xf32>
    %23 = arith.addf %21, %22 : vector<16x2x256xf32>
    %24 = arith.mulf %23, %16 : vector<16x2x256xf32>
    %cst_12 = arith.constant -0.284496725 : f32
    %25 = vector.broadcast %cst_12 : f32 to vector<16x2x256xf32>
    %26 = arith.addf %24, %25 : vector<16x2x256xf32>
    %27 = arith.mulf %26, %16 : vector<16x2x256xf32>
    %cst_13 = arith.constant 0.254829586 : f32
    %28 = vector.broadcast %cst_13 : f32 to vector<16x2x256xf32>
    %29 = arith.addf %27, %28 : vector<16x2x256xf32>
    %30 = arith.mulf %29, %16 : vector<16x2x256xf32>
    %cst_14 = arith.constant 0.000000e+00 : f32
    %31 = vector.broadcast %cst_14 : f32 to vector<16x2x256xf32>
    %32 = arith.subf %31, %10 : vector<16x2x256xf32>
    %33 = arith.mulf %32, %10 : vector<16x2x256xf32>
    %34 = math.exp %33 : vector<16x2x256xf32>
    %35 = arith.mulf %30, %34 : vector<16x2x256xf32>
    %cst_15 = arith.constant 1.000000e+00 : f32
    %36 = vector.broadcast %cst_15 : f32 to vector<16x2x256xf32>
    %37 = arith.subf %36, %35 : vector<16x2x256xf32>
    %38 = arith.mulf %9, %37 : vector<16x2x256xf32>
    %cst_16 = arith.constant 1.000000e+00 : f32
    %39 = vector.broadcast %cst_16 : f32 to vector<16x2x256xf32>
    %40 = arith.addf %39, %38 : vector<16x2x256xf32>
    %41 = arith.mulf %2, %40 : vector<16x2x256xf32>
    %cst_17 = arith.constant dense<0.000000e+00> : vector<16x2xf32>
    %42 = vector.multi_reduction <add>, %41, %cst_17 [2] : vector<16x2x256xf32> to vector<16x2xf32>
    %43 = vector.shape_cast %42 : vector<16x2xf32> to vector<16x2x1xf32>
    %44 = vector.extract_strided_slice %43 {offsets = [0, 0, 0], sizes = [16, 1, 1], strides = [1, 1, 1]} : vector<16x2x1xf32> to vector<16x1x1xf32>
    %45 = vector.extract_strided_slice %43 {offsets = [0, 1, 0], sizes = [16, 1, 1], strides = [1, 1, 1]} : vector<16x2x1xf32> to vector<16x1x1xf32>
    %46 = arith.addf %44, %45 : vector<16x1x1xf32>
    %cst_18 = arith.constant 0.001953125 : f32
    %47 = vector.broadcast %cst_18 : f32 to vector<16x1x1xf32>
    %48 = arith.mulf %46, %47 : vector<16x1x1xf32>
    %49 = vector.broadcast %48 : vector<16x1x1xf32> to vector<16x2x256xf32>
    %50 = arith.subf %41, %49 : vector<16x2x256xf32>
    %51 = arith.mulf %50, %50 : vector<16x2x256xf32>
    %cst_19 = arith.constant dense<0.000000e+00> : vector<16x2xf32>
    %52 = vector.multi_reduction <add>, %51, %cst_19 [2] : vector<16x2x256xf32> to vector<16x2xf32>
    %53 = vector.shape_cast %52 : vector<16x2xf32> to vector<16x2x1xf32>
    %54 = vector.extract_strided_slice %53 {offsets = [0, 0, 0], sizes = [16, 1, 1], strides = [1, 1, 1]} : vector<16x2x1xf32> to vector<16x1x1xf32>
    %55 = vector.extract_strided_slice %53 {offsets = [0, 1, 0], sizes = [16, 1, 1], strides = [1, 1, 1]} : vector<16x2x1xf32> to vector<16x1x1xf32>
    %56 = arith.addf %54, %55 : vector<16x1x1xf32>
    %cst_20 = arith.constant 0.001953125 : f32
    %57 = vector.broadcast %cst_20 : f32 to vector<16x1x1xf32>
    %58 = arith.mulf %56, %57 : vector<16x1x1xf32>
    %cst_21 = arith.constant 9.99999974E-6 : f32
    %59 = vector.broadcast %cst_21 : f32 to vector<16x1x1xf32>
    %60 = arith.addf %58, %59 : vector<16x1x1xf32>
    %61 = math.rsqrt %60 : vector<16x1x1xf32>
    %62 = vector.broadcast %61 : vector<16x1x1xf32> to vector<16x2x256xf32>
    %63 = arith.mulf %50, %62 : vector<16x2x256xf32>
    %c0_22 = arith.constant 0 : index
    %c0_23 = arith.constant 0 : index
    %c0_24 = arith.constant 0 : index
    %64 = vector.load %arg2[%c0_22, %c0_23, %c0_24] : memref<16x2x1xf32, #tpu.memory_space<vmem>>, vector<16x2x1xf32>
    %65 = vector.broadcast %64 : vector<16x2x1xf32> to vector<16x2x256xf32>
    %66 = arith.mulf %63, %65 : vector<16x2x256xf32>
    %c0_25 = arith.constant 0 : index
    %c0_26 = arith.constant 0 : index
    %c0_27 = arith.constant 0 : index
    %67 = vector.load %arg3[%c0_25, %c0_26, %c0_27] : memref<16x2x1xf32, #tpu.memory_space<vmem>>, vector<16x2x1xf32>
    %68 = vector.broadcast %67 : vector<16x2x1xf32> to vector<16x2x256xf32>
    %69 = arith.addf %66, %68 : vector<16x2x256xf32>
    %70 = arith.truncf %69 : vector<16x2x256xf32> to vector<16x2x256xbf16>
    %c0_28 = arith.constant 0 : index
    %c0_29 = arith.constant 0 : index
    %c0_30 = arith.constant 0 : index
    %71 = vector.load %arg4[%c0_28, %c0_29, %c0_30] : memref<16x2x256xbf16, #tpu.memory_space<vmem>>, vector<16x2x256xbf16>
    tpu.vector_store %arg4[%c0_28, %c0_29, %c0_30], %70 {strides = array<i32>} : memref<16x2x256xbf16, #tpu.memory_space<vmem>>, vector<16x2x256xbf16>,
    return
  }
  func.func @transform_0(%arg0: i32) -> (i32, i32, i32) {
    %c0_i32 = arith.constant 0 : i32
    %c0_i32_0 = arith.constant 0 : i32
    %c0_i32_1 = arith.constant 0 : i32
    return %arg0, %c0_i32, %c0_i32_0 : i32, i32, i32
  }
  func.func @transform_1(%arg0: i32) -> (i32, i32, i32) {
    %c0_i32 = arith.constant 0 : i32
    %c0_i32_0 = arith.constant 0 : i32
    %c0_i32_1 = arith.constant 0 : i32
    %c0_i32_2 = arith.constant 0 : i32
    return %c0_i32, %c0_i32_0, %c0_i32_1 : i32, i32, i32
  }
  func.func @transform_2(%arg0: i32) -> (i32, i32, i32) {
    %c0_i32 = arith.constant 0 : i32
    %c0_i32_0 = arith.constant 0 : i32
    %c0_i32_1 = arith.constant 0 : i32
    %c0_i32_2 = arith.constant 0 : i32
    return %c0_i32, %c0_i32_0, %c0_i32_1 : i32, i32, i32
  }
  func.func @transform_3(%arg0: i32) -> (i32, i32, i32) {
    %c0_i32 = arith.constant 0 : i32
    %c0_i32_0 = arith.constant 0 : i32
    %c0_i32_1 = arith.constant 0 : i32
    return %arg0, %c0_i32, %c0_i32_0 : i32, i32, i32
  }
}

module attributes {stable_mosaic.version = 11 : i64} {
  func.func @_mm_bias_kernel(%arg0: i32, %arg1: i32, %arg2: memref<304x288xbf16, #tpu.memory_space<vmem>>, %arg3: memref<288x128xbf16, #tpu.memory_space<vmem>>, %arg4: memref<1x128xf32, #tpu.memory_space<vmem>>, %arg5: memref<304x128xbf16, #tpu.memory_space<vmem>>) attributes {dimension_semantics = [#tpu.dimension_semantics<parallel>, #tpu.dimension_semantics<parallel>], iteration_bounds = array<i64: 2, 1>, scalar_prefetch = 0 : i64, scratch_operands = 0 : i64, tpu.core_type = #tpu.core_type<tc>, window_params = [{transform_indices = @transform_0, window_bounds = array<i64: 304, 288>}, {transform_indices = @transform_1, window_bounds = array<i64: 288, 128>}, {transform_indices = @transform_2, window_bounds = array<i64: 1, 128>}, {transform_indices = @transform_3, window_bounds = array<i64: 304, 128>}]} {
    %c0 = arith.constant 0 : index
    %c0_0 = arith.constant 0 : index
    %0 = vector.load %arg2[%c0, %c0_0] : memref<304x288xbf16, #tpu.memory_space<vmem>>, vector<304x288xbf16>
    %c0_1 = arith.constant 0 : index
    %c0_2 = arith.constant 0 : index
    %1 = vector.load %arg3[%c0_1, %c0_2] : memref<288x128xbf16, #tpu.memory_space<vmem>>, vector<288x128xbf16>
    %cst = arith.constant dense<0.000000e+00> : vector<304x128xf32>
    %2 = tpu.matmul %0, %1, %cst {dimension_numbers = #tpu.dot_dimension_numbers<[1], [0], [0], [1], [0, 0, 1, 1], [], []>} : vector<304x288xbf16>, vector<288x128xbf16>, vector<304x128xf32> -> vector<304x128xf32>
    %c0_3 = arith.constant 0 : index
    %c0_4 = arith.constant 0 : index
    %3 = vector.load %arg4[%c0_3, %c0_4] : memref<1x128xf32, #tpu.memory_space<vmem>>, vector<1x128xf32>
    %4 = vector.broadcast %3 : vector<1x128xf32> to vector<304x128xf32>
    %5 = arith.addf %2, %4 : vector<304x128xf32>
    %6 = arith.truncf %5 : vector<304x128xf32> to vector<304x128xbf16>
    %c0_5 = arith.constant 0 : index
    %c0_6 = arith.constant 0 : index
    %7 = vector.load %arg5[%c0_5, %c0_6] : memref<304x128xbf16, #tpu.memory_space<vmem>>, vector<304x128xbf16>
    tpu.vector_store %arg5[%c0_5, %c0_6], %6 {strides = array<i32>} : memref<304x128xbf16, #tpu.memory_space<vmem>>, vector<304x128xbf16>,
    return
  }
  func.func @transform_0(%arg0: i32, %arg1: i32) -> (i32, i32) {
    %c0_i32 = arith.constant 0 : i32
    %c0_i32_0 = arith.constant 0 : i32
    return %arg0, %c0_i32 : i32, i32
  }
  func.func @transform_1(%arg0: i32, %arg1: i32) -> (i32, i32) {
    %c0_i32 = arith.constant 0 : i32
    %c0_i32_0 = arith.constant 0 : i32
    return %c0_i32, %arg1 : i32, i32
  }
  func.func @transform_2(%arg0: i32, %arg1: i32) -> (i32, i32) {
    %c0_i32 = arith.constant 0 : i32
    %c0_i32_0 = arith.constant 0 : i32
    return %c0_i32, %arg1 : i32, i32
  }
  func.func @transform_3(%arg0: i32, %arg1: i32) -> (i32, i32) {
    %c0_i32 = arith.constant 0 : i32
    return %arg0, %arg1 : i32, i32
  }
}

</mosaic_0001>

<llo_original>
// kernel: upsample_forward.2
$region0: #{upsample_forward.2}
  #allocation0 [shape = 'u32[]', space=smem, size = 0x4, offset = 0x4, fixed_abs, tag = 'smem constant byte address 0x4 - core index']
  #allocation1 [shape = 'u32[72,128]{1,0:T(1,128)}', space=vmem, size = 0x9000, scoped, tag = 'internal scratch']
  %s0 = inlined_call_operand.vmem [shape: f32[32,2,256], index: 0, kind: input, shape index: {}]
  %s1 = inlined_call_operand.hbm [shape: f32[16,2,1], index: 1, kind: input, shape index: {}]
  %s2 = inlined_call_operand.hbm [shape: f32[16,2,1], index: 2, kind: input, shape index: {}]
  %s3 = inlined_call_operand.vmem [shape: bf16[32,2,256], index: 3, kind: output, shape index: {}]
  %s4 = sld [smem:[#allocation0]]
  $region53: #{upsample_forward.2} parent=0
    _
  %s6 = ssub.s32 1, %s4
  %s7 = scalar_select 0, %s6, %s4
  $region1: #{upsample_forward.2} parent=0
    #allocation2 [shape = 'u8[16384]{0}', space=vmem, size = 0x4000, scoped, tag = 'input window, operand 1, single buffered']
    #allocation3 [shape = 's32[2]{0}', space=sflag, size = 0x8, scoped, tag = 'scoped memory for upsample_forward.2']
    #allocation4 [shape = 'u8[16384]{0}', space=vmem, size = 0x4000, scoped, tag = 'input window, operand 2, single buffered']
    #allocation5 [shape = 's32[1]{0}', space=sflag, size = 0x4, scoped, tag = 'scoped memory for upsample_forward.2']
    %8 = vsyncpa [#allocation3], 0
    %9 = vsyncpa [#allocation5], 0
    loop: start=0, step=1, limit=4
    $region2: #{upsample_forward.2} parent=1 // loop_pre_header
      _
    $region3: #{upsample_forward.2} parent=1 // loop_header
      %s11 = sphi 0, %s15
      %p12 = scmp.ge.s32.totalorder %s11, 4
      %s21 = sphi 0, %s23
      %s24 = sphi 0, %s21
      %s25 = sphi 0, %s24
      %s41 = sphi 0, %s25
      %s45 = sphi 0, %s45
      %s47 = sphi 0, %s45
      %s48 = sphi 0, %s47
      %s62 = sphi 0, %s48
      %s66 = sphi 0, %s66
      %s68 = sphi 0, %s66
      %s69 = sphi 0, %s68
      %s83 = sphi 0, %s69
      %s89 = sphi 0, %s91
      %s92 = sphi 0, %s89
      %s93 = sphi 0, %s92
      %s109 = sphi 0, %s93
    $region4: #{upsample_forward.2} parent=1 // loop_header_branch
      %14 = sbr.rel (%p12) target = $region8
    $region5: #{upsample_forward.2} parent=1 // loop_body
      %s16 = ssub.s32 %s11, 1
      %s17 = ssub.s32 %s11, 2
      %s18 = sadd.s32 %s11, 1
      %s19 = ssub.s32 %s11, %s18
      %p20 = scmp.eq.s32.totalorder %s19, 0
      %s22 = sadd.s32 %s21, 1
      %s23 = scalar_select %p20, %s21, %s22
      %p26 = pneg %p20
      %p27 = scmp.eq.s32.totalorder %s11, 1
      %p28 = por %p26, %p27
      %p29 = scmp.ne.s32.totalorder %s21, %s24
      %p30 = scmp.eq.s32.totalorder %s11, 0
      %p31 = por %p29, %p30
      %p32 = scmp.ne.s32.totalorder %s21, %s24
      %p33 = scmp.eq.s32.totalorder %s16, 1
      %p34 = por %p32, %p33
      %p35 = scmp.ne.s32.totalorder %s24, %s25
      %p36 = scmp.eq.s32.totalorder %s16, 0
      %p37 = por %p35, %p36
      %p38 = scmp.ne.s32.totalorder %s24, %s25
      %p39 = scmp.eq.s32.totalorder %s17, 1
      %p40 = por %p38, %p39
      %p42 = scmp.ne.s32.totalorder %s25, %s41
      %p43 = scmp.eq.s32.totalorder %s17, 0
      %p44 = por %p42, %p43
      %s46 = sadd.s32 %s45, 1
      %p49 = scmp.eq.s32.totalorder %s11, 1
      %p50 = scmp.ne.s32.totalorder %s45, %s47
      %p51 = scmp.eq.s32.totalorder %s11, 0
      %p52 = por %p50, %p51
      %p53 = scmp.ne.s32.totalorder %s45, %s47
      %p54 = scmp.eq.s32.totalorder %s16, 1
      %p55 = por %p53, %p54
      %p56 = scmp.ne.s32.totalorder %s47, %s48
      %p57 = scmp.eq.s32.totalorder %s16, 0
      %p58 = por %p56, %p57
      %p59 = scmp.ne.s32.totalorder %s47, %s48
      %p60 = scmp.eq.s32.totalorder %s17, 1
      %p61 = por %p59, %p60
      %p63 = scmp.ne.s32.totalorder %s48, %s62
      %p64 = scmp.eq.s32.totalorder %s17, 0
      %p65 = por %p63, %p64
      %s67 = sadd.s32 %s66, 1
      %p70 = scmp.eq.s32.totalorder %s11, 1
      %p71 = scmp.ne.s32.totalorder %s66, %s68
      %p72 = scmp.eq.s32.totalorder %s11, 0
      %p73 = por %p71, %p72
      %p74 = scmp.ne.s32.totalorder %s66, %s68
      %p75 = scmp.eq.s32.totalorder %s16, 1
      %p76 = por %p74, %p75
      %p77 = scmp.ne.s32.totalorder %s68, %s69
      %p78 = scmp.eq.s32.totalorder %s16, 0
      %p79 = por %p77, %p78
      %p80 = scmp.ne.s32.totalorder %s68, %s69
      %p81 = scmp.eq.s32.totalorder %s17, 1
      %p82 = por %p80, %p81
      %p84 = scmp.ne.s32.totalorder %s69, %s83
      %p85 = scmp.eq.s32.totalorder %s17, 0
      %p86 = por %p84, %p85
      %s87 = ssub.s32 %s11, %s18
      %p88 = scmp.eq.s32.totalorder %s87, 0
      %s90 = sadd.s32 %s89, 1
      %s91 = scalar_select %p88, %s89, %s90
      %p94 = pneg %p88
      %p95 = scmp.eq.s32.totalorder %s11, 1
      %p96 = por %p94, %p95
      %p97 = scmp.ne.s32.totalorder %s89, %s92
      %p98 = scmp.eq.s32.totalorder %s11, 0
      %p99 = por %p97, %p98
      %p100 = scmp.ne.s32.totalorder %s89, %s92
      %p101 = scmp.eq.s32.totalorder %s16, 1
      %p102 = por %p100, %p101
      %p103 = scmp.ne.s32.totalorder %s92, %s93
      %p104 = scmp.eq.s32.totalorder %s16, 0
      %p105 = por %p103, %p104
      %p106 = scmp.ne.s32.totalorder %s92, %s93
      %p107 = scmp.eq.s32.totalorder %s17, 1
      %p108 = por %p106, %p107
      %p110 = scmp.ne.s32.totalorder %s93, %s109
      %p111 = scmp.eq.s32.totalorder %s17, 0
      %p112 = por %p110, %p111
      %p113 = scmp.le.s32.totalorder 1, %s11
      %p114 = scmp.lt.s32.totalorder %s11, 3
      %p115 = pnand %p113, %p114
      %p116 = pneg %p115
      // Predicated region
      $region9: #{upsample_forward.2} parent=5 // pred_check
        _
      $region10: #{upsample_forward.2} parent=5 // pred_check_branch
        %118 = sbr.rel (%p115) target = $region12
      $region11: #{upsample_forward.2} parent=5 // pred_region
        %s119 = ssub.s32 %s11, 1
        // Predicated region
        $region13: #{upsample_forward.2} parent=11 // pred_check
          %p120 = pneg %p58
        $region14: #{upsample_forward.2} parent=11 // pred_check_branch
          %122 = sbr.rel (%p120) target = $region16
        $region15: #{upsample_forward.2} parent=11 // pred_region
          %124 = vsyncadd [#allocation3], 0
          %s125 = sshll.u32 %s1, 4
          %s126 = int_to_ptr.hbm [resolvable:$true] %s125
          %s127 = sshll.u32 [#allocation2], 4
          %s128 = int_to_ptr.vmem [resolvable:$true] %s127
          %133 = dma.hbm_to_vmem [thread:$0]  %s126, 512, %s128, [#allocation3], 32, 32, 2
        $region16: #{upsample_forward.2} parent=11 // pred_fallthru
          _
        // Predicated region
        $region17: #{upsample_forward.2} parent=11 // pred_check
          %p134 = pneg %p79
        $region18: #{upsample_forward.2} parent=11 // pred_check_branch
          %136 = sbr.rel (%p134) target = $region20
        $region19: #{upsample_forward.2} parent=11 // pred_region
          %138 = vsyncadd [#allocation5], 0
          %s139 = sshll.u32 %s2, 4
          %s140 = int_to_ptr.hbm [resolvable:$true] %s139
          %s141 = sshll.u32 [#allocation4], 4
          %s142 = int_to_ptr.vmem [resolvable:$true] %s141
          %147 = dma.hbm_to_vmem [thread:$0]  %s140, 512, %s142, [#allocation5], 32, 32, 2
        $region20: #{upsample_forward.2} parent=11 // pred_fallthru
          _
      $region12: #{upsample_forward.2} parent=5 // pred_fallthru
        _
      %p148 = scmp.lt.s32.totalorder %s11, 2
      // Predicated region
      $region21: #{upsample_forward.2} parent=5 // pred_check
        %p149 = pneg %p148
      $region22: #{upsample_forward.2} parent=5 // pred_check_branch
        %151 = sbr.rel (%p149) target = $region24
      $region23: #{upsample_forward.2} parent=5 // pred_region
        // Predicated region
        $region25: #{upsample_forward.2} parent=23 // pred_check
          %p152 = pneg %p31
        $region26: #{upsample_forward.2} parent=23 // pred_check_branch
          %154 = sbr.rel (%p152) target = $region28
        $region27: #{upsample_forward.2} parent=23 // pred_region
          %s155 = smul.u32 16, %s11
          %p156 = scmp.lt.s32.totalorder %s155, 31
          %s157 = scalar_select %p156, %s155, 31
          %s158 = smul.addr %s157, 2
          %s159 = smul.addr %s158, 2
          %s160 = scalar_lea.vmem %s0, %s159
          %s161 = smul.u32 16, %s11
        $region28: #{upsample_forward.2} parent=23 // pred_fallthru
          _
      $region24: #{upsample_forward.2} parent=5 // pred_fallthru
        _
      %p162 = scmp.le.s32.totalorder 1, %s11
      %p163 = scmp.lt.s32.totalorder %s11, 3
      %p164 = pnand %p162, %p163
      %p165 = pneg %p164
      // Predicated region
      $region29: #{upsample_forward.2} parent=5 // pred_check
        _
      $region30: #{upsample_forward.2} parent=5 // pred_check_branch
        %167 = sbr.rel (%p164) target = $region32
      $region31: #{upsample_forward.2} parent=5 // pred_region
        %s168 = ssub.s32 %s11, 1
        // Predicated region
        $region33: #{upsample_forward.2} parent=31 // pred_check
          %p169 = pneg %p58
        $region34: #{upsample_forward.2} parent=31 // pred_check_branch
          %171 = sbr.rel (%p169) target = $region36
        $region35: #{upsample_forward.2} parent=31 // pred_region
          %173 = dma.done [#allocation3], 512
        $region36: #{upsample_forward.2} parent=31 // pred_fallthru
          _
        // Predicated region
        $region37: #{upsample_forward.2} parent=31 // pred_check
          %p174 = pneg %p79
        $region38: #{upsample_forward.2} parent=31 // pred_check_branch
          %176 = sbr.rel (%p174) target = $region40
        $region39: #{upsample_forward.2} parent=31 // pred_region
          %178 = dma.done [#allocation5], 512
        $region40: #{upsample_forward.2} parent=31 // pred_fallthru
          _
        %s179 = smul.u32 16, %s16
        %p180 = scmp.lt.s32.totalorder %s179, 31
        %s181 = scalar_select %p180, %s179, 31
        %s182 = smul.addr %s181, 2
        %s183 = smul.addr %s182, 2
        %s184 = scalar_lea.vmem %s0, %s183
        %p185 = pneg %p37
        %p186 = pneg %p34
        %p187 = pneg %p58
        %p188 = pneg %p55
        %p189 = pneg %p79
        %p190 = pneg %p76
        %p191 = pneg %p105
        %p192 = pneg %p102
        %s193 = smul.u32 16, %s16
        %p194 = scmp.lt.s32.totalorder %s193, 31
        %s195 = scalar_select %p194, %s193, 31
        %s196 = smul.addr %s195, 2
        %s197 = scalar_lea.vmem %s3, %s196
        %s198 = smul.u32 16, %s16
        %p199 = scmp.lt.s32.totalorder %s198, 31
        %s200 = scalar_select %p199, %s198, 31
        %s201 = smul.addr %s200, 2
        %s202 = smul.addr %s201, 2
        %s203 = scalar_lea.vmem %s0, %s202
        %s204 = smul.u32 16, %s16
        %s205 = smul.u32 16, %s16
        %p206 = scmp.lt.s32.totalorder %s205, 31
        %s207 = scalar_select %p206, %s205, 31
        %s208 = smul.addr %s207, 2
        %s209 = scalar_lea.vmem %s3, %s208
        %s210 = smul.u32 16, %s16
        %v211 = vld [vmem:[%s203] sm:$0xf]
        %v212 = vld [vmem:[%s203 + $0x4] sm:$0xf]
        %v213 = vld [vmem:[%s203 + $0x8] sm:$0xf]
        %v214 = vld [vmem:[%s203 + $0xc] sm:$0xf]
        %v215 = vld [vmem:[%s203 + $0x10] sm:$0xf]
        %v216 = vld [vmem:[%s203 + $0x14] sm:$0xf]
        %v217 = vld [vmem:[%s203 + $0x18] sm:$0xf]
        %v218 = vld [vmem:[%s203 + $0x1c] sm:$0xf]
        %v219 = vld [vmem:[%s203 + $0x20] sm:$0xf]
        %v220 = vld [vmem:[%s203 + $0x24] sm:$0xf]
        %v221 = vld [vmem:[%s203 + $0x28] sm:$0xf]
        %v222 = vld [vmem:[%s203 + $0x2c] sm:$0xf]
        %v223 = vld [vmem:[%s203 + $0x30] sm:$0xf]
        %v224 = vld [vmem:[%s203 + $0x34] sm:$0xf]
        %v225 = vld [vmem:[%s203 + $0x38] sm:$0xf]
        %v226 = vld [vmem:[%s203 + $0x3c] sm:$0xf]
        %v227 = vmul.f32 %v211, 0.5
        %v228 = vmul.f32 %v212, 0.5
        %v229 = vmul.f32 %v213, 0.5
        %v230 = vmul.f32 %v214, 0.5
        %v231 = vmul.f32 %v215, 0.5
        %v232 = vmul.f32 %v216, 0.5
        %v233 = vmul.f32 %v217, 0.5
        %v234 = vmul.f32 %v218, 0.5
        %v235 = vmul.f32 %v219, 0.5
        %v236 = vmul.f32 %v220, 0.5
        %v237 = vmul.f32 %v221, 0.5
        %v238 = vmul.f32 %v222, 0.5
        %v239 = vmul.f32 %v223, 0.5
        %v240 = vmul.f32 %v224, 0.5
        %v241 = vmul.f32 %v225, 0.5
        %v242 = vmul.f32 %v226, 0.5
        %v243 = vmul.f32 %v211, 0.70710677
        %v244 = vmul.f32 %v212, 0.70710677
        %v245 = vmul.f32 %v213, 0.70710677
        %v246 = vmul.f32 %v214, 0.70710677
        %v247 = vmul.f32 %v215, 0.70710677
        %v248 = vmul.f32 %v216, 0.70710677
        %v249 = vmul.f32 %v217, 0.70710677
        %v250 = vmul.f32 %v218, 0.70710677
        %v251 = vmul.f32 %v219, 0.70710677
        %v252 = vmul.f32 %v220, 0.70710677
        %v253 = vmul.f32 %v221, 0.70710677
        %v254 = vmul.f32 %v222, 0.70710677
        %v255 = vmul.f32 %v223, 0.70710677
        %v256 = vmul.f32 %v224, 0.70710677
        %v257 = vmul.f32 %v225, 0.70710677
        %v258 = vmul.f32 %v226, 0.70710677
        %vm259 = vcmp.lt.f32.partialorder %v243, 0.0
        %vm260 = vcmp.lt.f32.partialorder %v244, 0.0
        %vm261 = vcmp.lt.f32.partialorder %v245, 0.0
        %vm262 = vcmp.lt.f32.partialorder %v246, 0.0
        %vm263 = vcmp.lt.f32.partialorder %v247, 0.0
        %vm264 = vcmp.lt.f32.partialorder %v248, 0.0
        %vm265 = vcmp.lt.f32.partialorder %v249, 0.0
        %vm266 = vcmp.lt.f32.partialorder %v250, 0.0
        %vm267 = vcmp.lt.f32.partialorder %v251, 0.0
        %vm268 = vcmp.lt.f32.partialorder %v252, 0.0
        %vm269 = vcmp.lt.f32.partialorder %v253, 0.0
        %vm270 = vcmp.lt.f32.partialorder %v254, 0.0
        %vm271 = vcmp.lt.f32.partialorder %v255, 0.0
        %vm272 = vcmp.lt.f32.partialorder %v256, 0.0
        %vm273 = vcmp.lt.f32.partialorder %v257, 0.0
        %vm274 = vcmp.lt.f32.partialorder %v258, 0.0
        %v275 = vsel %vm259, -1.0, 1.0
        %v276 = vsel %vm260, -1.0, 1.0
        %v277 = vsel %vm261, -1.0, 1.0
        %v278 = vsel %vm262, -1.0, 1.0
        %v279 = vsel %vm263, -1.0, 1.0
        %v280 = vsel %vm264, -1.0, 1.0
        %v281 = vsel %vm265, -1.0, 1.0
        %v282 = vsel %vm266, -1.0, 1.0
        %v283 = vsel %vm267, -1.0, 1.0
        %v284 = vsel %vm268, -1.0, 1.0
        %v285 = vsel %vm269, -1.0, 1.0
        %v286 = vsel %vm270, -1.0, 1.0
        %v287 = vsel %vm271, -1.0, 1.0
        %v288 = vsel %vm272, -1.0, 1.0
        %v289 = vsel %vm273, -1.0, 1.0
        %v290 = vsel %vm274, -1.0, 1.0
        %v291 = vand.u32 2147483647, %v243
        %v292 = vand.u32 2147483647, %v244
        %v293 = vand.u32 2147483647, %v245
        %v294 = vand.u32 2147483647, %v246
        %v295 = vand.u32 2147483647, %v247
        %v296 = vand.u32 2147483647, %v248
        %v297 = vand.u32 2147483647, %v249
        %v298 = vand.u32 2147483647, %v250
        %v299 = vand.u32 2147483647, %v251
        %v300 = vand.u32 2147483647, %v252
        %v301 = vand.u32 2147483647, %v253
        %v302 = vand.u32 2147483647, %v254
        %v303 = vand.u32 2147483647, %v255
        %v304 = vand.u32 2147483647, %v256
        %v305 = vand.u32 2147483647, %v257
        %v306 = vand.u32 2147483647, %v258
        %v307 = vmul.f32 %v291, 0.3275911
        %v308 = vmul.f32 %v292, 0.3275911
        %v309 = vmul.f32 %v293, 0.3275911
        %v310 = vmul.f32 %v294, 0.3275911
        %v311 = vmul.f32 %v295, 0.3275911
        %v312 = vmul.f32 %v296, 0.3275911
        %v313 = vmul.f32 %v297, 0.3275911
        %v314 = vmul.f32 %v298, 0.3275911
        %v315 = vmul.f32 %v299, 0.3275911
        %v316 = vmul.f32 %v300, 0.3275911
        %v317 = vmul.f32 %v301, 0.3275911
        %v318 = vmul.f32 %v302, 0.3275911
        %v319 = vmul.f32 %v303, 0.3275911
        %v320 = vmul.f32 %v304, 0.3275911
        %v321 = vmul.f32 %v305, 0.3275911
        %v322 = vmul.f32 %v306, 0.3275911
        %v323 = vadd.f32 %v307, 1.0
        %v324 = vadd.f32 %v308, 1.0
        %v325 = vadd.f32 %v309, 1.0
        %v326 = vadd.f32 %v310, 1.0
        %v327 = vadd.f32 %v311, 1.0
        %v328 = vadd.f32 %v312, 1.0
        %v329 = vadd.f32 %v313, 1.0
        %v330 = vadd.f32 %v314, 1.0
        %v331 = vadd.f32 %v315, 1.0
        %v332 = vadd.f32 %v316, 1.0
        %v333 = vadd.f32 %v317, 1.0
        %v334 = vadd.f32 %v318, 1.0
        %v335 = vadd.f32 %v319, 1.0
        %v336 = vadd.f32 %v320, 1.0
        %v337 = vadd.f32 %v321, 1.0
        %v338 = vadd.f32 %v322, 1.0
        %v339 = vrcp.pop %v323
        %v340 = vmul.f32 %v323, %v339
        %v341 = vsub.f32 1.0, %v340
        %v342 = vmul.f32 %v339, %v341
        %v343 = vadd.f32 %v339, %v342
        %vm344 = vweird.f32 %v323
        %vm345 = vweird.f32 %v339
        %vm346 = vmor %vm344, %vm345
        %v347 = vsel %vm346, %v339, %v343
        %v348 = vand.u32 2147483647, %v323
        %vm349 = vcmp.eq.f32.partialorder %v348, 8.507059e+37
        %v350 = vand.u32 %v323, 2147483648
        %v351 = vor.u32 1.1754944e-38, %v350
        %v352 = vsel %vm349, %v351, %v347
        %v353 = vmul.f32 1.0, %v352
        %v354 = vrcp.pop %v324
        %v355 = vmul.f32 %v324, %v354
        %v356 = vsub.f32 1.0, %v355
        %v357 = vmul.f32 %v354, %v356
        %v358 = vadd.f32 %v354, %v357
        %vm359 = vweird.f32 %v324
        %vm360 = vweird.f32 %v354
        %vm361 = vmor %vm359, %vm360
        %v362 = vsel %vm361, %v354, %v358
        %v363 = vand.u32 2147483647, %v324
        %vm364 = vcmp.eq.f32.partialorder %v363, 8.507059e+37
        %v365 = vand.u32 %v324, 2147483648
        %v366 = vor.u32 1.1754944e-38, %v365
        %v367 = vsel %vm364, %v366, %v362
        %v368 = vmul.f32 1.0, %v367
        %v369 = vrcp.pop %v325
        %v370 = vmul.f32 %v325, %v369
        %v371 = vsub.f32 1.0, %v370
        %v372 = vmul.f32 %v369, %v371
        %v373 = vadd.f32 %v369, %v372
        %vm374 = vweird.f32 %v325
        %vm375 = vweird.f32 %v369
        %vm376 = vmor %vm374, %vm375
        %v377 = vsel %vm376, %v369, %v373
        %v378 = vand.u32 2147483647, %v325
        %vm379 = vcmp.eq.f32.partialorder %v378, 8.507059e+37
        %v380 = vand.u32 %v325, 2147483648
        %v381 = vor.u32 1.1754944e-38, %v380
        %v382 = vsel %vm379, %v381, %v377
        %v383 = vmul.f32 1.0, %v382
        %v384 = vrcp.pop %v326
        %v385 = vmul.f32 %v326, %v384
        %v386 = vsub.f32 1.0, %v385
        %v387 = vmul.f32 %v384, %v386
        %v388 = vadd.f32 %v384, %v387
        %vm389 = vweird.f32 %v326
        %vm390 = vweird.f32 %v384
        %vm391 = vmor %vm389, %vm390
        %v392 = vsel %vm391, %v384, %v388
        %v393 = vand.u32 2147483647, %v326
        %vm394 = vcmp.eq.f32.partialorder %v393, 8.507059e+37
        %v395 = vand.u32 %v326, 2147483648
        %v396 = vor.u32 1.1754944e-38, %v395
        %v397 = vsel %vm394, %v396, %v392
        %v398 = vmul.f32 1.0, %v397
        %v399 = vrcp.pop %v327
        %v400 = vmul.f32 %v327, %v399
        %v401 = vsub.f32 1.0, %v400
        %v402 = vmul.f32 %v399, %v401
        %v403 = vadd.f32 %v399, %v402
        %vm404 = vweird.f32 %v327
        %vm405 = vweird.f32 %v399
        %vm406 = vmor %vm404, %vm405
        %v407 = vsel %vm406, %v399, %v403
        %v408 = vand.u32 2147483647, %v327
        %vm409 = vcmp.eq.f32.partialorder %v408, 8.507059e+37
        %v410 = vand.u32 %v327, 2147483648
        %v411 = vor.u32 1.1754944e-38, %v410
        %v412 = vsel %vm409, %v411, %v407
        %v413 = vmul.f32 1.0, %v412
        %v414 = vrcp.pop %v328
        %v415 = vmul.f32 %v328, %v414
        %v416 = vsub.f32 1.0, %v415
        %v417 = vmul.f32 %v414, %v416
        %v418 = vadd.f32 %v414, %v417
        %vm419 = vweird.f32 %v328
        %vm420 = vweird.f32 %v414
        %vm421 = vmor %vm419, %vm420
        %v422 = vsel %vm421, %v414, %v418
        %v423 = vand.u32 2147483647, %v328
        %vm424 = vcmp.eq.f32.partialorder %v423, 8.507059e+37
        %v425 = vand.u32 %v328, 2147483648
        %v426 = vor.u32 1.1754944e-38, %v425
        %v427 = vsel %vm424, %v426, %v422
        %v428 = vmul.f32 1.0, %v427
        %v429 = vrcp.pop %v329
        %v430 = vmul.f32 %v329, %v429
        %v431 = vsub.f32 1.0, %v430
        %v432 = vmul.f32 %v429, %v431
        %v433 = vadd.f32 %v429, %v432
        %vm434 = vweird.f32 %v329
        %vm435 = vweird.f32 %v429
        %vm436 = vmor %vm434, %vm435
        %v437 = vsel %vm436, %v429, %v433
        %v438 = vand.u32 2147483647, %v329
        %vm439 = vcmp.eq.f32.partialorder %v438, 8.507059e+37
        %v440 = vand.u32 %v329, 2147483648
        %v441 = vor.u32 1.1754944e-38, %v440
        %v442 = vsel %vm439, %v441, %v437
        %v443 = vmul.f32 1.0, %v442
        %v444 = vrcp.pop %v330
        %v445 = vmul.f32 %v330, %v444
        %v446 = vsub.f32 1.0, %v445
        %v447 = vmul.f32 %v444, %v446
        %v448 = vadd.f32 %v444, %v447
        %vm449 = vweird.f32 %v330
        %vm450 = vweird.f32 %v444
        %vm451 = vmor %vm449, %vm450
        %v452 = vsel %vm451, %v444, %v448
        %v453 = vand.u32 2147483647, %v330
        %vm454 = vcmp.eq.f32.partialorder %v453, 8.507059e+37
        %v455 = vand.u32 %v330, 2147483648
        %v456 = vor.u32 1.1754944e-38, %v455
        %v457 = vsel %vm454, %v456, %v452
        %v458 = vmul.f32 1.0, %v457
        %v459 = vrcp.pop %v331
        %v460 = vmul.f32 %v331, %v459
        %v461 = vsub.f32 1.0, %v460
        %v462 = vmul.f32 %v459, %v461
        %v463 = vadd.f32 %v459, %v462
        %vm464 = vweird.f32 %v331
        %vm465 = vweird.f32 %v459
        %vm466 = vmor %vm464, %vm465
        %v467 = vsel %vm466, %v459, %v463
        %v468 = vand.u32 2147483647, %v331
        %vm469 = vcmp.eq.f32.partialorder %v468, 8.507059e+37
        %v470 = vand.u32 %v331, 2147483648
        %v471 = vor.u32 1.1754944e-38, %v470
        %v472 = vsel %vm469, %v471, %v467
        %v473 = vmul.f32 1.0, %v472
        %v474 = vrcp.pop %v332
        %v475 = vmul.f32 %v332, %v474
        %v476 = vsub.f32 1.0, %v475
        %v477 = vmul.f32 %v474, %v476
        %v478 = vadd.f32 %v474, %v477
        %vm479 = vweird.f32 %v332
        %vm480 = vweird.f32 %v474
        %vm481 = vmor %vm479, %vm480
        %v482 = vsel %vm481, %v474, %v478
        %v483 = vand.u32 2147483647, %v332
        %vm484 = vcmp.eq.f32.partialorder %v483, 8.507059e+37
        %v485 = vand.u32 %v332, 2147483648
        %v486 = vor.u32 1.1754944e-38, %v485
        %v487 = vsel %vm484, %v486, %v482
        %v488 = vmul.f32 1.0, %v487
        %v489 = vrcp.pop %v333
        %v490 = vmul.f32 %v333, %v489
        %v491 = vsub.f32 1.0, %v490
        %v492 = vmul.f32 %v489, %v491
        %v493 = vadd.f32 %v489, %v492
        %vm494 = vweird.f32 %v333
        %vm495 = vweird.f32 %v489
        %vm496 = vmor %vm494, %vm495
        %v497 = vsel %vm496, %v489, %v493
        %v498 = vand.u32 2147483647, %v333
        %vm499 = vcmp.eq.f32.partialorder %v498, 8.507059e+37
        %v500 = vand.u32 %v333, 2147483648
        %v501 = vor.u32 1.1754944e-38, %v500
        %v502 = vsel %vm499, %v501, %v497
        %v503 = vmul.f32 1.0, %v502
        %v504 = vrcp.pop %v334
        %v505 = vmul.f32 %v334, %v504
        %v506 = vsub.f32 1.0, %v505
        %v507 = vmul.f32 %v504, %v506
        %v508 = vadd.f32 %v504, %v507
        %vm509 = vweird.f32 %v334
        %vm510 = vweird.f32 %v504
        %vm511 = vmor %vm509, %vm510
        %v512 = vsel %vm511, %v504, %v508
        %v513 = vand.u32 2147483647, %v334
        %vm514 = vcmp.eq.f32.partialorder %v513, 8.507059e+37
        %v515 = vand.u32 %v334, 2147483648
        %v516 = vor.u32 1.1754944e-38, %v515
        %v517 = vsel %vm514, %v516, %v512
        %v518 = vmul.f32 1.0, %v517
        %v519 = vrcp.pop %v335
        %v520 = vmul.f32 %v335, %v519
        %v521 = vsub.f32 1.0, %v520
        %v522 = vmul.f32 %v519, %v521
        %v523 = vadd.f32 %v519, %v522
        %vm524 = vweird.f32 %v335
        %vm525 = vweird.f32 %v519
        %vm526 = vmor %vm524, %vm525
        %v527 = vsel %vm526, %v519, %v523
        %v528 = vand.u32 2147483647, %v335
        %vm529 = vcmp.eq.f32.partialorder %v528, 8.507059e+37
        %v530 = vand.u32 %v335, 2147483648
        %v531 = vor.u32 1.1754944e-38, %v530
        %v532 = vsel %vm529, %v531, %v527
        %v533 = vmul.f32 1.0, %v532
        %v534 = vrcp.pop %v336
        %v535 = vmul.f32 %v336, %v534
        %v536 = vsub.f32 1.0, %v535
        %v537 = vmul.f32 %v534, %v536
        %v538 = vadd.f32 %v534, %v537
        %vm539 = vweird.f32 %v336
        %vm540 = vweird.f32 %v534
        %vm541 = vmor %vm539, %vm540
        %v542 = vsel %vm541, %v534, %v538
        %v543 = vand.u32 2147483647, %v336
        %vm544 = vcmp.eq.f32.partialorder %v543, 8.507059e+37
        %v545 = vand.u32 %v336, 2147483648
        %v546 = vor.u32 1.1754944e-38, %v545
        %v547 = vsel %vm544, %v546, %v542
        %v548 = vmul.f32 1.0, %v547
        %v549 = vrcp.pop %v337
        %v550 = vmul.f32 %v337, %v549
        %v551 = vsub.f32 1.0, %v550
        %v552 = vmul.f32 %v549, %v551
        %v553 = vadd.f32 %v549, %v552
        %vm554 = vweird.f32 %v337
        %vm555 = vweird.f32 %v549
        %vm556 = vmor %vm554, %vm555
        %v557 = vsel %vm556, %v549, %v553
        %v558 = vand.u32 2147483647, %v337
        %vm559 = vcmp.eq.f32.partialorder %v558, 8.507059e+37
        %v560 = vand.u32 %v337, 2147483648
        %v561 = vor.u32 1.1754944e-38, %v560
        %v562 = vsel %vm559, %v561, %v557
        %v563 = vmul.f32 1.0, %v562
        %v564 = vrcp.pop %v338
        %v565 = vmul.f32 %v338, %v564
        %v566 = vsub.f32 1.0, %v565
        %v567 = vmul.f32 %v564, %v566
        %v568 = vadd.f32 %v564, %v567
        %vm569 = vweird.f32 %v338
        %vm570 = vweird.f32 %v564
        %vm571 = vmor %vm569, %vm570
        %v572 = vsel %vm571, %v564, %v568
        %v573 = vand.u32 2147483647, %v338
        %vm574 = vcmp.eq.f32.partialorder %v573, 8.507059e+37
        %v575 = vand.u32 %v338, 2147483648
        %v576 = vor.u32 1.1754944e-38, %v575
        %v577 = vsel %vm574, %v576, %v572
        %v578 = vmul.f32 1.0, %v577
        %v579 = vmul.f32 %v353, 1.0614054
        %v580 = vmul.f32 %v368, 1.0614054
        %v581 = vmul.f32 %v383, 1.0614054
        %v582 = vmul.f32 %v398, 1.0614054
        %v583 = vmul.f32 %v413, 1.0614054
        %v584 = vmul.f32 %v428, 1.0614054
        %v585 = vmul.f32 %v443, 1.0614054
        %v586 = vmul.f32 %v458, 1.0614054
        %v587 = vmul.f32 %v473, 1.0614054
        %v588 = vmul.f32 %v488, 1.0614054
        %v589 = vmul.f32 %v503, 1.0614054
        %v590 = vmul.f32 %v518, 1.0614054
        %v591 = vmul.f32 %v533, 1.0614054
        %v592 = vmul.f32 %v548, 1.0614054
        %v593 = vmul.f32 %v563, 1.0614054
        %v594 = vmul.f32 %v578, 1.0614054
        %v595 = vadd.f32 %v579, -1.4531521
        %v596 = vadd.f32 %v580, -1.4531521
        %v597 = vadd.f32 %v581, -1.4531521
        %v598 = vadd.f32 %v582, -1.4531521
        %v599 = vadd.f32 %v583, -1.4531521
        %v600 = vadd.f32 %v584, -1.4531521
        %v601 = vadd.f32 %v585, -1.4531521
        %v602 = vadd.f32 %v586, -1.4531521
        %v603 = vadd.f32 %v587, -1.4531521
        %v604 = vadd.f32 %v588, -1.4531521
        %v605 = vadd.f32 %v589, -1.4531521
        %v606 = vadd.f32 %v590, -1.4531521
        %v607 = vadd.f32 %v591, -1.4531521
        %v608 = vadd.f32 %v592, -1.4531521
        %v609 = vadd.f32 %v593, -1.4531521
        %v610 = vadd.f32 %v594, -1.4531521
        %v611 = vmul.f32 %v595, %v353
        %v612 = vmul.f32 %v596, %v368
        %v613 = vmul.f32 %v597, %v383
        %v614 = vmul.f32 %v598, %v398
        %v615 = vmul.f32 %v599, %v413
        %v616 = vmul.f32 %v600, %v428
        %v617 = vmul.f32 %v601, %v443
        %v618 = vmul.f32 %v602, %v458
        %v619 = vmul.f32 %v603, %v473
        %v620 = vmul.f32 %v604, %v488
        %v621 = vmul.f32 %v605, %v503
        %v622 = vmul.f32 %v606, %v518
        %v623 = vmul.f32 %v607, %v533
        %v624 = vmul.f32 %v608, %v548
        %v625 = vmul.f32 %v609, %v563
        %v626 = vmul.f32 %v610, %v578
        %v627 = vadd.f32 %v611, 1.4214138
        %v628 = vadd.f32 %v612, 1.4214138
        %v629 = vadd.f32 %v613, 1.4214138
        %v630 = vadd.f32 %v614, 1.4214138
        %v631 = vadd.f32 %v615, 1.4214138
        %v632 = vadd.f32 %v616, 1.4214138
        %v633 = vadd.f32 %v617, 1.4214138
        %v634 = vadd.f32 %v618, 1.4214138
        %v635 = vadd.f32 %v619, 1.4214138
        %v636 = vadd.f32 %v620, 1.4214138
        %v637 = vadd.f32 %v621, 1.4214138
        %v638 = vadd.f32 %v622, 1.4214138
        %v639 = vadd.f32 %v623, 1.4214138
        %v640 = vadd.f32 %v624, 1.4214138
        %v641 = vadd.f32 %v625, 1.4214138
        %v642 = vadd.f32 %v626, 1.4214138
        %v643 = vmul.f32 %v627, %v353
        %v644 = vmul.f32 %v628, %v368
        %v645 = vmul.f32 %v629, %v383
        %v646 = vmul.f32 %v630, %v398
        %v647 = vmul.f32 %v631, %v413
        %v648 = vmul.f32 %v632, %v428
        %v649 = vmul.f32 %v633, %v443
        %v650 = vmul.f32 %v634, %v458
        %v651 = vmul.f32 %v635, %v473
        %v652 = vmul.f32 %v636, %v488
        %v653 = vmul.f32 %v637, %v503
        %v654 = vmul.f32 %v638, %v518
        %v655 = vmul.f32 %v639, %v533
        %v656 = vmul.f32 %v640, %v548
        %v657 = vmul.f32 %v641, %v563
        %v658 = vmul.f32 %v642, %v578
        %v659 = vadd.f32 %v643, -0.28449672
        %v660 = vadd.f32 %v644, -0.28449672
        %v661 = vadd.f32 %v645, -0.28449672
        %v662 = vadd.f32 %v646, -0.28449672
        %v663 = vadd.f32 %v647, -0.28449672
        %v664 = vadd.f32 %v648, -0.28449672
        %v665 = vadd.f32 %v649, -0.28449672
        %v666 = vadd.f32 %v650, -0.28449672
        %v667 = vadd.f32 %v651, -0.28449672
        %v668 = vadd.f32 %v652, -0.28449672
        %v669 = vadd.f32 %v653, -0.28449672
        %v670 = vadd.f32 %v654, -0.28449672
        %v671 = vadd.f32 %v655, -0.28449672
        %v672 = vadd.f32 %v656, -0.28449672
        %v673 = vadd.f32 %v657, -0.28449672
        %v674 = vadd.f32 %v658, -0.28449672
        %v675 = vmul.f32 %v659, %v353
        %v676 = vmul.f32 %v660, %v368
        %v677 = vmul.f32 %v661, %v383
        %v678 = vmul.f32 %v662, %v398
        %v679 = vmul.f32 %v663, %v413
        %v680 = vmul.f32 %v664, %v428
        %v681 = vmul.f32 %v665, %v443
        %v682 = vmul.f32 %v666, %v458
        %v683 = vmul.f32 %v667, %v473
        %v684 = vmul.f32 %v668, %v488
        %v685 = vmul.f32 %v669, %v503
        %v686 = vmul.f32 %v670, %v518
        %v687 = vmul.f32 %v671, %v533
        %v688 = vmul.f32 %v672, %v548
        %v689 = vmul.f32 %v673, %v563
        %v690 = vmul.f32 %v674, %v578
        %v691 = vadd.f32 %v675, 0.2548296
        %v692 = vadd.f32 %v676, 0.2548296
        %v693 = vadd.f32 %v677, 0.2548296
        %v694 = vadd.f32 %v678, 0.2548296
        %v695 = vadd.f32 %v679, 0.2548296
        %v696 = vadd.f32 %v680, 0.2548296
        %v697 = vadd.f32 %v681, 0.2548296
        %v698 = vadd.f32 %v682, 0.2548296
        %v699 = vadd.f32 %v683, 0.2548296
        %v700 = vadd.f32 %v684, 0.2548296
        %v701 = vadd.f32 %v685, 0.2548296
        %v702 = vadd.f32 %v686, 0.2548296
        %v703 = vadd.f32 %v687, 0.2548296
        %v704 = vadd.f32 %v688, 0.2548296
        %v705 = vadd.f32 %v689, 0.2548296
        %v706 = vadd.f32 %v690, 0.2548296
        %v707 = vmul.f32 %v691, %v353
        %v708 = vmul.f32 %v692, %v368
        %v709 = vmul.f32 %v693, %v383
        %v710 = vmul.f32 %v694, %v398
        %v711 = vmul.f32 %v695, %v413
        %v712 = vmul.f32 %v696, %v428
        %v713 = vmul.f32 %v697, %v443
        %v714 = vmul.f32 %v698, %v458
        %v715 = vmul.f32 %v699, %v473
        %v716 = vmul.f32 %v700, %v488
        %v717 = vmul.f32 %v701, %v503
        %v718 = vmul.f32 %v702, %v518
        %v719 = vmul.f32 %v703, %v533
        %v720 = vmul.f32 %v704, %v548
        %v721 = vmul.f32 %v705, %v563
        %v722 = vmul.f32 %v706, %v578
        %v723 = vsub.f32 0.0, %v291
        %v724 = vsub.f32 0.0, %v292
        %v725 = vsub.f32 0.0, %v293
        %v726 = vsub.f32 0.0, %v294
        %v727 = vsub.f32 0.0, %v295
        %v728 = vsub.f32 0.0, %v296
        %v729 = vsub.f32 0.0, %v297
        %v730 = vsub.f32 0.0, %v298
        %v731 = vsub.f32 0.0, %v299
        %v732 = vsub.f32 0.0, %v300
        %v733 = vsub.f32 0.0, %v301
        %v734 = vsub.f32 0.0, %v302
        %v735 = vsub.f32 0.0, %v303
        %v736 = vsub.f32 0.0, %v304
        %v737 = vsub.f32 0.0, %v305
        %v738 = vsub.f32 0.0, %v306
        %v739 = vmul.f32 %v723, %v291
        %v740 = vmul.f32 %v724, %v292
        %v741 = vmul.f32 %v725, %v293
        %v742 = vmul.f32 %v726, %v294
        %v743 = vmul.f32 %v727, %v295
        %v744 = vmul.f32 %v728, %v296
        %v745 = vmul.f32 %v729, %v297
        %v746 = vmul.f32 %v730, %v298
        %v747 = vmul.f32 %v731, %v299
        %v748 = vmul.f32 %v732, %v300
        %v749 = vmul.f32 %v733, %v301
        %v750 = vmul.f32 %v734, %v302
        %v751 = vmul.f32 %v735, %v303
        %v752 = vmul.f32 %v736, %v304
        %v753 = vmul.f32 %v737, %v305
        %v754 = vmul.f32 %v738, %v306
        %v755 = vmul.f32 %v739, 1.442695
        %v756 = vpow.pop %v755
        %v757 = vmul.f32 %v740, 1.442695
        %v758 = vpow.pop %v757
        %v759 = vmul.f32 %v741, 1.442695
        %v760 = vpow.pop %v759
        %v761 = vmul.f32 %v742, 1.442695
        %v762 = vpow.pop %v761
        %v763 = vmul.f32 %v743, 1.442695
        %v764 = vpow.pop %v763
        %v765 = vmul.f32 %v744, 1.442695
        %v766 = vpow.pop %v765
        %v767 = vmul.f32 %v745, 1.442695
        %v768 = vpow.pop %v767
        %v769 = vmul.f32 %v746, 1.442695
        %v770 = vpow.pop %v769
        %v771 = vmul.f32 %v747, 1.442695
        %v772 = vpow.pop %v771
        %v773 = vmul.f32 %v748, 1.442695
        %v774 = vpow.pop %v773
        %v775 = vmul.f32 %v749, 1.442695
        %v776 = vpow.pop %v775
        %v777 = vmul.f32 %v750, 1.442695
        %v778 = vpow.pop %v777
        %v779 = vmul.f32 %v751, 1.442695
        %v780 = vpow.pop %v779
        %v781 = vmul.f32 %v752, 1.442695
        %v782 = vpow.pop %v781
        %v783 = vmul.f32 %v753, 1.442695
        %v784 = vpow.pop %v783
        %v785 = vmul.f32 %v754, 1.442695
        %v786 = vpow.pop %v785
        %v787 = vmul.f32 %v707, %v756
        %v788 = vmul.f32 %v708, %v758
        %v789 = vmul.f32 %v709, %v760
        %v790 = vmul.f32 %v710, %v762
        %v791 = vmul.f32 %v711, %v764
        %v792 = vmul.f32 %v712, %v766
        %v793 = vmul.f32 %v713, %v768
        %v794 = vmul.f32 %v714, %v770
        %v795 = vmul.f32 %v715, %v772
        %v796 = vmul.f32 %v716, %v774
        %v797 = vmul.f32 %v717, %v776
        %v798 = vmul.f32 %v718, %v778
        %v799 = vmul.f32 %v719, %v780
        %v800 = vmul.f32 %v720, %v782
        %v801 = vmul.f32 %v721, %v784
        %v802 = vmul.f32 %v722, %v786
        %v803 = vsub.f32 1.0, %v787
        %v804 = vsub.f32 1.0, %v788
        %v805 = vsub.f32 1.0, %v789
        %v806 = vsub.f32 1.0, %v790
        %v807 = vsub.f32 1.0, %v791
        %v808 = vsub.f32 1.0, %v792
        %v809 = vsub.f32 1.0, %v793
        %v810 = vsub.f32 1.0, %v794
        %v811 = vsub.f32 1.0, %v795
        %v812 = vsub.f32 1.0, %v796
        %v813 = vsub.f32 1.0, %v797
        %v814 = vsub.f32 1.0, %v798
        %v815 = vsub.f32 1.0, %v799
        %v816 = vsub.f32 1.0, %v800
        %v817 = vsub.f32 1.0, %v801
        %v818 = vsub.f32 1.0, %v802
        %v819 = vmul.f32 %v275, %v803
        %v820 = vmul.f32 %v276, %v804
        %v821 = vmul.f32 %v277, %v805
        %v822 = vmul.f32 %v278, %v806
        %v823 = vmul.f32 %v279, %v807
        %v824 = vmul.f32 %v280, %v808
        %v825 = vmul.f32 %v281, %v809
        %v826 = vmul.f32 %v282, %v810
        %v827 = vmul.f32 %v283, %v811
        %v828 = vmul.f32 %v284, %v812
        %v829 = vmul.f32 %v285, %v813
        %v830 = vmul.f32 %v286, %v814
        %v831 = vmul.f32 %v287, %v815
        %v832 = vmul.f32 %v288, %v816
        %v833 = vmul.f32 %v289, %v817
        %v834 = vmul.f32 %v290, %v818
        %v835 = vadd.f32 %v819, 1.0
        %v836 = vadd.f32 %v820, 1.0
        %v837 = vadd.f32 %v821, 1.0
        %v838 = vadd.f32 %v822, 1.0
        %v839 = vadd.f32 %v823, 1.0
        %v840 = vadd.f32 %v824, 1.0
        %v841 = vadd.f32 %v825, 1.0
        %v842 = vadd.f32 %v826, 1.0
        %v843 = vadd.f32 %v827, 1.0
        %v844 = vadd.f32 %v828, 1.0
        %v845 = vadd.f32 %v829, 1.0
        %v846 = vadd.f32 %v830, 1.0
        %v847 = vadd.f32 %v831, 1.0
        %v848 = vadd.f32 %v832, 1.0
        %v849 = vadd.f32 %v833, 1.0
        %v850 = vadd.f32 %v834, 1.0
        %v851 = vmul.f32 %v227, %v835
        %v852 = vmul.f32 %v228, %v836
        %v853 = vmul.f32 %v229, %v837
        %v854 = vmul.f32 %v230, %v838
        %v855 = vmul.f32 %v231, %v839
        %v856 = vmul.f32 %v232, %v840
        %v857 = vmul.f32 %v233, %v841
        %v858 = vmul.f32 %v234, %v842
        %v859 = vmul.f32 %v235, %v843
        %v860 = vmul.f32 %v236, %v844
        %v861 = vmul.f32 %v237, %v845
        %v862 = vmul.f32 %v238, %v846
        %v863 = vmul.f32 %v239, %v847
        %v864 = vmul.f32 %v240, %v848
        %v865 = vmul.f32 %v241, %v849
        %v866 = vmul.f32 %v242, %v850
        %883 = vst [vmem:[#allocation1] ss:$4 sm:$0xff] %v851
        %v884 = vld.sshfl [vmem:[#allocation1] sm:$0xff pattern:$0x73625140]
        %v885 = vld.sshfl [vmem:[#allocation1 + $0x8] sm:$0xff pattern:$0x73625140]
        %s886 = scalar_lea.vmem [#allocation1], 32
        %887 = vst [vmem:[%s886] ss:$4 sm:$0xff] %v852
        %v888 = vld.sshfl [vmem:[#allocation1 + $0x20] sm:$0xff pattern:$0x73625140]
        %v889 = vld.sshfl [vmem:[#allocation1 + $0x28] sm:$0xff pattern:$0x73625140]
        %890 = vst [vmem:[#allocation1] ss:$4 sm:$0xff] %v853
        %v891 = vld.sshfl [vmem:[#allocation1] sm:$0xff pattern:$0x73625140]
        %v892 = vld.sshfl [vmem:[#allocation1 + $0x8] sm:$0xff pattern:$0x73625140]
        %893 = vst [vmem:[%s886] ss:$4 sm:$0xff] %v854
        %v894 = vld.sshfl [vmem:[#allocation1 + $0x20] sm:$0xff pattern:$0x73625140]
        %v895 = vld.sshfl [vmem:[#allocation1 + $0x28] sm:$0xff pattern:$0x73625140]
        %896 = vst [vmem:[#allocation1] ss:$4 sm:$0xff] %v855
        %v897 = vld.sshfl [vmem:[#allocation1] sm:$0xff pattern:$0x73625140]
        %v898 = vld.sshfl [vmem:[#allocation1 + $0x8] sm:$0xff pattern:$0x73625140]
        %899 = vst [vmem:[%s886] ss:$4 sm:$0xff] %v856
        %v900 = vld.sshfl [vmem:[#allocation1 + $0x20] sm:$0xff pattern:$0x73625140]
        %v901 = vld.sshfl [vmem:[#allocation1 + $0x28] sm:$0xff pattern:$0x73625140]
        %902 = vst [vmem:[#allocation1] ss:$4 sm:$0xff] %v857
        %v903 = vld.sshfl [vmem:[#allocation1] sm:$0xff pattern:$0x73625140]
        %v904 = vld.sshfl [vmem:[#allocation1 + $0x8] sm:$0xff pattern:$0x73625140]
        %905 = vst [vmem:[%s886] ss:$4 sm:$0xff] %v858
        %v906 = vld.sshfl [vmem:[#allocation1 + $0x20] sm:$0xff pattern:$0x73625140]
        %v907 = vld.sshfl [vmem:[#allocation1 + $0x28] sm:$0xff pattern:$0x73625140]
        %908 = vst [vmem:[#allocation1] ss:$4 sm:$0xff] %v859
        %v909 = vld.sshfl [vmem:[#allocation1] sm:$0xff pattern:$0x73625140]
        %v910 = vld.sshfl [vmem:[#allocation1 + $0x8] sm:$0xff pattern:$0x73625140]
        %911 = vst [vmem:[%s886] ss:$4 sm:$0xff] %v860
        %v912 = vld.sshfl [vmem:[#allocation1 + $0x20] sm:$0xff pattern:$0x73625140]
        %v913 = vld.sshfl [vmem:[#allocation1 + $0x28] sm:$0xff pattern:$0x73625140]
        %914 = vst [vmem:[#allocation1] ss:$4 sm:$0xff] %v861
        %v915 = vld.sshfl [vmem:[#allocation1] sm:$0xff pattern:$0x73625140]
        %v916 = vld.sshfl [vmem:[#allocation1 + $0x8] sm:$0xff pattern:$0x73625140]
        %917 = vst [vmem:[%s886] ss:$4 sm:$0xff] %v862
        %v918 = vld.sshfl [vmem:[#allocation1 + $0x20] sm:$0xff pattern:$0x73625140]
        %v919 = vld.sshfl [vmem:[#allocation1 + $0x28] sm:$0xff pattern:$0x73625140]
        %920 = vst [vmem:[#allocation1] ss:$4 sm:$0xff] %v863
        %v921 = vld.sshfl [vmem:[#allocation1] sm:$0xff pattern:$0x73625140]
        %v922 = vld.sshfl [vmem:[#allocation1 + $0x8] sm:$0xff pattern:$0x73625140]
        %923 = vst [vmem:[%s886] ss:$4 sm:$0xff] %v864
        %v924 = vld.sshfl [vmem:[#allocation1 + $0x20] sm:$0xff pattern:$0x73625140]
        %v925 = vld.sshfl [vmem:[#allocation1 + $0x28] sm:$0xff pattern:$0x73625140]
        %926 = vst [vmem:[#allocation1] ss:$4 sm:$0xff] %v865
        %v927 = vld.sshfl [vmem:[#allocation1] sm:$0xff pattern:$0x73625140]
        %v928 = vld.sshfl [vmem:[#allocation1 + $0x8] sm:$0xff pattern:$0x73625140]
        %929 = vst [vmem:[%s886] ss:$4 sm:$0xff] %v866
        %v930 = vld.sshfl [vmem:[#allocation1 + $0x20] sm:$0xff pattern:$0x73625140]
        %v931 = vld.sshfl [vmem:[#allocation1 + $0x28] sm:$0xff pattern:$0x73625140]
        %vm964 = vcmask 1041408
        %v965 = vsel %vm964, %v884, 0.0
        %v966 = vsel %vm964, %v885, 0.0
        %v967 = vadd.f32 %v965, %v966
        %968 = vadd.xlane.f32.xlu0 %v967
        %v969 = vpop.xlane.xlu0 %968
        %v970 = vsel %vm964, %v888, 0.0
        %v971 = vsel %vm964, %v889, 0.0
        %v972 = vadd.f32 %v970, %v971
        %973 = vadd.xlane.f32.xlu0 %v972
        %v974 = vpop.xlane.xlu0 %973
        %v975 = vsel %vm964, %v891, 0.0
        %v976 = vsel %vm964, %v892, 0.0
        %v977 = vadd.f32 %v975, %v976
        %978 = vadd.xlane.f32.xlu0 %v977
        %v979 = vpop.xlane.xlu0 %978
        %v980 = vsel %vm964, %v894, 0.0
        %v981 = vsel %vm964, %v895, 0.0
        %v982 = vadd.f32 %v980, %v981
        %983 = vadd.xlane.f32.xlu0 %v982
        %v984 = vpop.xlane.xlu0 %983
        %v985 = vsel %vm964, %v897, 0.0
        %v986 = vsel %vm964, %v898, 0.0
        %v987 = vadd.f32 %v985, %v986
        %988 = vadd.xlane.f32.xlu0 %v987
        %v989 = vpop.xlane.xlu0 %988
        %v990 = vsel %vm964, %v900, 0.0
        %v991 = vsel %vm964, %v901, 0.0
        %v992 = vadd.f32 %v990, %v991
        %993 = vadd.xlane.f32.xlu0 %v992
        %v994 = vpop.xlane.xlu0 %993
        %v995 = vsel %vm964, %v903, 0.0
        %v996 = vsel %vm964, %v904, 0.0
        %v997 = vadd.f32 %v995, %v996
        %998 = vadd.xlane.f32.xlu0 %v997
        %v999 = vpop.xlane.xlu0 %998
        %v1000 = vsel %vm964, %v906, 0.0
        %v1001 = vsel %vm964, %v907, 0.0
        %v1002 = vadd.f32 %v1000, %v1001
        %1003 = vadd.xlane.f32.xlu0 %v1002
        %v1004 = vpop.xlane.xlu0 %1003
        %v1005 = vsel %vm964, %v909, 0.0
        %v1006 = vsel %vm964, %v910, 0.0
        %v1007 = vadd.f32 %v1005, %v1006
        %1008 = vadd.xlane.f32.xlu0 %v1007
        %v1009 = vpop.xlane.xlu0 %1008
        %v1010 = vsel %vm964, %v912, 0.0
        %v1011 = vsel %vm964, %v913, 0.0
        %v1012 = vadd.f32 %v1010, %v1011
        %1013 = vadd.xlane.f32.xlu0 %v1012
        %v1014 = vpop.xlane.xlu0 %1013
        %v1015 = vsel %vm964, %v915, 0.0
        %v1016 = vsel %vm964, %v916, 0.0
        %v1017 = vadd.f32 %v1015, %v1016
        %1018 = vadd.xlane.f32.xlu0 %v1017
        %v1019 = vpop.xlane.xlu0 %1018
        %v1020 = vsel %vm964, %v918, 0.0
        %v1021 = vsel %vm964, %v919, 0.0
        %v1022 = vadd.f32 %v1020, %v1021
        %1023 = vadd.xlane.f32.xlu0 %v1022
        %v1024 = vpop.xlane.xlu0 %1023
        %v1025 = vsel %vm964, %v921, 0.0
        %v1026 = vsel %vm964, %v922, 0.0
        %v1027 = vadd.f32 %v1025, %v1026
        %1028 = vadd.xlane.f32.xlu0 %v1027
        %v1029 = vpop.xlane.xlu0 %1028
        %v1030 = vsel %vm964, %v924, 0.0
        %v1031 = vsel %vm964, %v925, 0.0
        %v1032 = vadd.f32 %v1030, %v1031
        %1033 = vadd.xlane.f32.xlu0 %v1032
        %v1034 = vpop.xlane.xlu0 %1033
        %v1035 = vsel %vm964, %v927, 0.0
        %v1036 = vsel %vm964, %v928, 0.0
        %v1037 = vadd.f32 %v1035, %v1036
        %1038 = vadd.xlane.f32.xlu0 %v1037
        %v1039 = vpop.xlane.xlu0 %1038
        %v1040 = vsel %vm964, %v930, 0.0
        %v1041 = vsel %vm964, %v931, 0.0
        %v1042 = vadd.f32 %v1040, %v1041
        %1043 = vadd.xlane.f32.xlu0 %v1042
        %v1044 = vpop.xlane.xlu0 %1043
        %v1061 = vrot.slane %v969, 1
        %v1062 = vrot.slane %v974, 1
        %v1063 = vrot.slane %v979, 1
        %v1064 = vrot.slane %v984, 1
        %v1065 = vrot.slane %v989, 1
        %v1066 = vrot.slane %v994, 1
        %v1067 = vrot.slane %v999, 1
        %v1068 = vrot.slane %v1004, 1
        %v1069 = vrot.slane %v1009, 1
        %v1070 = vrot.slane %v1014, 1
        %v1071 = vrot.slane %v1019, 1
        %v1072 = vrot.slane %v1024, 1
        %v1073 = vrot.slane %v1029, 1
        %v1074 = vrot.slane %v1034, 1
        %v1075 = vrot.slane %v1039, 1
        %v1076 = vrot.slane %v1044, 1
        %v1093 = vadd.f32 %v969, %v1061
        %v1094 = vadd.f32 %v974, %v1062
        %v1095 = vadd.f32 %v979, %v1063
        %v1096 = vadd.f32 %v984, %v1064
        %v1097 = vadd.f32 %v989, %v1065
        %v1098 = vadd.f32 %v994, %v1066
        %v1099 = vadd.f32 %v999, %v1067
        %v1100 = vadd.f32 %v1004, %v1068
        %v1101 = vadd.f32 %v1009, %v1069
        %v1102 = vadd.f32 %v1014, %v1070
        %v1103 = vadd.f32 %v1019, %v1071
        %v1104 = vadd.f32 %v1024, %v1072
        %v1105 = vadd.f32 %v1029, %v1073
        %v1106 = vadd.f32 %v1034, %v1074
        %v1107 = vadd.f32 %v1039, %v1075
        %v1108 = vadd.f32 %v1044, %v1076
        %v1109 = vmul.f32 %v1093, 0.001953125
        %v1110 = vmul.f32 %v1094, 0.001953125
        %v1111 = vmul.f32 %v1095, 0.001953125
        %v1112 = vmul.f32 %v1096, 0.001953125
        %v1113 = vmul.f32 %v1097, 0.001953125
        %v1114 = vmul.f32 %v1098, 0.001953125
        %v1115 = vmul.f32 %v1099, 0.001953125
        %v1116 = vmul.f32 %v1100, 0.001953125
        %v1117 = vmul.f32 %v1101, 0.001953125
        %v1118 = vmul.f32 %v1102, 0.001953125
        %v1119 = vmul.f32 %v1103, 0.001953125
        %v1120 = vmul.f32 %v1104, 0.001953125
        %v1121 = vmul.f32 %v1105, 0.001953125
        %v1122 = vmul.f32 %v1106, 0.001953125
        %v1123 = vmul.f32 %v1107, 0.001953125
        %v1124 = vmul.f32 %v1108, 0.001953125
        %s1126 = vtos %v1109
        %v1127 = vstv %s1126
        %s1130 = vtos %v1110
        %v1131 = vstv %s1130
        %s1134 = vtos %v1111
        %v1135 = vstv %s1134
        %s1138 = vtos %v1112
        %v1139 = vstv %s1138
        %s1142 = vtos %v1113
        %v1143 = vstv %s1142
        %s1146 = vtos %v1114
        %v1147 = vstv %s1146
        %s1150 = vtos %v1115
        %v1151 = vstv %s1150
        %s1154 = vtos %v1116
        %v1155 = vstv %s1154
        %s1158 = vtos %v1117
        %v1159 = vstv %s1158
        %s1162 = vtos %v1118
        %v1163 = vstv %s1162
        %s1166 = vtos %v1119
        %v1167 = vstv %s1166
        %s1170 = vtos %v1120
        %v1171 = vstv %s1170
        %s1174 = vtos %v1121
        %v1175 = vstv %s1174
        %s1178 = vtos %v1122
        %v1179 = vstv %s1178
        %s1182 = vtos %v1123
        %v1183 = vstv %s1182
        %s1186 = vtos %v1124
        %v1187 = vstv %s1186
        %v1189 = vsub.f32 %v851, %v1127
        %v1190 = vsub.f32 %v852, %v1131
        %v1191 = vsub.f32 %v853, %v1135
        %v1192 = vsub.f32 %v854, %v1139
        %v1193 = vsub.f32 %v855, %v1143
        %v1194 = vsub.f32 %v856, %v1147
        %v1195 = vsub.f32 %v857, %v1151
        %v1196 = vsub.f32 %v858, %v1155
        %v1197 = vsub.f32 %v859, %v1159
        %v1198 = vsub.f32 %v860, %v1163
        %v1199 = vsub.f32 %v861, %v1167
        %v1200 = vsub.f32 %v862, %v1171
        %v1201 = vsub.f32 %v863, %v1175
        %v1202 = vsub.f32 %v864, %v1179
        %v1203 = vsub.f32 %v865, %v1183
        %v1204 = vsub.f32 %v866, %v1187
        %v1205 = vmul.f32 %v1189, %v1189
        %v1206 = vmul.f32 %v1190, %v1190
        %v1207 = vmul.f32 %v1191, %v1191
        %v1208 = vmul.f32 %v1192, %v1192
        %v1209 = vmul.f32 %v1193, %v1193
        %v1210 = vmul.f32 %v1194, %v1194
        %v1211 = vmul.f32 %v1195, %v1195
        %v1212 = vmul.f32 %v1196, %v1196
        %v1213 = vmul.f32 %v1197, %v1197
        %v1214 = vmul.f32 %v1198, %v1198
        %v1215 = vmul.f32 %v1199, %v1199
        %v1216 = vmul.f32 %v1200, %v1200
        %v1217 = vmul.f32 %v1201, %v1201
        %v1218 = vmul.f32 %v1202, %v1202
        %v1219 = vmul.f32 %v1203, %v1203
        %v1220 = vmul.f32 %v1204, %v1204
        %1237 = vst [vmem:[#allocation1] ss:$4 sm:$0xff] %v1205
        %v1238 = vld.sshfl [vmem:[#allocation1] sm:$0xff pattern:$0x73625140]
        %v1239 = vld.sshfl [vmem:[#allocation1 + $0x8] sm:$0xff pattern:$0x73625140]
        %s1240 = scalar_lea.vmem [#allocation1], 32
        %1241 = vst [vmem:[%s1240] ss:$4 sm:$0xff] %v1206
        %v1242 = vld.sshfl [vmem:[#allocation1 + $0x20] sm:$0xff pattern:$0x73625140]
        %v1243 = vld.sshfl [vmem:[#allocation1 + $0x28] sm:$0xff pattern:$0x73625140]
        %1244 = vst [vmem:[#allocation1] ss:$4 sm:$0xff] %v1207
        %v1245 = vld.sshfl [vmem:[#allocation1] sm:$0xff pattern:$0x73625140]
        %v1246 = vld.sshfl [vmem:[#allocation1 + $0x8] sm:$0xff pattern:$0x73625140]
        %1247 = vst [vmem:[%s1240] ss:$4 sm:$0xff] %v1208
        %v1248 = vld.sshfl [vmem:[#allocation1 + $0x20] sm:$0xff pattern:$0x73625140]
        %v1249 = vld.sshfl [vmem:[#allocation1 + $0x28] sm:$0xff pattern:$0x73625140]
        %1250 = vst [vmem:[#allocation1] ss:$4 sm:$0xff] %v1209
        %v1251 = vld.sshfl [vmem:[#allocation1] sm:$0xff pattern:$0x73625140]
        %v1252 = vld.sshfl [vmem:[#allocation1 + $0x8] sm:$0xff pattern:$0x73625140]
        %1253 = vst [vmem:[%s1240] ss:$4 sm:$0xff] %v1210
        %v1254 = vld.sshfl [vmem:[#allocation1 + $0x20] sm:$0xff pattern:$0x73625140]
        %v1255 = vld.sshfl [vmem:[#allocation1 + $0x28] sm:$0xff pattern:$0x73625140]
        %1256 = vst [vmem:[#allocation1] ss:$4 sm:$0xff] %v1211
        %v1257 = vld.sshfl [vmem:[#allocation1] sm:$0xff pattern:$0x73625140]
        %v1258 = vld.sshfl [vmem:[#allocation1 + $0x8] sm:$0xff pattern:$0x73625140]
        %1259 = vst [vmem:[%s1240] ss:$4 sm:$0xff] %v1212
        %v1260 = vld.sshfl [vmem:[#allocation1 + $0x20] sm:$0xff pattern:$0x73625140]
        %v1261 = vld.sshfl [vmem:[#allocation1 + $0x28] sm:$0xff pattern:$0x73625140]
        %1262 = vst [vmem:[#allocation1] ss:$4 sm:$0xff] %v1213
        %v1263 = vld.sshfl [vmem:[#allocation1] sm:$0xff pattern:$0x73625140]
        %v1264 = vld.sshfl [vmem:[#allocation1 + $0x8] sm:$0xff pattern:$0x73625140]
        %1265 = vst [vmem:[%s1240] ss:$4 sm:$0xff] %v1214
        %v1266 = vld.sshfl [vmem:[#allocation1 + $0x20] sm:$0xff pattern:$0x73625140]
        %v1267 = vld.sshfl [vmem:[#allocation1 + $0x28] sm:$0xff pattern:$0x73625140]
        %1268 = vst [vmem:[#allocation1] ss:$4 sm:$0xff] %v1215
        %v1269 = vld.sshfl [vmem:[#allocation1] sm:$0xff pattern:$0x73625140]
        %v1270 = vld.sshfl [vmem:[#allocation1 + $0x8] sm:$0xff pattern:$0x73625140]
        %1271 = vst [vmem:[%s1240] ss:$4 sm:$0xff] %v1216
        %v1272 = vld.sshfl [vmem:[#allocation1 + $0x20] sm:$0xff pattern:$0x73625140]
        %v1273 = vld.sshfl [vmem:[#allocation1 + $0x28] sm:$0xff pattern:$0x73625140]
        %1274 = vst [vmem:[#allocation1] ss:$4 sm:$0xff] %v1217
        %v1275 = vld.sshfl [vmem:[#allocation1] sm:$0xff pattern:$0x73625140]
        %v1276 = vld.sshfl [vmem:[#allocation1 + $0x8] sm:$0xff pattern:$0x73625140]
        %1277 = vst [vmem:[%s1240] ss:$4 sm:$0xff] %v1218
        %v1278 = vld.sshfl [vmem:[#allocation1 + $0x20] sm:$0xff pattern:$0x73625140]
        %v1279 = vld.sshfl [vmem:[#allocation1 + $0x28] sm:$0xff pattern:$0x73625140]
        %1280 = vst [vmem:[#allocation1] ss:$4 sm:$0xff] %v1219
        %v1281 = vld.sshfl [vmem:[#allocation1] sm:$0xff pattern:$0x73625140]
        %v1282 = vld.sshfl [vmem:[#allocation1 + $0x8] sm:$0xff pattern:$0x73625140]
        %1283 = vst [vmem:[%s1240] ss:$4 sm:$0xff] %v1220
        %v1284 = vld.sshfl [vmem:[#allocation1 + $0x20] sm:$0xff pattern:$0x73625140]
        %v1285 = vld.sshfl [vmem:[#allocation1 + $0x28] sm:$0xff pattern:$0x73625140]
        %v1318 = vsel %vm964, %v1238, 0.0
        %v1319 = vsel %vm964, %v1239, 0.0
        %v1320 = vadd.f32 %v1318, %v1319
        %1321 = vadd.xlane.f32.xlu0 %v1320
        %v1322 = vpop.xlane.xlu0 %1321
        %v1323 = vsel %vm964, %v1242, 0.0
        %v1324 = vsel %vm964, %v1243, 0.0
        %v1325 = vadd.f32 %v1323, %v1324
        %1326 = vadd.xlane.f32.xlu0 %v1325
        %v1327 = vpop.xlane.xlu0 %1326
        %v1328 = vsel %vm964, %v1245, 0.0
        %v1329 = vsel %vm964, %v1246, 0.0
        %v1330 = vadd.f32 %v1328, %v1329
        %1331 = vadd.xlane.f32.xlu0 %v1330
        %v1332 = vpop.xlane.xlu0 %1331
        %v1333 = vsel %vm964, %v1248, 0.0
        %v1334 = vsel %vm964, %v1249, 0.0
        %v1335 = vadd.f32 %v1333, %v1334
        %1336 = vadd.xlane.f32.xlu0 %v1335
        %v1337 = vpop.xlane.xlu0 %1336
        %v1338 = vsel %vm964, %v1251, 0.0
        %v1339 = vsel %vm964, %v1252, 0.0
        %v1340 = vadd.f32 %v1338, %v1339
        %1341 = vadd.xlane.f32.xlu0 %v1340
        %v1342 = vpop.xlane.xlu0 %1341
        %v1343 = vsel %vm964, %v1254, 0.0
        %v1344 = vsel %vm964, %v1255, 0.0
        %v1345 = vadd.f32 %v1343, %v1344
        %1346 = vadd.xlane.f32.xlu0 %v1345
        %v1347 = vpop.xlane.xlu0 %1346
        %v1348 = vsel %vm964, %v1257, 0.0
        %v1349 = vsel %vm964, %v1258, 0.0
        %v1350 = vadd.f32 %v1348, %v1349
        %1351 = vadd.xlane.f32.xlu0 %v1350
        %v1352 = vpop.xlane.xlu0 %1351
        %v1353 = vsel %vm964, %v1260, 0.0
        %v1354 = vsel %vm964, %v1261, 0.0
        %v1355 = vadd.f32 %v1353, %v1354
        %1356 = vadd.xlane.f32.xlu0 %v1355
        %v1357 = vpop.xlane.xlu0 %1356
        %v1358 = vsel %vm964, %v1263, 0.0
        %v1359 = vsel %vm964, %v1264, 0.0
        %v1360 = vadd.f32 %v1358, %v1359
        %1361 = vadd.xlane.f32.xlu0 %v1360
        %v1362 = vpop.xlane.xlu0 %1361
        %v1363 = vsel %vm964, %v1266, 0.0
        %v1364 = vsel %vm964, %v1267, 0.0
        %v1365 = vadd.f32 %v1363, %v1364
        %1366 = vadd.xlane.f32.xlu0 %v1365
        %v1367 = vpop.xlane.xlu0 %1366
        %v1368 = vsel %vm964, %v1269, 0.0
        %v1369 = vsel %vm964, %v1270, 0.0
        %v1370 = vadd.f32 %v1368, %v1369
        %1371 = vadd.xlane.f32.xlu0 %v1370
        %v1372 = vpop.xlane.xlu0 %1371
        %v1373 = vsel %vm964, %v1272, 0.0
        %v1374 = vsel %vm964, %v1273, 0.0
        %v1375 = vadd.f32 %v1373, %v1374
        %1376 = vadd.xlane.f32.xlu0 %v1375
        %v1377 = vpop.xlane.xlu0 %1376
        %v1378 = vsel %vm964, %v1275, 0.0
        %v1379 = vsel %vm964, %v1276, 0.0
        %v1380 = vadd.f32 %v1378, %v1379
        %1381 = vadd.xlane.f32.xlu0 %v1380
        %v1382 = vpop.xlane.xlu0 %1381
        %v1383 = vsel %vm964, %v1278, 0.0
        %v1384 = vsel %vm964, %v1279, 0.0
        %v1385 = vadd.f32 %v1383, %v1384
        %1386 = vadd.xlane.f32.xlu0 %v1385
        %v1387 = vpop.xlane.xlu0 %1386
        %v1388 = vsel %vm964, %v1281, 0.0
        %v1389 = vsel %vm964, %v1282, 0.0
        %v1390 = vadd.f32 %v1388, %v1389
        %1391 = vadd.xlane.f32.xlu0 %v1390
        %v1392 = vpop.xlane.xlu0 %1391
        %v1393 = vsel %vm964, %v1284, 0.0
        %v1394 = vsel %vm964, %v1285, 0.0
        %v1395 = vadd.f32 %v1393, %v1394
        %1396 = vadd.xlane.f32.xlu0 %v1395
        %v1397 = vpop.xlane.xlu0 %1396
        %v1414 = vrot.slane %v1322, 1
        %v1415 = vrot.slane %v1327, 1
        %v1416 = vrot.slane %v1332, 1
        %v1417 = vrot.slane %v1337, 1
        %v1418 = vrot.slane %v1342, 1
        %v1419 = vrot.slane %v1347, 1
        %v1420 = vrot.slane %v1352, 1
        %v1421 = vrot.slane %v1357, 1
        %v1422 = vrot.slane %v1362, 1
        %v1423 = vrot.slane %v1367, 1
        %v1424 = vrot.slane %v1372, 1
        %v1425 = vrot.slane %v1377, 1
        %v1426 = vrot.slane %v1382, 1
        %v1427 = vrot.slane %v1387, 1
        %v1428 = vrot.slane %v1392, 1
        %v1429 = vrot.slane %v1397, 1
        %v1446 = vadd.f32 %v1322, %v1414
        %v1447 = vadd.f32 %v1327, %v1415
        %v1448 = vadd.f32 %v1332, %v1416
        %v1449 = vadd.f32 %v1337, %v1417
        %v1450 = vadd.f32 %v1342, %v1418
        %v1451 = vadd.f32 %v1347, %v1419
        %v1452 = vadd.f32 %v1352, %v1420
        %v1453 = vadd.f32 %v1357, %v1421
        %v1454 = vadd.f32 %v1362, %v1422
        %v1455 = vadd.f32 %v1367, %v1423
        %v1456 = vadd.f32 %v1372, %v1424
        %v1457 = vadd.f32 %v1377, %v1425
        %v1458 = vadd.f32 %v1382, %v1426
        %v1459 = vadd.f32 %v1387, %v1427
        %v1460 = vadd.f32 %v1392, %v1428
        %v1461 = vadd.f32 %v1397, %v1429
        %v1462 = vmul.f32 %v1446, 0.001953125
        %v1463 = vmul.f32 %v1447, 0.001953125
        %v1464 = vmul.f32 %v1448, 0.001953125
        %v1465 = vmul.f32 %v1449, 0.001953125
        %v1466 = vmul.f32 %v1450, 0.001953125
        %v1467 = vmul.f32 %v1451, 0.001953125
        %v1468 = vmul.f32 %v1452, 0.001953125
        %v1469 = vmul.f32 %v1453, 0.001953125
        %v1470 = vmul.f32 %v1454, 0.001953125
        %v1471 = vmul.f32 %v1455, 0.001953125
        %v1472 = vmul.f32 %v1456, 0.001953125
        %v1473 = vmul.f32 %v1457, 0.001953125
        %v1474 = vmul.f32 %v1458, 0.001953125
        %v1475 = vmul.f32 %v1459, 0.001953125
        %v1476 = vmul.f32 %v1460, 0.001953125
        %v1477 = vmul.f32 %v1461, 0.001953125
        %v1478 = vadd.f32 %v1462, 1e-05
        %v1479 = vadd.f32 %v1463, 1e-05
        %v1480 = vadd.f32 %v1464, 1e-05
        %v1481 = vadd.f32 %v1465, 1e-05
        %v1482 = vadd.f32 %v1466, 1e-05
        %v1483 = vadd.f32 %v1467, 1e-05
        %v1484 = vadd.f32 %v1468, 1e-05
        %v1485 = vadd.f32 %v1469, 1e-05
        %v1486 = vadd.f32 %v1470, 1e-05
        %v1487 = vadd.f32 %v1471, 1e-05
        %v1488 = vadd.f32 %v1472, 1e-05
        %v1489 = vadd.f32 %v1473, 1e-05
        %v1490 = vadd.f32 %v1474, 1e-05
        %v1491 = vadd.f32 %v1475, 1e-05
        %v1492 = vadd.f32 %v1476, 1e-05
        %v1493 = vadd.f32 %v1477, 1e-05
        %v1494 = vrsqrt.pop %v1478
        %v1495 = vmul.f32 %v1494, %v1478
        %v1496 = vmul.f32 %v1495, %v1494
        %v1497 = vmul.f32 0.5, %v1496
        %v1498 = vsub.f32 1.5, %v1497
        %v1499 = vmul.f32 %v1494, %v1498
        %vm1500 = vweird.f32 %v1478
        %vm1501 = vweird.f32 %v1494
        %vm1502 = vmor %vm1500, %vm1501
        %v1503 = vsel %vm1502, %v1494, %v1499
        %v1504 = vrsqrt.pop %v1479
        %v1505 = vmul.f32 %v1504, %v1479
        %v1506 = vmul.f32 %v1505, %v1504
        %v1507 = vmul.f32 0.5, %v1506
        %v1508 = vsub.f32 1.5, %v1507
        %v1509 = vmul.f32 %v1504, %v1508
        %vm1510 = vweird.f32 %v1479
        %vm1511 = vweird.f32 %v1504
        %vm1512 = vmor %vm1510, %vm1511
        %v1513 = vsel %vm1512, %v1504, %v1509
        %v1514 = vrsqrt.pop %v1480
        %v1515 = vmul.f32 %v1514, %v1480
        %v1516 = vmul.f32 %v1515, %v1514
        %v1517 = vmul.f32 0.5, %v1516
        %v1518 = vsub.f32 1.5, %v1517
        %v1519 = vmul.f32 %v1514, %v1518
        %vm1520 = vweird.f32 %v1480
        %vm1521 = vweird.f32 %v1514
        %vm1522 = vmor %vm1520, %vm1521
        %v1523 = vsel %vm1522, %v1514, %v1519
        %v1524 = vrsqrt.pop %v1481
        %v1525 = vmul.f32 %v1524, %v1481
        %v1526 = vmul.f32 %v1525, %v1524
        %v1527 = vmul.f32 0.5, %v1526
        %v1528 = vsub.f32 1.5, %v1527
        %v1529 = vmul.f32 %v1524, %v1528
        %vm1530 = vweird.f32 %v1481
        %vm1531 = vweird.f32 %v1524
        %vm1532 = vmor %vm1530, %vm1531
        %v1533 = vsel %vm1532, %v1524, %v1529
        %v1534 = vrsqrt.pop %v1482
        %v1535 = vmul.f32 %v1534, %v1482
        %v1536 = vmul.f32 %v1535, %v1534
        %v1537 = vmul.f32 0.5, %v1536
        %v1538 = vsub.f32 1.5, %v1537
        %v1539 = vmul.f32 %v1534, %v1538
        %vm1540 = vweird.f32 %v1482
        %vm1541 = vweird.f32 %v1534
        %vm1542 = vmor %vm1540, %vm1541
        %v1543 = vsel %vm1542, %v1534, %v1539
        %v1544 = vrsqrt.pop %v1483
        %v1545 = vmul.f32 %v1544, %v1483
        %v1546 = vmul.f32 %v1545, %v1544
        %v1547 = vmul.f32 0.5, %v1546
        %v1548 = vsub.f32 1.5, %v1547
        %v1549 = vmul.f32 %v1544, %v1548
        %vm1550 = vweird.f32 %v1483
        %vm1551 = vweird.f32 %v1544
        %vm1552 = vmor %vm1550, %vm1551
        %v1553 = vsel %vm1552, %v1544, %v1549
        %v1554 = vrsqrt.pop %v1484
        %v1555 = vmul.f32 %v1554, %v1484
        %v1556 = vmul.f32 %v1555, %v1554
        %v1557 = vmul.f32 0.5, %v1556
        %v1558 = vsub.f32 1.5, %v1557
        %v1559 = vmul.f32 %v1554, %v1558
        %vm1560 = vweird.f32 %v1484
        %vm1561 = vweird.f32 %v1554
        %vm1562 = vmor %vm1560, %vm1561
        %v1563 = vsel %vm1562, %v1554, %v1559
        %v1564 = vrsqrt.pop %v1485
        %v1565 = vmul.f32 %v1564, %v1485
        %v1566 = vmul.f32 %v1565, %v1564
        %v1567 = vmul.f32 0.5, %v1566
        %v1568 = vsub.f32 1.5, %v1567
        %v1569 = vmul.f32 %v1564, %v1568
        %vm1570 = vweird.f32 %v1485
        %vm1571 = vweird.f32 %v1564
        %vm1572 = vmor %vm1570, %vm1571
        %v1573 = vsel %vm1572, %v1564, %v1569
        %v1574 = vrsqrt.pop %v1486
        %v1575 = vmul.f32 %v1574, %v1486
        %v1576 = vmul.f32 %v1575, %v1574
        %v1577 = vmul.f32 0.5, %v1576
        %v1578 = vsub.f32 1.5, %v1577
        %v1579 = vmul.f32 %v1574, %v1578
        %vm1580 = vweird.f32 %v1486
        %vm1581 = vweird.f32 %v1574
        %vm1582 = vmor %vm1580, %vm1581
        %v1583 = vsel %vm1582, %v1574, %v1579
        %v1584 = vrsqrt.pop %v1487
        %v1585 = vmul.f32 %v1584, %v1487
        %v1586 = vmul.f32 %v1585, %v1584
        %v1587 = vmul.f32 0.5, %v1586
        %v1588 = vsub.f32 1.5, %v1587
        %v1589 = vmul.f32 %v1584, %v1588
        %vm1590 = vweird.f32 %v1487
        %vm1591 = vweird.f32 %v1584
        %vm1592 = vmor %vm1590, %vm1591
        %v1593 = vsel %vm1592, %v1584, %v1589
        %v1594 = vrsqrt.pop %v1488
        %v1595 = vmul.f32 %v1594, %v1488
        %v1596 = vmul.f32 %v1595, %v1594
        %v1597 = vmul.f32 0.5, %v1596
        %v1598 = vsub.f32 1.5, %v1597
        %v1599 = vmul.f32 %v1594, %v1598
        %vm1600 = vweird.f32 %v1488
        %vm1601 = vweird.f32 %v1594
        %vm1602 = vmor %vm1600, %vm1601
        %v1603 = vsel %vm1602, %v1594, %v1599
        %v1604 = vrsqrt.pop %v1489
        %v1605 = vmul.f32 %v1604, %v1489
        %v1606 = vmul.f32 %v1605, %v1604
        %v1607 = vmul.f32 0.5, %v1606
        %v1608 = vsub.f32 1.5, %v1607
        %v1609 = vmul.f32 %v1604, %v1608
        %vm1610 = vweird.f32 %v1489
        %vm1611 = vweird.f32 %v1604
        %vm1612 = vmor %vm1610, %vm1611
        %v1613 = vsel %vm1612, %v1604, %v1609
        %v1614 = vrsqrt.pop %v1490
        %v1615 = vmul.f32 %v1614, %v1490
        %v1616 = vmul.f32 %v1615, %v1614
        %v1617 = vmul.f32 0.5, %v1616
        %v1618 = vsub.f32 1.5, %v1617
        %v1619 = vmul.f32 %v1614, %v1618
        %vm1620 = vweird.f32 %v1490
        %vm1621 = vweird.f32 %v1614
        %vm1622 = vmor %vm1620, %vm1621
        %v1623 = vsel %vm1622, %v1614, %v1619
        %v1624 = vrsqrt.pop %v1491
        %v1625 = vmul.f32 %v1624, %v1491
        %v1626 = vmul.f32 %v1625, %v1624
        %v1627 = vmul.f32 0.5, %v1626
        %v1628 = vsub.f32 1.5, %v1627
        %v1629 = vmul.f32 %v1624, %v1628
        %vm1630 = vweird.f32 %v1491
        %vm1631 = vweird.f32 %v1624
        %vm1632 = vmor %vm1630, %vm1631
        %v1633 = vsel %vm1632, %v1624, %v1629
        %v1634 = vrsqrt.pop %v1492
        %v1635 = vmul.f32 %v1634, %v1492
        %v1636 = vmul.f32 %v1635, %v1634
        %v1637 = vmul.f32 0.5, %v1636
        %v1638 = vsub.f32 1.5, %v1637
        %v1639 = vmul.f32 %v1634, %v1638
        %vm1640 = vweird.f32 %v1492
        %vm1641 = vweird.f32 %v1634
        %vm1642 = vmor %vm1640, %vm1641
        %v1643 = vsel %vm1642, %v1634, %v1639
        %v1644 = vrsqrt.pop %v1493
        %v1645 = vmul.f32 %v1644, %v1493
        %v1646 = vmul.f32 %v1645, %v1644
        %v1647 = vmul.f32 0.5, %v1646
        %v1648 = vsub.f32 1.5, %v1647
        %v1649 = vmul.f32 %v1644, %v1648
        %vm1650 = vweird.f32 %v1493
        %vm1651 = vweird.f32 %v1644
        %vm1652 = vmor %vm1650, %vm1651
        %v1653 = vsel %vm1652, %v1644, %v1649
        %s1655 = vtos %v1503
        %v1656 = vstv %s1655
        %s1659 = vtos %v1513
        %v1660 = vstv %s1659
        %s1663 = vtos %v1523
        %v1664 = vstv %s1663
        %s1667 = vtos %v1533
        %v1668 = vstv %s1667
        %s1671 = vtos %v1543
        %v1672 = vstv %s1671
        %s1675 = vtos %v1553
        %v1676 = vstv %s1675
        %s1679 = vtos %v1563
        %v1680 = vstv %s1679
        %s1683 = vtos %v1573
        %v1684 = vstv %s1683
        %s1687 = vtos %v1583
        %v1688 = vstv %s1687
        %s1691 = vtos %v1593
        %v1692 = vstv %s1691
        %s1695 = vtos %v1603
        %v1696 = vstv %s1695
        %s1699 = vtos %v1613
        %v1700 = vstv %s1699
        %s1703 = vtos %v1623
        %v1704 = vstv %s1703
        %s1707 = vtos %v1633
        %v1708 = vstv %s1707
        %s1711 = vtos %v1643
        %v1712 = vstv %s1711
        %s1715 = vtos %v1653
        %v1716 = vstv %s1715
        %v1718 = vmul.f32 %v1189, %v1656
        %v1719 = vmul.f32 %v1190, %v1660
        %v1720 = vmul.f32 %v1191, %v1664
        %v1721 = vmul.f32 %v1192, %v1668
        %v1722 = vmul.f32 %v1193, %v1672
        %v1723 = vmul.f32 %v1194, %v1676
        %v1724 = vmul.f32 %v1195, %v1680
        %v1725 = vmul.f32 %v1196, %v1684
        %v1726 = vmul.f32 %v1197, %v1688
        %v1727 = vmul.f32 %v1198, %v1692
        %v1728 = vmul.f32 %v1199, %v1696
        %v1729 = vmul.f32 %v1200, %v1700
        %v1730 = vmul.f32 %v1201, %v1704
        %v1731 = vmul.f32 %v1202, %v1708
        %v1732 = vmul.f32 %v1203, %v1712
        %v1733 = vmul.f32 %v1204, %v1716
        %v1734 = vld [vmem:[#allocation2] sm:$0x3]
        %v1735 = vld [vmem:[#allocation2 + $0x2] sm:$0x3]
        %v1736 = vld [vmem:[#allocation2 + $0x4] sm:$0x3]
        %v1737 = vld [vmem:[#allocation2 + $0x6] sm:$0x3]
        %v1738 = vld [vmem:[#allocation2 + $0x8] sm:$0x3]
        %v1739 = vld [vmem:[#allocation2 + $0xa] sm:$0x3]
        %v1740 = vld [vmem:[#allocation2 + $0xc] sm:$0x3]
        %v1741 = vld [vmem:[#allocation2 + $0xe] sm:$0x3]
        %v1742 = vld [vmem:[#allocation2 + $0x10] sm:$0x3]
        %v1743 = vld [vmem:[#allocation2 + $0x12] sm:$0x3]
        %v1744 = vld [vmem:[#allocation2 + $0x14] sm:$0x3]
        %v1745 = vld [vmem:[#allocation2 + $0x16] sm:$0x3]
        %v1746 = vld [vmem:[#allocation2 + $0x18] sm:$0x3]
        %v1747 = vld [vmem:[#allocation2 + $0x1a] sm:$0x3]
        %v1748 = vld [vmem:[#allocation2 + $0x1c] sm:$0x3]
        %v1749 = vld [vmem:[#allocation2 + $0x1e] sm:$0x3]
        %1751 = vset.pattern.permute.xlu0 0
        %1752 = vperm.xlu0 %1751, %v1734
        %v1753 = vpop.permute.xlu0 %1752
        %1755 = vset.pattern.permute.xlu0 0
        %1756 = vperm.xlu0 %1755, %v1735
        %v1757 = vpop.permute.xlu0 %1756
        %1759 = vset.pattern.permute.xlu0 0
        %1760 = vperm.xlu0 %1759, %v1736
        %v1761 = vpop.permute.xlu0 %1760
        %1763 = vset.pattern.permute.xlu0 0
        %1764 = vperm.xlu0 %1763, %v1737
        %v1765 = vpop.permute.xlu0 %1764
        %1767 = vset.pattern.permute.xlu0 0
        %1768 = vperm.xlu0 %1767, %v1738
        %v1769 = vpop.permute.xlu0 %1768
        %1771 = vset.pattern.permute.xlu0 0
        %1772 = vperm.xlu0 %1771, %v1739
        %v1773 = vpop.permute.xlu0 %1772
        %1775 = vset.pattern.permute.xlu0 0
        %1776 = vperm.xlu0 %1775, %v1740
        %v1777 = vpop.permute.xlu0 %1776
        %1779 = vset.pattern.permute.xlu0 0
        %1780 = vperm.xlu0 %1779, %v1741
        %v1781 = vpop.permute.xlu0 %1780
        %1783 = vset.pattern.permute.xlu0 0
        %1784 = vperm.xlu0 %1783, %v1742
        %v1785 = vpop.permute.xlu0 %1784
        %1787 = vset.pattern.permute.xlu0 0
        %1788 = vperm.xlu0 %1787, %v1743
        %v1789 = vpop.permute.xlu0 %1788
        %1791 = vset.pattern.permute.xlu0 0
        %1792 = vperm.xlu0 %1791, %v1744
        %v1793 = vpop.permute.xlu0 %1792
        %1795 = vset.pattern.permute.xlu0 0
        %1796 = vperm.xlu0 %1795, %v1745
        %v1797 = vpop.permute.xlu0 %1796
        %1799 = vset.pattern.permute.xlu0 0
        %1800 = vperm.xlu0 %1799, %v1746
        %v1801 = vpop.permute.xlu0 %1800
        %1803 = vset.pattern.permute.xlu0 0
        %1804 = vperm.xlu0 %1803, %v1747
        %v1805 = vpop.permute.xlu0 %1804
        %1807 = vset.pattern.permute.xlu0 0
        %1808 = vperm.xlu0 %1807, %v1748
        %v1809 = vpop.permute.xlu0 %1808
        %1811 = vset.pattern.permute.xlu0 0
        %1812 = vperm.xlu0 %1811, %v1749
        %v1813 = vpop.permute.xlu0 %1812
        %v1815 = vunpack.c.l.s4 269488144
        %v1816 = vunpack.c.0.s8 %v1815
        %v1817 = vperm.slane %v1753, %v1816
        %v1819 = vunpack.c.l.s4 269488144
        %v1820 = vunpack.c.0.s8 %v1819
        %v1821 = vperm.slane %v1757, %v1820
        %v1823 = vunpack.c.l.s4 269488144
        %v1824 = vunpack.c.0.s8 %v1823
        %v1825 = vperm.slane %v1761, %v1824
        %v1827 = vunpack.c.l.s4 269488144
        %v1828 = vunpack.c.0.s8 %v1827
        %v1829 = vperm.slane %v1765, %v1828
        %v1831 = vunpack.c.l.s4 269488144
        %v1832 = vunpack.c.0.s8 %v1831
        %v1833 = vperm.slane %v1769, %v1832
        %v1835 = vunpack.c.l.s4 269488144
        %v1836 = vunpack.c.0.s8 %v1835
        %v1837 = vperm.slane %v1773, %v1836
        %v1839 = vunpack.c.l.s4 269488144
        %v1840 = vunpack.c.0.s8 %v1839
        %v1841 = vperm.slane %v1777, %v1840
        %v1843 = vunpack.c.l.s4 269488144
        %v1844 = vunpack.c.0.s8 %v1843
        %v1845 = vperm.slane %v1781, %v1844
        %v1847 = vunpack.c.l.s4 269488144
        %v1848 = vunpack.c.0.s8 %v1847
        %v1849 = vperm.slane %v1785, %v1848
        %v1851 = vunpack.c.l.s4 269488144
        %v1852 = vunpack.c.0.s8 %v1851
        %v1853 = vperm.slane %v1789, %v1852
        %v1855 = vunpack.c.l.s4 269488144
        %v1856 = vunpack.c.0.s8 %v1855
        %v1857 = vperm.slane %v1793, %v1856
        %v1859 = vunpack.c.l.s4 269488144
        %v1860 = vunpack.c.0.s8 %v1859
        %v1861 = vperm.slane %v1797, %v1860
        %v1863 = vunpack.c.l.s4 269488144
        %v1864 = vunpack.c.0.s8 %v1863
        %v1865 = vperm.slane %v1801, %v1864
        %v1867 = vunpack.c.l.s4 269488144
        %v1868 = vunpack.c.0.s8 %v1867
        %v1869 = vperm.slane %v1805, %v1868
        %v1871 = vunpack.c.l.s4 269488144
        %v1872 = vunpack.c.0.s8 %v1871
        %v1873 = vperm.slane %v1809, %v1872
        %v1875 = vunpack.c.l.s4 269488144
        %v1876 = vunpack.c.0.s8 %v1875
        %v1877 = vperm.slane %v1813, %v1876
        %v1894 = vmul.f32 %v1718, %v1817
        %v1895 = vmul.f32 %v1719, %v1821
        %v1896 = vmul.f32 %v1720, %v1825
        %v1897 = vmul.f32 %v1721, %v1829
        %v1898 = vmul.f32 %v1722, %v1833
        %v1899 = vmul.f32 %v1723, %v1837
        %v1900 = vmul.f32 %v1724, %v1841
        %v1901 = vmul.f32 %v1725, %v1845
        %v1902 = vmul.f32 %v1726, %v1849
        %v1903 = vmul.f32 %v1727, %v1853
        %v1904 = vmul.f32 %v1728, %v1857
        %v1905 = vmul.f32 %v1729, %v1861
        %v1906 = vmul.f32 %v1730, %v1865
        %v1907 = vmul.f32 %v1731, %v1869
        %v1908 = vmul.f32 %v1732, %v1873
        %v1909 = vmul.f32 %v1733, %v1877
        %v1910 = vld [vmem:[#allocation4] sm:$0x3]
        %v1911 = vld [vmem:[#allocation4 + $0x2] sm:$0x3]
        %v1912 = vld [vmem:[#allocation4 + $0x4] sm:$0x3]
        %v1913 = vld [vmem:[#allocation4 + $0x6] sm:$0x3]
        %v1914 = vld [vmem:[#allocation4 + $0x8] sm:$0x3]
        %v1915 = vld [vmem:[#allocation4 + $0xa] sm:$0x3]
        %v1916 = vld [vmem:[#allocation4 + $0xc] sm:$0x3]
        %v1917 = vld [vmem:[#allocation4 + $0xe] sm:$0x3]
        %v1918 = vld [vmem:[#allocation4 + $0x10] sm:$0x3]
        %v1919 = vld [vmem:[#allocation4 + $0x12] sm:$0x3]
        %v1920 = vld [vmem:[#allocation4 + $0x14] sm:$0x3]
        %v1921 = vld [vmem:[#allocation4 + $0x16] sm:$0x3]
        %v1922 = vld [vmem:[#allocation4 + $0x18] sm:$0x3]
        %v1923 = vld [vmem:[#allocation4 + $0x1a] sm:$0x3]
        %v1924 = vld [vmem:[#allocation4 + $0x1c] sm:$0x3]
        %v1925 = vld [vmem:[#allocation4 + $0x1e] sm:$0x3]
        %1927 = vset.pattern.permute.xlu0 0
        %1928 = vperm.xlu0 %1927, %v1910
        %v1929 = vpop.permute.xlu0 %1928
        %1931 = vset.pattern.permute.xlu0 0
        %1932 = vperm.xlu0 %1931, %v1911
        %v1933 = vpop.permute.xlu0 %1932
        %1935 = vset.pattern.permute.xlu0 0
        %1936 = vperm.xlu0 %1935, %v1912
        %v1937 = vpop.permute.xlu0 %1936
        %1939 = vset.pattern.permute.xlu0 0
        %1940 = vperm.xlu0 %1939, %v1913
        %v1941 = vpop.permute.xlu0 %1940
        %1943 = vset.pattern.permute.xlu0 0
        %1944 = vperm.xlu0 %1943, %v1914
        %v1945 = vpop.permute.xlu0 %1944
        %1947 = vset.pattern.permute.xlu0 0
        %1948 = vperm.xlu0 %1947, %v1915
        %v1949 = vpop.permute.xlu0 %1948
        %1951 = vset.pattern.permute.xlu0 0
        %1952 = vperm.xlu0 %1951, %v1916
        %v1953 = vpop.permute.xlu0 %1952
        %1955 = vset.pattern.permute.xlu0 0
        %1956 = vperm.xlu0 %1955, %v1917
        %v1957 = vpop.permute.xlu0 %1956
        %1959 = vset.pattern.permute.xlu0 0
        %1960 = vperm.xlu0 %1959, %v1918
        %v1961 = vpop.permute.xlu0 %1960
        %1963 = vset.pattern.permute.xlu0 0
        %1964 = vperm.xlu0 %1963, %v1919
        %v1965 = vpop.permute.xlu0 %1964
        %1967 = vset.pattern.permute.xlu0 0
        %1968 = vperm.xlu0 %1967, %v1920
        %v1969 = vpop.permute.xlu0 %1968
        %1971 = vset.pattern.permute.xlu0 0
        %1972 = vperm.xlu0 %1971, %v1921
        %v1973 = vpop.permute.xlu0 %1972
        %1975 = vset.pattern.permute.xlu0 0
        %1976 = vperm.xlu0 %1975, %v1922
        %v1977 = vpop.permute.xlu0 %1976
        %1979 = vset.pattern.permute.xlu0 0
        %1980 = vperm.xlu0 %1979, %v1923
        %v1981 = vpop.permute.xlu0 %1980
        %1983 = vset.pattern.permute.xlu0 0
        %1984 = vperm.xlu0 %1983, %v1924
        %v1985 = vpop.permute.xlu0 %1984
        %1987 = vset.pattern.permute.xlu0 0
        %1988 = vperm.xlu0 %1987, %v1925
        %v1989 = vpop.permute.xlu0 %1988
        %v1991 = vunpack.c.l.s4 269488144
        %v1992 = vunpack.c.0.s8 %v1991
        %v1993 = vperm.slane %v1929, %v1992
        %v1995 = vunpack.c.l.s4 269488144
        %v1996 = vunpack.c.0.s8 %v1995
        %v1997 = vperm.slane %v1933, %v1996
        %v1999 = vunpack.c.l.s4 269488144
        %v2000 = vunpack.c.0.s8 %v1999
        %v2001 = vperm.slane %v1937, %v2000
        %v2003 = vunpack.c.l.s4 269488144
        %v2004 = vunpack.c.0.s8 %v2003
        %v2005 = vperm.slane %v1941, %v2004
        %v2007 = vunpack.c.l.s4 269488144
        %v2008 = vunpack.c.0.s8 %v2007
        %v2009 = vperm.slane %v1945, %v2008
        %v2011 = vunpack.c.l.s4 269488144
        %v2012 = vunpack.c.0.s8 %v2011
        %v2013 = vperm.slane %v1949, %v2012
        %v2015 = vunpack.c.l.s4 269488144
        %v2016 = vunpack.c.0.s8 %v2015
        %v2017 = vperm.slane %v1953, %v2016
        %v2019 = vunpack.c.l.s4 269488144
        %v2020 = vunpack.c.0.s8 %v2019
        %v2021 = vperm.slane %v1957, %v2020
        %v2023 = vunpack.c.l.s4 269488144
        %v2024 = vunpack.c.0.s8 %v2023
        %v2025 = vperm.slane %v1961, %v2024
        %v2027 = vunpack.c.l.s4 269488144
        %v2028 = vunpack.c.0.s8 %v2027
        %v2029 = vperm.slane %v1965, %v2028
        %v2031 = vunpack.c.l.s4 269488144
        %v2032 = vunpack.c.0.s8 %v2031
        %v2033 = vperm.slane %v1969, %v2032
        %v2035 = vunpack.c.l.s4 269488144
        %v2036 = vunpack.c.0.s8 %v2035
        %v2037 = vperm.slane %v1973, %v2036
        %v2039 = vunpack.c.l.s4 269488144
        %v2040 = vunpack.c.0.s8 %v2039
        %v2041 = vperm.slane %v1977, %v2040
        %v2043 = vunpack.c.l.s4 269488144
        %v2044 = vunpack.c.0.s8 %v2043
        %v2045 = vperm.slane %v1981, %v2044
        %v2047 = vunpack.c.l.s4 269488144
        %v2048 = vunpack.c.0.s8 %v2047
        %v2049 = vperm.slane %v1985, %v2048
        %v2051 = vunpack.c.l.s4 269488144
        %v2052 = vunpack.c.0.s8 %v2051
        %v2053 = vperm.slane %v1989, %v2052
        %v2070 = vadd.f32 %v1894, %v1993
        %v2071 = vadd.f32 %v1895, %v1997
        %v2072 = vadd.f32 %v1896, %v2001
        %v2073 = vadd.f32 %v1897, %v2005
        %v2074 = vadd.f32 %v1898, %v2009
        %v2075 = vadd.f32 %v1899, %v2013
        %v2076 = vadd.f32 %v1900, %v2017
        %v2077 = vadd.f32 %v1901, %v2021
        %v2078 = vadd.f32 %v1902, %v2025
        %v2079 = vadd.f32 %v1903, %v2029
        %v2080 = vadd.f32 %v1904, %v2033
        %v2081 = vadd.f32 %v1905, %v2037
        %v2082 = vadd.f32 %v1906, %v2041
        %v2083 = vadd.f32 %v1907, %v2045
        %v2084 = vadd.f32 %v1908, %v2049
        %v2085 = vadd.f32 %v1909, %v2053
        %2102 = vst [vmem:[#allocation1] ss:$4 sm:$0xff] %v2070
        %v2103 = vld.sshfl [vmem:[#allocation1] sm:$0xff pattern:$0x73625140]
        %v2104 = vld.sshfl [vmem:[#allocation1 + $0x8] sm:$0xff pattern:$0x73625140]
        %s2105 = scalar_lea.vmem [#allocation1], 32
        %2106 = vst [vmem:[%s2105] ss:$4 sm:$0xff] %v2071
        %v2107 = vld.sshfl [vmem:[#allocation1 + $0x20] sm:$0xff pattern:$0x73625140]
        %v2108 = vld.sshfl [vmem:[#allocation1 + $0x28] sm:$0xff pattern:$0x73625140]
        %2109 = vst [vmem:[#allocation1] ss:$4 sm:$0xff] %v2072
        %v2110 = vld.sshfl [vmem:[#allocation1] sm:$0xff pattern:$0x73625140]
        %v2111 = vld.sshfl [vmem:[#allocation1 + $0x8] sm:$0xff pattern:$0x73625140]
        %2112 = vst [vmem:[%s2105] ss:$4 sm:$0xff] %v2073
        %v2113 = vld.sshfl [vmem:[#allocation1 + $0x20] sm:$0xff pattern:$0x73625140]
        %v2114 = vld.sshfl [vmem:[#allocation1 + $0x28] sm:$0xff pattern:$0x73625140]
        %2115 = vst [vmem:[#allocation1] ss:$4 sm:$0xff] %v2074
        %v2116 = vld.sshfl [vmem:[#allocation1] sm:$0xff pattern:$0x73625140]
        %v2117 = vld.sshfl [vmem:[#allocation1 + $0x8] sm:$0xff pattern:$0x73625140]
        %2118 = vst [vmem:[%s2105] ss:$4 sm:$0xff] %v2075
        %v2119 = vld.sshfl [vmem:[#allocation1 + $0x20] sm:$0xff pattern:$0x73625140]
        %v2120 = vld.sshfl [vmem:[#allocation1 + $0x28] sm:$0xff pattern:$0x73625140]
        %2121 = vst [vmem:[#allocation1] ss:$4 sm:$0xff] %v2076
        %v2122 = vld.sshfl [vmem:[#allocation1] sm:$0xff pattern:$0x73625140]
        %v2123 = vld.sshfl [vmem:[#allocation1 + $0x8] sm:$0xff pattern:$0x73625140]
        %2124 = vst [vmem:[%s2105] ss:$4 sm:$0xff] %v2077
        %v2125 = vld.sshfl [vmem:[#allocation1 + $0x20] sm:$0xff pattern:$0x73625140]
        %v2126 = vld.sshfl [vmem:[#allocation1 + $0x28] sm:$0xff pattern:$0x73625140]
        %2127 = vst [vmem:[#allocation1] ss:$4 sm:$0xff] %v2078
        %v2128 = vld.sshfl [vmem:[#allocation1] sm:$0xff pattern:$0x73625140]
        %v2129 = vld.sshfl [vmem:[#allocation1 + $0x8] sm:$0xff pattern:$0x73625140]
        %2130 = vst [vmem:[%s2105] ss:$4 sm:$0xff] %v2079
        %v2131 = vld.sshfl [vmem:[#allocation1 + $0x20] sm:$0xff pattern:$0x73625140]
        %v2132 = vld.sshfl [vmem:[#allocation1 + $0x28] sm:$0xff pattern:$0x73625140]
        %2133 = vst [vmem:[#allocation1] ss:$4 sm:$0xff] %v2080
        %v2134 = vld.sshfl [vmem:[#allocation1] sm:$0xff pattern:$0x73625140]
        %v2135 = vld.sshfl [vmem:[#allocation1 + $0x8] sm:$0xff pattern:$0x73625140]
        %2136 = vst [vmem:[%s2105] ss:$4 sm:$0xff] %v2081
        %v2137 = vld.sshfl [vmem:[#allocation1 + $0x20] sm:$0xff pattern:$0x73625140]
        %v2138 = vld.sshfl [vmem:[#allocation1 + $0x28] sm:$0xff pattern:$0x73625140]
        %2139 = vst [vmem:[#allocation1] ss:$4 sm:$0xff] %v2082
        %v2140 = vld.sshfl [vmem:[#allocation1] sm:$0xff pattern:$0x73625140]
        %v2141 = vld.sshfl [vmem:[#allocation1 + $0x8] sm:$0xff pattern:$0x73625140]
        %2142 = vst [vmem:[%s2105] ss:$4 sm:$0xff] %v2083
        %v2143 = vld.sshfl [vmem:[#allocation1 + $0x20] sm:$0xff pattern:$0x73625140]
        %v2144 = vld.sshfl [vmem:[#allocation1 + $0x28] sm:$0xff pattern:$0x73625140]
        %2145 = vst [vmem:[#allocation1] ss:$4 sm:$0xff] %v2084
        %v2146 = vld.sshfl [vmem:[#allocation1] sm:$0xff pattern:$0x73625140]
        %v2147 = vld.sshfl [vmem:[#allocation1 + $0x8] sm:$0xff pattern:$0x73625140]
        %2148 = vst [vmem:[%s2105] ss:$4 sm:$0xff] %v2085
        %v2149 = vld.sshfl [vmem:[#allocation1 + $0x20] sm:$0xff pattern:$0x73625140]
        %v2150 = vld.sshfl [vmem:[#allocation1 + $0x28] sm:$0xff pattern:$0x73625140]
        %v2183 = vpack.c.bf16 %v2104, %v2103
        %v2184 = vpack.c.bf16 %v2108, %v2107
        %v2185 = vpack.c.bf16 %v2111, %v2110
        %v2186 = vpack.c.bf16 %v2114, %v2113
        %v2187 = vpack.c.bf16 %v2117, %v2116
        %v2188 = vpack.c.bf16 %v2120, %v2119
        %v2189 = vpack.c.bf16 %v2123, %v2122
        %v2190 = vpack.c.bf16 %v2126, %v2125
        %v2191 = vpack.c.bf16 %v2129, %v2128
        %v2192 = vpack.c.bf16 %v2132, %v2131
        %v2193 = vpack.c.bf16 %v2135, %v2134
        %v2194 = vpack.c.bf16 %v2138, %v2137
        %v2195 = vpack.c.bf16 %v2141, %v2140
        %v2196 = vpack.c.bf16 %v2144, %v2143
        %v2197 = vpack.c.bf16 %v2147, %v2146
        %v2198 = vpack.c.bf16 %v2150, %v2149
        %v2215 = vrot.slane %v2183, 3
        %v2216 = vrot.slane %v2184, 3
        %v2217 = vrot.slane %v2185, 3
        %v2218 = vrot.slane %v2186, 3
        %v2219 = vrot.slane %v2187, 3
        %v2220 = vrot.slane %v2188, 3
        %v2221 = vrot.slane %v2189, 3
        %v2222 = vrot.slane %v2190, 3
        %v2223 = vrot.slane %v2191, 3
        %v2224 = vrot.slane %v2192, 3
        %v2225 = vrot.slane %v2193, 3
        %v2226 = vrot.slane %v2194, 3
        %v2227 = vrot.slane %v2195, 3
        %v2228 = vrot.slane %v2196, 3
        %v2229 = vrot.slane %v2197, 3
        %v2230 = vrot.slane %v2198, 3
        %vm2231 = vcmask 1040384
        %v2234 = vsel %vm2231, %v2183, %v2215
        %v2237 = vsel %vm2231, %v2184, %v2216
        %v2240 = vsel %vm2231, %v2185, %v2217
        %v2243 = vsel %vm2231, %v2186, %v2218
        %v2246 = vsel %vm2231, %v2187, %v2219
        %v2249 = vsel %vm2231, %v2188, %v2220
        %v2252 = vsel %vm2231, %v2189, %v2221
        %v2255 = vsel %vm2231, %v2190, %v2222
        %v2258 = vsel %vm2231, %v2191, %v2223
        %v2261 = vsel %vm2231, %v2192, %v2224
        %v2264 = vsel %vm2231, %v2193, %v2225
        %v2267 = vsel %vm2231, %v2194, %v2226
        %v2270 = vsel %vm2231, %v2195, %v2227
        %v2273 = vsel %vm2231, %v2196, %v2228
        %v2276 = vsel %vm2231, %v2197, %v2229
        %v2279 = vsel %vm2231, %v2198, %v2230
        %2296 = vst [vmem:[%s209] sm:$0x3] %v2234
        %2297 = vst [vmem:[%s209 + $0x2] sm:$0x3] %v2237
        %2298 = vst [vmem:[%s209 + $0x4] sm:$0x3] %v2240
        %2299 = vst [vmem:[%s209 + $0x6] sm:$0x3] %v2243
        %2300 = vst [vmem:[%s209 + $0x8] sm:$0x3] %v2246
        %2301 = vst [vmem:[%s209 + $0xa] sm:$0x3] %v2249
        %2302 = vst [vmem:[%s209 + $0xc] sm:$0x3] %v2252
        %2303 = vst [vmem:[%s209 + $0xe] sm:$0x3] %v2255
        %2304 = vst [vmem:[%s209 + $0x10] sm:$0x3] %v2258
        %2305 = vst [vmem:[%s209 + $0x12] sm:$0x3] %v2261
        %2306 = vst [vmem:[%s209 + $0x14] sm:$0x3] %v2264
        %2307 = vst [vmem:[%s209 + $0x16] sm:$0x3] %v2267
        %2308 = vst [vmem:[%s209 + $0x18] sm:$0x3] %v2270
        %2309 = vst [vmem:[%s209 + $0x1a] sm:$0x3] %v2273
        %2310 = vst [vmem:[%s209 + $0x1c] sm:$0x3] %v2276
        %2311 = vst [vmem:[%s209 + $0x1e] sm:$0x3] %v2279
        %s2312 = smul.u32 16, %s16
        %p2313 = scmp.lt.s32.totalorder %s2312, 31
        %s2314 = scalar_select %p2313, %s2312, 31
        %s2315 = smul.addr %s2314, 2
        %s2316 = scalar_lea.vmem %s3, %s2315
        // Predicated region
        $region41: #{upsample_forward.2} parent=31 // pred_check
          %p2317 = pneg %p102
        $region42: #{upsample_forward.2} parent=31 // pred_check_branch
          %2319 = sbr.rel (%p2317) target = $region44
        $region43: #{upsample_forward.2} parent=31 // pred_region
          %s2320 = smul.u32 16, %s16
        $region44: #{upsample_forward.2} parent=31 // pred_fallthru
          _
      $region32: #{upsample_forward.2} parent=5 // pred_fallthru
        _
      %p2321 = scmp.le.s32.totalorder 2, %s11
      // Predicated region
      $region45: #{upsample_forward.2} parent=5 // pred_check
        %p2322 = pneg %p2321
      $region46: #{upsample_forward.2} parent=5 // pred_check_branch
        %2324 = sbr.rel (%p2322) target = $region48
      $region47: #{upsample_forward.2} parent=5 // pred_region
        %s2325 = ssub.s32 %s11, 2
        // Predicated region
        $region49: #{upsample_forward.2} parent=47 // pred_check
          %p2326 = pneg %p108
        $region50: #{upsample_forward.2} parent=47 // pred_check_branch
          %2328 = sbr.rel (%p2326) target = $region52
        $region51: #{upsample_forward.2} parent=47 // pred_region
          %s2329 = smul.u32 16, %s17
          %p2330 = scmp.lt.s32.totalorder %s2329, 31
          %s2331 = scalar_select %p2330, %s2329, 31
          %s2332 = smul.addr %s2331, 2
          %s2333 = scalar_lea.vmem %s3, %s2332
        $region52: #{upsample_forward.2} parent=47 // pred_fallthru
          _
      $region48: #{upsample_forward.2} parent=5 // pred_fallthru
        _
    $region6: #{upsample_forward.2} parent=1 // loop_footer
      %s15 = sadd.s32 1, %s11
    $region7: #{upsample_forward.2} parent=1 // loop_footer_branch
      %10 = sbr.rel target = $region3
    $region8: #{upsample_forward.2} parent=1 // loop_exit
      _
    %2334 = vsyncpa [#allocation3], 1
    %s2335 = scalar_lea.sflag [#allocation3], 1
    %2336 = vsyncpa %s2335, 1
    %2337 = vsyncpa [#allocation5], 1

// kernel: tile.6
$region0: #{tile.6}
  #allocation0 [shape = 's32[1]{0}', space=sflag, size = 0x4, scoped, tag = 'scoped memory for tile.6']
  %s0 = inlined_call_operand.vmem [shape: f32[32], index: 0, kind: input, shape index: {}]
  %s1 = inlined_call_operand.vmem [shape: f32[4,32], index: 1, kind: output, shape index: {}]
  // Predicated region
  $region2: #{tile.6} parent=0 // pred_check
    _
  $region3: #{tile.6} parent=0 // pred_check_branch
    %3 = sbr.rel (0) target = $region5
  $region4: #{tile.6} parent=0 // pred_region
    _
  $region5: #{tile.6} parent=0 // pred_fallthru
    _
  %v4 = vld [vmem:[%s0] ss:$0 sm:$0xff]
  %5 = vst [vmem:[%s1] sm:$0xf] %v4

// kernel: tile.7
$region0: #{tile.7}
  %s0 = inlined_call_operand.vmem [shape: f32[4,32], index: 0, kind: input, shape index: {}]
  %s1 = inlined_call_operand.vmem [shape: f32[1,128], index: 1, kind: output, shape index: {}]
  $region1: #{tile.7} parent=0
    #allocation0 [shape = 'u8[4096]{0}', space=vmem, size = 0x1000, scoped, tag = 'scoped mem for output reshape']
    #allocation1 [shape = 'u8[4096]{0}', space=vmem, size = 0x1000, scoped, tag = 'scoped mem for input reshape']
    %s3 = ssub.s32 16, 1
    %v4 = vld [vmem:[%s0] sm:%s3]
    %5 = vst [vmem:[#allocation1] sm:%s3] %v4
    %v6 = vld [vmem:[#allocation1] sm:$0x1]
    %vm7 = vcmask 261120
    %8 = vst.msk [vmem:[#allocation0] sm:$0x1] %vm7, %v6
    %s9 = scalar_lea.vmem [#allocation1], 3
    %v10 = vld [vmem:[%s9] sm:$0x1]
    %11 = vrot.lane.b32.xlu0 %v10, 96
    %v12 = vpop.permute.xlu0 %11
    %vm13 = vcmask 1048320
    %14 = vst.msk [vmem:[#allocation0] sm:$0x1] %vm13, %v12
    %s15 = scalar_lea.vmem [#allocation1], 2
    %v16 = vld [vmem:[%s15] sm:$0x1]
    %17 = vrot.lane.b32.xlu0 %v16, 64
    %v18 = vpop.permute.xlu0 %17
    %vm19 = vcmask 785920
    %20 = vst.msk [vmem:[#allocation0] sm:$0x1] %vm19, %v18
    %s21 = scalar_lea.vmem [#allocation1], 1
    %v22 = vld [vmem:[%s21] sm:$0x1]
    %23 = vrot.lane.b32.xlu0 %v22, 32
    %v24 = vpop.permute.xlu0 %23
    %vm25 = vcmask 523520
    %26 = vst.msk [vmem:[#allocation0] sm:$0x1] %vm25, %v24
    %s28 = ssub.s32 2, 1
    %v29 = vld [vmem:[#allocation0] sm:%s28]
    %s31 = ssub.s32 2, 1
    %32 = vst [vmem:[%s1] sm:%s31] %v29

// kernel: upsample_forward.3
$region0: #{upsample_forward.3}
  #allocation0 [shape = 'u32[]', space=smem, size = 0x4, offset = 0x4, fixed_abs, tag = 'smem constant byte address 0x4 - core index']
  #allocation1 [shape = 'u32[72,128]{1,0:T(1,128)}', space=vmem, size = 0x9000, scoped, tag = 'internal scratch']
  %s0 = inlined_call_operand.vmem [shape: bf16[608,288], index: 0, kind: input, shape index: {}]
  %s1 = inlined_call_operand.vmem [shape: bf16[288,128], index: 1, kind: input, shape index: {}]
  %s2 = inlined_call_operand.vmem [shape: f32[1,128], index: 2, kind: input, shape index: {}]
  %s3 = inlined_call_operand.vmem [shape: bf16[608,128], index: 3, kind: output, shape index: {}]
  %s4 = sld [smem:[#allocation0]]
  $region45: #{upsample_forward.3} parent=0
    _
  %s6 = ssub.s32 1, %s4
  %s7 = scalar_select 0, %s6, %s4
  loop: start=0, step=1, limit=4
  $region2: #{upsample_forward.3} parent=0 // loop_pre_header
    _
  $region3: #{upsample_forward.3} parent=0 // loop_header
    %s9 = sphi 0, %s13
    %p10 = scmp.ge.s32.totalorder %s9, 4
    %s16 = sphi 0, %s28
    %s17 = sphi 0, %s24
    %s18 = sphi 0, %s16
    %s19 = sphi 0, %s17
    %s20 = sphi 0, %s18
    %s21 = sphi 0, %s19
    %s31 = sphi 0, %s33
    %s34 = sphi 0, %s31
    %s35 = sphi 0, %s34
    %s51 = sphi 0, %s35
    %s57 = sphi 0, %s59
    %s60 = sphi 0, %s57
    %s61 = sphi 0, %s60
    %s77 = sphi 0, %s61
    %s83 = sphi 0, %s85
    %s86 = sphi 0, %s83
    %s87 = sphi 0, %s86
    %s103 = sphi 0, %s87
    %s111 = sphi 0, %s113
    %s114 = sphi 0, %s111
    %s115 = sphi 0, %s114
    %s131 = sphi 0, %s115
  $region4: #{upsample_forward.3} parent=0 // loop_header_branch
    %12 = sbr.rel (%p10) target = $region8
  $region5: #{upsample_forward.3} parent=0 // loop_body
    %s14 = ssub.s32 %s9, 1
    %s15 = ssub.s32 %s9, 2
    %s22 = sadd.s32 1, %s17
    %p23 = scmp.ge.s32.totalorder %s22, 1
    %s24 = scalar_select %p23, 0, %s22
    %s25 = sadd.s32 1, %s16
    %s26 = scalar_select %p23, %s25, %s16
    %p27 = scmp.ge.s32.totalorder %s26, 2
    %s28 = scalar_select %p27, 0, %s26
    %s29 = ssub.s32 %s16, %s28
    %p30 = scmp.eq.s32.totalorder %s29, 0
    %s32 = sadd.s32 %s31, 1
    %s33 = scalar_select %p30, %s31, %s32
    %p36 = pneg %p30
    %p37 = scmp.eq.s32.totalorder %s9, 1
    %p38 = por %p36, %p37
    %p39 = scmp.ne.s32.totalorder %s31, %s34
    %p40 = scmp.eq.s32.totalorder %s9, 0
    %p41 = por %p39, %p40
    %p42 = scmp.ne.s32.totalorder %s31, %s34
    %p43 = scmp.eq.s32.totalorder %s14, 1
    %p44 = por %p42, %p43
    %p45 = scmp.ne.s32.totalorder %s34, %s35
    %p46 = scmp.eq.s32.totalorder %s14, 0
    %p47 = por %p45, %p46
    %p48 = scmp.ne.s32.totalorder %s34, %s35
    %p49 = scmp.eq.s32.totalorder %s15, 1
    %p50 = por %p48, %p49
    %p52 = scmp.ne.s32.totalorder %s35, %s51
    %p53 = scmp.eq.s32.totalorder %s15, 0
    %p54 = por %p52, %p53
    %s55 = ssub.s32 %s17, %s24
    %p56 = scmp.eq.s32.totalorder %s55, 0
    %s58 = sadd.s32 %s57, 1
    %s59 = scalar_select %p56, %s57, %s58
    %p62 = pneg %p56
    %p63 = scmp.eq.s32.totalorder %s9, 1
    %p64 = por %p62, %p63
    %p65 = scmp.ne.s32.totalorder %s57, %s60
    %p66 = scmp.eq.s32.totalorder %s9, 0
    %p67 = por %p65, %p66
    %p68 = scmp.ne.s32.totalorder %s57, %s60
    %p69 = scmp.eq.s32.totalorder %s14, 1
    %p70 = por %p68, %p69
    %p71 = scmp.ne.s32.totalorder %s60, %s61
    %p72 = scmp.eq.s32.totalorder %s14, 0
    %p73 = por %p71, %p72
    %p74 = scmp.ne.s32.totalorder %s60, %s61
    %p75 = scmp.eq.s32.totalorder %s15, 1
    %p76 = por %p74, %p75
    %p78 = scmp.ne.s32.totalorder %s61, %s77
    %p79 = scmp.eq.s32.totalorder %s15, 0
    %p80 = por %p78, %p79
    %s81 = ssub.s32 %s17, %s24
    %p82 = scmp.eq.s32.totalorder %s81, 0
    %s84 = sadd.s32 %s83, 1
    %s85 = scalar_select %p82, %s83, %s84
    %p88 = pneg %p82
    %p89 = scmp.eq.s32.totalorder %s9, 1
    %p90 = por %p88, %p89
    %p91 = scmp.ne.s32.totalorder %s83, %s86
    %p92 = scmp.eq.s32.totalorder %s9, 0
    %p93 = por %p91, %p92
    %p94 = scmp.ne.s32.totalorder %s83, %s86
    %p95 = scmp.eq.s32.totalorder %s14, 1
    %p96 = por %p94, %p95
    %p97 = scmp.ne.s32.totalorder %s86, %s87
    %p98 = scmp.eq.s32.totalorder %s14, 0
    %p99 = por %p97, %p98
    %p100 = scmp.ne.s32.totalorder %s86, %s87
    %p101 = scmp.eq.s32.totalorder %s15, 1
    %p102 = por %p100, %p101
    %p104 = scmp.ne.s32.totalorder %s87, %s103
    %p105 = scmp.eq.s32.totalorder %s15, 0
    %p106 = por %p104, %p105
    %s107 = ssub.s32 %s16, %s28
    %s108 = ssub.s32 %s17, %s24
    %s109 = sor.u32 %s107, %s108
    %p110 = scmp.eq.s32.totalorder %s109, 0
    %s112 = sadd.s32 %s111, 1
    %s113 = scalar_select %p110, %s111, %s112
    %p116 = pneg %p110
    %p117 = scmp.eq.s32.totalorder %s9, 1
    %p118 = por %p116, %p117
    %p119 = scmp.ne.s32.totalorder %s111, %s114
    %p120 = scmp.eq.s32.totalorder %s9, 0
    %p121 = por %p119, %p120
    %p122 = scmp.ne.s32.totalorder %s111, %s114
    %p123 = scmp.eq.s32.totalorder %s14, 1
    %p124 = por %p122, %p123
    %p125 = scmp.ne.s32.totalorder %s114, %s115
    %p126 = scmp.eq.s32.totalorder %s14, 0
    %p127 = por %p125, %p126
    %p128 = scmp.ne.s32.totalorder %s114, %s115
    %p129 = scmp.eq.s32.totalorder %s15, 1
    %p130 = por %p128, %p129
    %p132 = scmp.ne.s32.totalorder %s115, %s131
    %p133 = scmp.eq.s32.totalorder %s15, 0
    %p134 = por %p132, %p133
    %p135 = scmp.le.s32.totalorder 1, %s9
    %p136 = scmp.lt.s32.totalorder %s9, 3
    %p137 = pnand %p135, %p136
    %p138 = pneg %p137
    // Predicated region
    $region9: #{upsample_forward.3} parent=5 // pred_check
      _
    $region10: #{upsample_forward.3} parent=5 // pred_check_branch
      %140 = sbr.rel (%p137) target = $region12
    $region11: #{upsample_forward.3} parent=5 // pred_region
      %s141 = ssub.s32 %s9, 1
      // Predicated region
      $region13: #{upsample_forward.3} parent=11 // pred_check
        %p142 = pneg %p73
      $region14: #{upsample_forward.3} parent=11 // pred_check_branch
        %144 = sbr.rel (%p142) target = $region16
      $region15: #{upsample_forward.3} parent=11 // pred_region
        %p145 = scmp.lt.s32.totalorder %s19, 0
        %s146 = scalar_select %p145, %s19, 0
        %s147 = smul.addr %s146, 4
        %s148 = scalar_lea.vmem %s1, %s147
      $region16: #{upsample_forward.3} parent=11 // pred_fallthru
        _
      // Predicated region
      $region17: #{upsample_forward.3} parent=11 // pred_check
        %p149 = pneg %p99
      $region18: #{upsample_forward.3} parent=11 // pred_check_branch
        %151 = sbr.rel (%p149) target = $region20
      $region19: #{upsample_forward.3} parent=11 // pred_region
        %p152 = scmp.lt.s32.totalorder %s19, 0
        %s153 = scalar_select %p152, %s19, 0
        %s154 = scalar_lea.vmem %s2, %s153
      $region20: #{upsample_forward.3} parent=11 // pred_fallthru
        _
    $region12: #{upsample_forward.3} parent=5 // pred_fallthru
      _
    %p155 = scmp.lt.s32.totalorder %s9, 2
    // Predicated region
    $region21: #{upsample_forward.3} parent=5 // pred_check
      %p156 = pneg %p155
    $region22: #{upsample_forward.3} parent=5 // pred_check_branch
      %158 = sbr.rel (%p156) target = $region24
    $region23: #{upsample_forward.3} parent=5 // pred_region
      // Predicated region
      $region25: #{upsample_forward.3} parent=23 // pred_check
        %p159 = pneg %p41
      $region26: #{upsample_forward.3} parent=23 // pred_check_branch
        %161 = sbr.rel (%p159) target = $region28
      $region27: #{upsample_forward.3} parent=23 // pred_region
        %s162 = smul.u32 38, %s16
        %p163 = scmp.lt.s32.totalorder %s162, 75
        %s164 = scalar_select %p163, %s162, 75
        %s165 = smul.addr %s164, 3
        %s166 = smul.addr %s165, 4
        %s167 = scalar_lea.vmem %s0, %s166
        %s168 = smul.u32 38, %s16
      $region28: #{upsample_forward.3} parent=23 // pred_fallthru
        _
    $region24: #{upsample_forward.3} parent=5 // pred_fallthru
      _
    %p169 = scmp.le.s32.totalorder 1, %s9
    %p170 = scmp.lt.s32.totalorder %s9, 3
    %p171 = pnand %p169, %p170
    %p172 = pneg %p171
    // Predicated region
    $region29: #{upsample_forward.3} parent=5 // pred_check
      _
    $region30: #{upsample_forward.3} parent=5 // pred_check_branch
      %174 = sbr.rel (%p171) target = $region32
    $region31: #{upsample_forward.3} parent=5 // pred_region
      %s175 = ssub.s32 %s9, 1
      %s176 = smul.u32 38, %s18
      %p177 = scmp.lt.s32.totalorder %s176, 75
      %s178 = scalar_select %p177, %s176, 75
      %s179 = smul.addr %s178, 3
      %s180 = smul.addr %s179, 4
      %s181 = scalar_lea.vmem %s0, %s180
      %p182 = pneg %p47
      %p183 = pneg %p44
      %p184 = scmp.lt.s32.totalorder %s19, 0
      %s185 = scalar_select %p184, %s19, 0
      %s186 = smul.addr %s185, 4
      %s187 = scalar_lea.vmem %s1, %s186
      %p188 = pneg %p73
      %p189 = pneg %p70
      %p190 = scmp.lt.s32.totalorder %s19, 0
      %s191 = scalar_select %p190, %s19, 0
      %s192 = scalar_lea.vmem %s2, %s191
      %p193 = pneg %p99
      %p194 = pneg %p96
      %p195 = pneg %p127
      %p196 = pneg %p124
      %s197 = smul.u32 38, %s18
      %p198 = scmp.lt.s32.totalorder %s197, 75
      %s199 = scalar_select %p198, %s197, 75
      %p200 = scmp.lt.s32.totalorder %s19, 0
      %s201 = scalar_select %p200, %s19, 0
      %s202 = sadd.s32 %s201, %s199
      %s203 = smul.addr %s202, 4
      %s204 = scalar_lea.vmem %s3, %s203
      %s205 = smul.u32 38, %s18
      %p206 = scmp.lt.s32.totalorder %s205, 75
      %s207 = scalar_select %p206, %s205, 75
      %s208 = smul.addr %s207, 3
      %s209 = smul.addr %s208, 4
      %s210 = scalar_lea.vmem %s0, %s209
      %s211 = smul.u32 38, %s18
      %p212 = scmp.lt.s32.totalorder %s19, 0
      %s213 = scalar_select %p212, %s19, 0
      %s214 = smul.addr %s213, 4
      %s215 = scalar_lea.vmem %s1, %s214
      %p216 = scmp.lt.s32.totalorder %s19, 0
      %s217 = scalar_select %p216, %s19, 0
      %s218 = scalar_lea.vmem %s2, %s217
      %s219 = smul.u32 38, %s18
      %p220 = scmp.lt.s32.totalorder %s219, 75
      %s221 = scalar_select %p220, %s219, 75
      %p222 = scmp.lt.s32.totalorder %s19, 0
      %s223 = scalar_select %p222, %s19, 0
      %s224 = sadd.s32 %s223, %s221
      %s225 = smul.addr %s224, 4
      %s226 = scalar_lea.vmem %s3, %s225
      %s227 = smul.u32 38, %s18
      %v229 = vld [vmem:[%s210] sm:$0xff]
      %v230 = vld [vmem:[%s210 + $0x8] sm:$0xf]
      %v231 = vld [vmem:[%s210 + $0xc] sm:$0xff]
      %v232 = vld [vmem:[%s210 + $0x14] sm:$0xf]
      %v233 = vld [vmem:[%s210 + $0x18] sm:$0xff]
      %v234 = vld [vmem:[%s210 + $0x20] sm:$0xf]
      %v235 = vld [vmem:[%s210 + $0x24] sm:$0xff]
      %v236 = vld [vmem:[%s210 + $0x2c] sm:$0xf]
      %v237 = vld [vmem:[%s210 + $0x30] sm:$0xff]
      %v238 = vld [vmem:[%s210 + $0x38] sm:$0xf]
      %v239 = vld [vmem:[%s210 + $0x3c] sm:$0xff]
      %v240 = vld [vmem:[%s210 + $0x44] sm:$0xf]
      %v241 = vld [vmem:[%s210 + $0x48] sm:$0xff]
      %v242 = vld [vmem:[%s210 + $0x50] sm:$0xf]
      %v243 = vld [vmem:[%s210 + $0x54] sm:$0xff]
      %v244 = vld [vmem:[%s210 + $0x5c] sm:$0xf]
      %v245 = vld [vmem:[%s210 + $0x60] sm:$0xff]
      %v246 = vld [vmem:[%s210 + $0x68] sm:$0xf]
      %v247 = vld [vmem:[%s210 + $0x6c] sm:$0xff]
      %v248 = vld [vmem:[%s210 + $0x74] sm:$0xf]
      %v249 = vld [vmem:[%s210 + $0x78] sm:$0xff]
      %v250 = vld [vmem:[%s210 + $0x80] sm:$0xf]
      %v251 = vld [vmem:[%s210 + $0x84] sm:$0xff]
      %v252 = vld [vmem:[%s210 + $0x8c] sm:$0xf]
      %v253 = vld [vmem:[%s210 + $0x90] sm:$0xff]
      %v254 = vld [vmem:[%s210 + $0x98] sm:$0xf]
      %v255 = vld [vmem:[%s210 + $0x9c] sm:$0xff]
      %v256 = vld [vmem:[%s210 + $0xa4] sm:$0xf]
      %v257 = vld [vmem:[%s210 + $0xa8] sm:$0xff]
      %v258 = vld [vmem:[%s210 + $0xb0] sm:$0xf]
      %v259 = vld [vmem:[%s210 + $0xb4] sm:$0xff]
      %v260 = vld [vmem:[%s210 + $0xbc] sm:$0xf]
      %v261 = vld [vmem:[%s210 + $0xc0] sm:$0xff]
      %v262 = vld [vmem:[%s210 + $0xc8] sm:$0xf]
      %v263 = vld [vmem:[%s210 + $0xcc] sm:$0xff]
      %v264 = vld [vmem:[%s210 + $0xd4] sm:$0xf]
      %v265 = vld [vmem:[%s210 + $0xd8] sm:$0xff]
      %v266 = vld [vmem:[%s210 + $0xe0] sm:$0xf]
      %v267 = vld [vmem:[%s210 + $0xe4] sm:$0xff]
      %v268 = vld [vmem:[%s210 + $0xec] sm:$0xf]
      %v269 = vld [vmem:[%s210 + $0xf0] sm:$0xff]
      %v270 = vld [vmem:[%s210 + $0xf8] sm:$0xf]
      %v271 = vld [vmem:[%s210 + $0xfc] sm:$0xff]
      %v272 = vld [vmem:[%s210 + $0x104] sm:$0xf]
      %v273 = vld [vmem:[%s210 + $0x108] sm:$0xff]
      %v274 = vld [vmem:[%s210 + $0x110] sm:$0xf]
      %v275 = vld [vmem:[%s210 + $0x114] sm:$0xff]
      %v276 = vld [vmem:[%s210 + $0x11c] sm:$0xf]
      %v277 = vld [vmem:[%s210 + $0x120] sm:$0xff]
      %v278 = vld [vmem:[%s210 + $0x128] sm:$0xf]
      %v279 = vld [vmem:[%s210 + $0x12c] sm:$0xff]
      %v280 = vld [vmem:[%s210 + $0x134] sm:$0xf]
      %v281 = vld [vmem:[%s210 + $0x138] sm:$0xff]
      %v282 = vld [vmem:[%s210 + $0x140] sm:$0xf]
      %v283 = vld [vmem:[%s210 + $0x144] sm:$0xff]
      %v284 = vld [vmem:[%s210 + $0x14c] sm:$0xf]
      %v285 = vld [vmem:[%s210 + $0x150] sm:$0xff]
      %v286 = vld [vmem:[%s210 + $0x158] sm:$0xf]
      %v287 = vld [vmem:[%s210 + $0x15c] sm:$0xff]
      %v288 = vld [vmem:[%s210 + $0x164] sm:$0xf]
      %v289 = vld [vmem:[%s210 + $0x168] sm:$0xff]
      %v290 = vld [vmem:[%s210 + $0x170] sm:$0xf]
      %v291 = vld [vmem:[%s210 + $0x174] sm:$0xff]
      %v292 = vld [vmem:[%s210 + $0x17c] sm:$0xf]
      %v293 = vld [vmem:[%s210 + $0x180] sm:$0xff]
      %v294 = vld [vmem:[%s210 + $0x188] sm:$0xf]
      %v295 = vld [vmem:[%s210 + $0x18c] sm:$0xff]
      %v296 = vld [vmem:[%s210 + $0x194] sm:$0xf]
      %v297 = vld [vmem:[%s210 + $0x198] sm:$0xff]
      %v298 = vld [vmem:[%s210 + $0x1a0] sm:$0xf]
      %v299 = vld [vmem:[%s210 + $0x1a4] sm:$0xff]
      %v300 = vld [vmem:[%s210 + $0x1ac] sm:$0xf]
      %v301 = vld [vmem:[%s210 + $0x1b0] sm:$0xff]
      %v302 = vld [vmem:[%s210 + $0x1b8] sm:$0xf]
      %v303 = vld [vmem:[%s210 + $0x1bc] sm:$0xff]
      %v304 = vld [vmem:[%s210 + $0x1c4] sm:$0xf]
      %v305 = vld [vmem:[%s215] sm:$0xf]
      %v306 = vld [vmem:[%s215 + $0x4] sm:$0xf]
      %v307 = vld [vmem:[%s215 + $0x8] sm:$0xf]
      %v308 = vld [vmem:[%s215 + $0xc] sm:$0xf]
      %v309 = vld [vmem:[%s215 + $0x10] sm:$0xf]
      %v310 = vld [vmem:[%s215 + $0x14] sm:$0xf]
      %v311 = vld [vmem:[%s215 + $0x18] sm:$0xf]
      %v312 = vld [vmem:[%s215 + $0x1c] sm:$0xf]
      %v313 = vld [vmem:[%s215 + $0x20] sm:$0xf]
      %v314 = vld [vmem:[%s215 + $0x24] sm:$0xf]
      %v315 = vld [vmem:[%s215 + $0x28] sm:$0xf]
      %v316 = vld [vmem:[%s215 + $0x2c] sm:$0xf]
      %v317 = vld [vmem:[%s215 + $0x30] sm:$0xf]
      %v318 = vld [vmem:[%s215 + $0x34] sm:$0xf]
      %v319 = vld [vmem:[%s215 + $0x38] sm:$0xf]
      %v320 = vld [vmem:[%s215 + $0x3c] sm:$0xf]
      %v321 = vld [vmem:[%s215 + $0x40] sm:$0xf]
      %v322 = vld [vmem:[%s215 + $0x44] sm:$0xf]
      %v323 = vld [vmem:[%s215 + $0x48] sm:$0xf]
      %v324 = vld [vmem:[%s215 + $0x4c] sm:$0xf]
      %v325 = vld [vmem:[%s215 + $0x50] sm:$0xf]
      %v326 = vld [vmem:[%s215 + $0x54] sm:$0xf]
      %v327 = vld [vmem:[%s215 + $0x58] sm:$0xf]
      %v328 = vld [vmem:[%s215 + $0x5c] sm:$0xf]
      %v329 = vld [vmem:[%s215 + $0x60] sm:$0xf]
      %v330 = vld [vmem:[%s215 + $0x64] sm:$0xf]
      %v331 = vld [vmem:[%s215 + $0x68] sm:$0xf]
      %v332 = vld [vmem:[%s215 + $0x6c] sm:$0xf]
      %v333 = vld [vmem:[%s215 + $0x70] sm:$0xf]
      %v334 = vld [vmem:[%s215 + $0x74] sm:$0xf]
      %v335 = vld [vmem:[%s215 + $0x78] sm:$0xf]
      %v336 = vld [vmem:[%s215 + $0x7c] sm:$0xf]
      %v337 = vld [vmem:[%s215 + $0x80] sm:$0xf]
      %v338 = vld [vmem:[%s215 + $0x84] sm:$0xf]
      %v339 = vld [vmem:[%s215 + $0x88] sm:$0xf]
      %v340 = vld [vmem:[%s215 + $0x8c] sm:$0xf]
      %v341 = vld [vmem:[%s218] sm:$0x1]
      %v343 = vperm.slane %v341, 0
      %v421 = vunpack.c.l.b16 %v229
      %v422 = vunpack.c.h.b16 %v229
      %v423 = vunpack.c.l.b16 %v230
      %v424 = vunpack.c.l.b16 %v231
      %v425 = vunpack.c.h.b16 %v231
      %v426 = vunpack.c.l.b16 %v232
      %v427 = vunpack.c.l.b16 %v233
      %v428 = vunpack.c.h.b16 %v233
      %v429 = vunpack.c.l.b16 %v234
      %v430 = vunpack.c.l.b16 %v235
      %v431 = vunpack.c.h.b16 %v235
      %v432 = vunpack.c.l.b16 %v236
      %v433 = vunpack.c.l.b16 %v237
      %v434 = vunpack.c.h.b16 %v237
      %v435 = vunpack.c.l.b16 %v238
      %v436 = vunpack.c.l.b16 %v239
      %v437 = vunpack.c.h.b16 %v239
      %v438 = vunpack.c.l.b16 %v240
      %v439 = vunpack.c.l.b16 %v241
      %v440 = vunpack.c.h.b16 %v241
      %v441 = vunpack.c.l.b16 %v242
      %v442 = vunpack.c.l.b16 %v243
      %v443 = vunpack.c.h.b16 %v243
      %v444 = vunpack.c.l.b16 %v244
      %v445 = vunpack.c.l.b16 %v245
      %v446 = vunpack.c.h.b16 %v245
      %v447 = vunpack.c.l.b16 %v246
      %v448 = vunpack.c.l.b16 %v247
      %v449 = vunpack.c.h.b16 %v247
      %v450 = vunpack.c.l.b16 %v248
      %v451 = vunpack.c.l.b16 %v249
      %v452 = vunpack.c.h.b16 %v249
      %v453 = vunpack.c.l.b16 %v250
      %v454 = vunpack.c.l.b16 %v251
      %v455 = vunpack.c.h.b16 %v251
      %v456 = vunpack.c.l.b16 %v252
      %v457 = vunpack.c.l.b16 %v253
      %v458 = vunpack.c.h.b16 %v253
      %v459 = vunpack.c.l.b16 %v254
      %v460 = vunpack.c.l.b16 %v255
      %v461 = vunpack.c.h.b16 %v255
      %v462 = vunpack.c.l.b16 %v256
      %v463 = vunpack.c.l.b16 %v257
      %v464 = vunpack.c.h.b16 %v257
      %v465 = vunpack.c.l.b16 %v258
      %v466 = vunpack.c.l.b16 %v259
      %v467 = vunpack.c.h.b16 %v259
      %v468 = vunpack.c.l.b16 %v260
      %v469 = vunpack.c.l.b16 %v261
      %v470 = vunpack.c.h.b16 %v261
      %v471 = vunpack.c.l.b16 %v262
      %v472 = vunpack.c.l.b16 %v263
      %v473 = vunpack.c.h.b16 %v263
      %v474 = vunpack.c.l.b16 %v264
      %v475 = vunpack.c.l.b16 %v265
      %v476 = vunpack.c.h.b16 %v265
      %v477 = vunpack.c.l.b16 %v266
      %v478 = vunpack.c.l.b16 %v267
      %v479 = vunpack.c.h.b16 %v267
      %v480 = vunpack.c.l.b16 %v268
      %v481 = vunpack.c.l.b16 %v269
      %v482 = vunpack.c.h.b16 %v269
      %v483 = vunpack.c.l.b16 %v270
      %v484 = vunpack.c.l.b16 %v271
      %v485 = vunpack.c.h.b16 %v271
      %v486 = vunpack.c.l.b16 %v272
      %v487 = vunpack.c.l.b16 %v273
      %v488 = vunpack.c.h.b16 %v273
      %v489 = vunpack.c.l.b16 %v274
      %v490 = vunpack.c.l.b16 %v275
      %v491 = vunpack.c.h.b16 %v275
      %v492 = vunpack.c.l.b16 %v276
      %v493 = vunpack.c.l.b16 %v277
      %v494 = vunpack.c.h.b16 %v277
      %v495 = vunpack.c.l.b16 %v278
      %v496 = vunpack.c.l.b16 %v279
      %v497 = vunpack.c.h.b16 %v279
      %v498 = vunpack.c.l.b16 %v280
      %v499 = vunpack.c.l.b16 %v281
      %v500 = vunpack.c.h.b16 %v281
      %v501 = vunpack.c.l.b16 %v282
      %v502 = vunpack.c.l.b16 %v283
      %v503 = vunpack.c.h.b16 %v283
      %v504 = vunpack.c.l.b16 %v284
      %v505 = vunpack.c.l.b16 %v285
      %v506 = vunpack.c.h.b16 %v285
      %v507 = vunpack.c.l.b16 %v286
      %v508 = vunpack.c.l.b16 %v287
      %v509 = vunpack.c.h.b16 %v287
      %v510 = vunpack.c.l.b16 %v288
      %v511 = vunpack.c.l.b16 %v289
      %v512 = vunpack.c.h.b16 %v289
      %v513 = vunpack.c.l.b16 %v290
      %v514 = vunpack.c.l.b16 %v291
      %v515 = vunpack.c.h.b16 %v291
      %v516 = vunpack.c.l.b16 %v292
      %v517 = vunpack.c.l.b16 %v293
      %v518 = vunpack.c.h.b16 %v293
      %v519 = vunpack.c.l.b16 %v294
      %v520 = vunpack.c.l.b16 %v295
      %v521 = vunpack.c.h.b16 %v295
      %v522 = vunpack.c.l.b16 %v296
      %v523 = vunpack.c.l.b16 %v297
      %v524 = vunpack.c.h.b16 %v297
      %v525 = vunpack.c.l.b16 %v298
      %v526 = vunpack.c.l.b16 %v299
      %v527 = vunpack.c.h.b16 %v299
      %v528 = vunpack.c.l.b16 %v300
      %v529 = vunpack.c.l.b16 %v301
      %v530 = vunpack.c.h.b16 %v301
      %v531 = vunpack.c.l.b16 %v302
      %v532 = vunpack.c.l.b16 %v303
      %v533 = vunpack.c.h.b16 %v303
      %v534 = vunpack.c.l.b16 %v304
      %v535 = vpack.c.b16 %v424, %v421
      %v536 = vpack.c.b16 %v425, %v422
      %v537 = vpack.c.b16 %v426, %v423
      %v538 = vpack.c.b16 %v430, %v427
      %v539 = vpack.c.b16 %v431, %v428
      %v540 = vpack.c.b16 %v432, %v429
      %v541 = vpack.c.b16 %v436, %v433
      %v542 = vpack.c.b16 %v437, %v434
      %v543 = vpack.c.b16 %v438, %v435
      %v544 = vpack.c.b16 %v442, %v439
      %v545 = vpack.c.b16 %v443, %v440
      %v546 = vpack.c.b16 %v444, %v441
      %v547 = vpack.c.b16 %v448, %v445
      %v548 = vpack.c.b16 %v449, %v446
      %v549 = vpack.c.b16 %v450, %v447
      %v550 = vpack.c.b16 %v454, %v451
      %v551 = vpack.c.b16 %v455, %v452
      %v552 = vpack.c.b16 %v456, %v453
      %v553 = vpack.c.b16 %v460, %v457
      %v554 = vpack.c.b16 %v461, %v458
      %v555 = vpack.c.b16 %v462, %v459
      %v556 = vpack.c.b16 %v466, %v463
      %v557 = vpack.c.b16 %v467, %v464
      %v558 = vpack.c.b16 %v468, %v465
      %v559 = vpack.c.b16 %v472, %v469
      %v560 = vpack.c.b16 %v473, %v470
      %v561 = vpack.c.b16 %v474, %v471
      %v562 = vpack.c.b16 %v478, %v475
      %v563 = vpack.c.b16 %v479, %v476
      %v564 = vpack.c.b16 %v480, %v477
      %v565 = vpack.c.b16 %v484, %v481
      %v566 = vpack.c.b16 %v485, %v482
      %v567 = vpack.c.b16 %v486, %v483
      %v568 = vpack.c.b16 %v490, %v487
      %v569 = vpack.c.b16 %v491, %v488
      %v570 = vpack.c.b16 %v492, %v489
      %v571 = vpack.c.b16 %v496, %v493
      %v572 = vpack.c.b16 %v497, %v494
      %v573 = vpack.c.b16 %v498, %v495
      %v574 = vpack.c.b16 %v502, %v499
      %v575 = vpack.c.b16 %v503, %v500
      %v576 = vpack.c.b16 %v504, %v501
      %v577 = vpack.c.b16 %v508, %v505
      %v578 = vpack.c.b16 %v509, %v506
      %v579 = vpack.c.b16 %v510, %v507
      %v580 = vpack.c.b16 %v514, %v511
      %v581 = vpack.c.b16 %v515, %v512
      %v582 = vpack.c.b16 %v516, %v513
      %v583 = vpack.c.b16 %v520, %v517
      %v584 = vpack.c.b16 %v521, %v518
      %v585 = vpack.c.b16 %v522, %v519
      %v586 = vpack.c.b16 %v526, %v523
      %v587 = vpack.c.b16 %v527, %v524
      %v588 = vpack.c.b16 %v528, %v525
      %v589 = vpack.c.b16 %v532, %v529
      %v590 = vpack.c.b16 %v533, %v530
      %v591 = vpack.c.b16 %v534, %v531
      %v666 = vunpack.c.l.b16 %v305
      %v667 = vunpack.c.l.b16 %v306
      %v668 = vunpack.c.l.b16 %v307
      %v669 = vunpack.c.l.b16 %v308
      %v670 = vunpack.c.l.b16 %v309
      %v671 = vunpack.c.l.b16 %v310
      %v672 = vunpack.c.l.b16 %v311
      %v673 = vunpack.c.l.b16 %v312
      %v674 = vunpack.c.l.b16 %v313
      %v675 = vunpack.c.l.b16 %v314
      %v676 = vunpack.c.l.b16 %v315
      %v677 = vunpack.c.l.b16 %v316
      %v678 = vunpack.c.l.b16 %v317
      %v679 = vunpack.c.l.b16 %v318
      %v680 = vunpack.c.l.b16 %v319
      %v681 = vunpack.c.l.b16 %v320
      %v682 = vunpack.c.l.b16 %v321
      %v683 = vunpack.c.l.b16 %v322
      %v684 = vunpack.c.l.b16 %v323
      %v685 = vunpack.c.l.b16 %v324
      %v686 = vunpack.c.l.b16 %v325
      %v687 = vunpack.c.l.b16 %v326
      %v688 = vunpack.c.l.b16 %v327
      %v689 = vunpack.c.l.b16 %v328
      %v690 = vunpack.c.l.b16 %v329
      %v691 = vunpack.c.l.b16 %v330
      %v692 = vunpack.c.l.b16 %v331
      %v693 = vunpack.c.l.b16 %v332
      %v694 = vunpack.c.l.b16 %v333
      %v695 = vunpack.c.l.b16 %v334
      %v696 = vunpack.c.l.b16 %v335
      %v697 = vunpack.c.l.b16 %v336
      %v698 = vunpack.c.l.b16 %v337
      %v699 = vunpack.c.l.b16 %v338
      %v700 = vunpack.c.l.b16 %v339
      %v701 = vunpack.c.l.b16 %v340
      %v702 = vpack.c.b16 %v667, %v666
      %v703 = vpack.c.b16 %v669, %v668
      %v704 = vpack.c.b16 %v671, %v670
      %v705 = vpack.c.b16 %v673, %v672
      %v706 = vpack.c.b16 %v675, %v674
      %v707 = vpack.c.b16 %v677, %v676
      %v708 = vpack.c.b16 %v679, %v678
      %v709 = vpack.c.b16 %v681, %v680
      %v710 = vpack.c.b16 %v683, %v682
      %v711 = vpack.c.b16 %v685, %v684
      %v712 = vpack.c.b16 %v687, %v686
      %v713 = vpack.c.b16 %v689, %v688
      %v714 = vpack.c.b16 %v691, %v690
      %v715 = vpack.c.b16 %v693, %v692
      %v716 = vpack.c.b16 %v695, %v694
      %v717 = vpack.c.b16 %v697, %v696
      %v718 = vpack.c.b16 %v699, %v698
      %v719 = vpack.c.b16 %v701, %v700
      %vm738 = vcmask 261120
      %v740 = vsel %vm738, %v537, 0
      %v743 = vsel %vm738, %v540, 0
      %v746 = vsel %vm738, %v543, 0
      %v749 = vsel %vm738, %v546, 0
      %v752 = vsel %vm738, %v549, 0
      %v755 = vsel %vm738, %v552, 0
      %v758 = vsel %vm738, %v555, 0
      %v761 = vsel %vm738, %v558, 0
      %v764 = vsel %vm738, %v561, 0
      %v767 = vsel %vm738, %v564, 0
      %v770 = vsel %vm738, %v567, 0
      %v773 = vsel %vm738, %v570, 0
      %v776 = vsel %vm738, %v573, 0
      %v779 = vsel %vm738, %v576, 0
      %v782 = vsel %vm738, %v579, 0
      %v785 = vsel %vm738, %v582, 0
      %v788 = vsel %vm738, %v585, 0
      %v791 = vsel %vm738, %v588, 0
      %v794 = vsel %vm738, %v591, 0
      %796 = vmatpush.bf16.msra.mxu0 %v709
      %797 = vmatpush.bf16.msra.mxu0 %v708
      %798 = vmatpush.bf16.msra.mxu0 %v707
      %799 = vmatpush.bf16.msra.mxu0 %v706
      %800 = vmatpush.bf16.msra.mxu0 %v705
      %801 = vmatpush.bf16.msra.mxu0 %v704
      %802 = vmatpush.bf16.msra.mxu0 %v703
      %803 = vmatpush.bf16.msra.mxu0 %v702
      %804 = vmatmul.bf16.gmra.mxu0 %v535
      %v805 = vpop.f32.mrf.mxu0
      %v806 = vadd.f32 %v343, %v805
      %v807 = vpop.f32.mrf.mxu0
      %v808 = vadd.f32 %v343, %v807
      %809 = vmatmul.bf16.gmra.mxu0 %v538
      %v810 = vpop.f32.mrf.mxu0
      %v811 = vadd.f32 %v343, %v810
      %v812 = vpop.f32.mrf.mxu0
      %v813 = vadd.f32 %v343, %v812
      %814 = vmatmul.bf16.gmra.mxu0 %v541
      %v815 = vpop.f32.mrf.mxu0
      %v816 = vadd.f32 %v343, %v815
      %v817 = vpop.f32.mrf.mxu0
      %v818 = vadd.f32 %v343, %v817
      %819 = vmatmul.bf16.gmra.mxu0 %v544
      %v820 = vpop.f32.mrf.mxu0
      %v821 = vadd.f32 %v343, %v820
      %v822 = vpop.f32.mrf.mxu0
      %v823 = vadd.f32 %v343, %v822
      %824 = vmatmul.bf16.gmra.mxu0 %v547
      %v825 = vpop.f32.mrf.mxu0
      %v826 = vadd.f32 %v343, %v825
      %v827 = vpop.f32.mrf.mxu0
      %v828 = vadd.f32 %v343, %v827
      %829 = vmatmul.bf16.gmra.mxu0 %v550
      %v830 = vpop.f32.mrf.mxu0
      %v831 = vadd.f32 %v343, %v830
      %v832 = vpop.f32.mrf.mxu0
      %v833 = vadd.f32 %v343, %v832
      %834 = vmatmul.bf16.gmra.mxu0 %v553
      %v835 = vpop.f32.mrf.mxu0
      %v836 = vadd.f32 %v343, %v835
      %v837 = vpop.f32.mrf.mxu0
      %v838 = vadd.f32 %v343, %v837
      %839 = vmatmul.bf16.gmra.mxu0 %v556
      %v840 = vpop.f32.mrf.mxu0
      %v841 = vadd.f32 %v343, %v840
      %v842 = vpop.f32.mrf.mxu0
      %v843 = vadd.f32 %v343, %v842
      %844 = vmatmul.bf16.gmra.mxu0 %v559
      %v845 = vpop.f32.mrf.mxu0
      %v846 = vadd.f32 %v343, %v845
      %v847 = vpop.f32.mrf.mxu0
      %v848 = vadd.f32 %v343, %v847
      %849 = vmatmul.bf16.gmra.mxu0 %v562
      %v850 = vpop.f32.mrf.mxu0
      %v851 = vadd.f32 %v343, %v850
      %v852 = vpop.f32.mrf.mxu0
      %v853 = vadd.f32 %v343, %v852
      %854 = vmatmul.bf16.gmra.mxu0 %v565
      %v855 = vpop.f32.mrf.mxu0
      %v856 = vadd.f32 %v343, %v855
      %v857 = vpop.f32.mrf.mxu0
      %v858 = vadd.f32 %v343, %v857
      %859 = vmatmul.bf16.gmra.mxu0 %v568
      %v860 = vpop.f32.mrf.mxu0
      %v861 = vadd.f32 %v343, %v860
      %v862 = vpop.f32.mrf.mxu0
      %v863 = vadd.f32 %v343, %v862
      %864 = vmatmul.bf16.gmra.mxu0 %v571
      %v865 = vpop.f32.mrf.mxu0
      %v866 = vadd.f32 %v343, %v865
      %v867 = vpop.f32.mrf.mxu0
      %v868 = vadd.f32 %v343, %v867
      %869 = vmatmul.bf16.gmra.mxu0 %v574
      %v870 = vpop.f32.mrf.mxu0
      %v871 = vadd.f32 %v343, %v870
      %v872 = vpop.f32.mrf.mxu0
      %v873 = vadd.f32 %v343, %v872
      %874 = vmatmul.bf16.gmra.mxu0 %v577
      %v875 = vpop.f32.mrf.mxu0
      %v876 = vadd.f32 %v343, %v875
      %v877 = vpop.f32.mrf.mxu0
      %v878 = vadd.f32 %v343, %v877
      %879 = vmatmul.bf16.gmra.mxu0 %v580
      %v880 = vpop.f32.mrf.mxu0
      %v881 = vadd.f32 %v343, %v880
      %v882 = vpop.f32.mrf.mxu0
      %v883 = vadd.f32 %v343, %v882
      %884 = vmatmul.bf16.gmra.mxu0 %v583
      %v885 = vpop.f32.mrf.mxu0
      %v886 = vadd.f32 %v343, %v885
      %v887 = vpop.f32.mrf.mxu0
      %v888 = vadd.f32 %v343, %v887
      %889 = vmatmul.bf16.gmra.mxu0 %v586
      %v890 = vpop.f32.mrf.mxu0
      %v891 = vadd.f32 %v343, %v890
      %v892 = vpop.f32.mrf.mxu0
      %v893 = vadd.f32 %v343, %v892
      %894 = vmatmul.bf16.gmra.mxu0 %v589
      %v895 = vpop.f32.mrf.mxu0
      %v896 = vadd.f32 %v343, %v895
      %v897 = vpop.f32.mrf.mxu0
      %v898 = vadd.f32 %v343, %v897
      %899 = vdwg.mxu0
      %900 = vmatpush.bf16.msra.mxu0 %v717
      %901 = vmatpush.bf16.msra.mxu0 %v716
      %902 = vmatpush.bf16.msra.mxu0 %v715
      %903 = vmatpush.bf16.msra.mxu0 %v714
      %904 = vmatpush.bf16.msra.mxu0 %v713
      %905 = vmatpush.bf16.msra.mxu0 %v712
      %906 = vmatpush.bf16.msra.mxu0 %v711
      %907 = vmatpush.bf16.msra.mxu0 %v710
      %908 = vmatmul.bf16.gmra.mxu0 %v536
      %v909 = vpop.f32.mrf.mxu0
      %v910 = vadd.f32 %v806, %v909
      %v911 = vpop.f32.mrf.mxu0
      %v912 = vadd.f32 %v808, %v911
      %913 = vmatmul.bf16.gmra.mxu0 %v539
      %v914 = vpop.f32.mrf.mxu0
      %v915 = vadd.f32 %v811, %v914
      %v916 = vpop.f32.mrf.mxu0
      %v917 = vadd.f32 %v813, %v916
      %918 = vmatmul.bf16.gmra.mxu0 %v542
      %v919 = vpop.f32.mrf.mxu0
      %v920 = vadd.f32 %v816, %v919
      %v921 = vpop.f32.mrf.mxu0
      %v922 = vadd.f32 %v818, %v921
      %923 = vmatmul.bf16.gmra.mxu0 %v545
      %v924 = vpop.f32.mrf.mxu0
      %v925 = vadd.f32 %v821, %v924
      %v926 = vpop.f32.mrf.mxu0
      %v927 = vadd.f32 %v823, %v926
      %928 = vmatmul.bf16.gmra.mxu0 %v548
      %v929 = vpop.f32.mrf.mxu0
      %v930 = vadd.f32 %v826, %v929
      %v931 = vpop.f32.mrf.mxu0
      %v932 = vadd.f32 %v828, %v931
      %933 = vmatmul.bf16.gmra.mxu0 %v551
      %v934 = vpop.f32.mrf.mxu0
      %v935 = vadd.f32 %v831, %v934
      %v936 = vpop.f32.mrf.mxu0
      %v937 = vadd.f32 %v833, %v936
      %938 = vmatmul.bf16.gmra.mxu0 %v554
      %v939 = vpop.f32.mrf.mxu0
      %v940 = vadd.f32 %v836, %v939
      %v941 = vpop.f32.mrf.mxu0
      %v942 = vadd.f32 %v838, %v941
      %943 = vmatmul.bf16.gmra.mxu0 %v557
      %v944 = vpop.f32.mrf.mxu0
      %v945 = vadd.f32 %v841, %v944
      %v946 = vpop.f32.mrf.mxu0
      %v947 = vadd.f32 %v843, %v946
      %948 = vmatmul.bf16.gmra.mxu0 %v560
      %v949 = vpop.f32.mrf.mxu0
      %v950 = vadd.f32 %v846, %v949
      %v951 = vpop.f32.mrf.mxu0
      %v952 = vadd.f32 %v848, %v951
      %953 = vmatmul.bf16.gmra.mxu0 %v563
      %v954 = vpop.f32.mrf.mxu0
      %v955 = vadd.f32 %v851, %v954
      %v956 = vpop.f32.mrf.mxu0
      %v957 = vadd.f32 %v853, %v956
      %958 = vmatmul.bf16.gmra.mxu0 %v566
      %v959 = vpop.f32.mrf.mxu0
      %v960 = vadd.f32 %v856, %v959
      %v961 = vpop.f32.mrf.mxu0
      %v962 = vadd.f32 %v858, %v961
      %963 = vmatmul.bf16.gmra.mxu0 %v569
      %v964 = vpop.f32.mrf.mxu0
      %v965 = vadd.f32 %v861, %v964
      %v966 = vpop.f32.mrf.mxu0
      %v967 = vadd.f32 %v863, %v966
      %968 = vmatmul.bf16.gmra.mxu0 %v572
      %v969 = vpop.f32.mrf.mxu0
      %v970 = vadd.f32 %v866, %v969
      %v971 = vpop.f32.mrf.mxu0
      %v972 = vadd.f32 %v868, %v971
      %973 = vmatmul.bf16.gmra.mxu0 %v575
      %v974 = vpop.f32.mrf.mxu0
      %v975 = vadd.f32 %v871, %v974
      %v976 = vpop.f32.mrf.mxu0
      %v977 = vadd.f32 %v873, %v976
      %978 = vmatmul.bf16.gmra.mxu0 %v578
      %v979 = vpop.f32.mrf.mxu0
      %v980 = vadd.f32 %v876, %v979
      %v981 = vpop.f32.mrf.mxu0
      %v982 = vadd.f32 %v878, %v981
      %983 = vmatmul.bf16.gmra.mxu0 %v581
      %v984 = vpop.f32.mrf.mxu0
      %v985 = vadd.f32 %v881, %v984
      %v986 = vpop.f32.mrf.mxu0
      %v987 = vadd.f32 %v883, %v986
      %988 = vmatmul.bf16.gmra.mxu0 %v584
      %v989 = vpop.f32.mrf.mxu0
      %v990 = vadd.f32 %v886, %v989
      %v991 = vpop.f32.mrf.mxu0
      %v992 = vadd.f32 %v888, %v991
      %993 = vmatmul.bf16.gmra.mxu0 %v587
      %v994 = vpop.f32.mrf.mxu0
      %v995 = vadd.f32 %v891, %v994
      %v996 = vpop.f32.mrf.mxu0
      %v997 = vadd.f32 %v893, %v996
      %998 = vmatmul.bf16.gmra.mxu0 %v590
      %v999 = vpop.f32.mrf.mxu0
      %v1000 = vadd.f32 %v896, %v999
      %v1001 = vpop.f32.mrf.mxu0
      %v1002 = vadd.f32 %v898, %v1001
      %1003 = vdwg.mxu0
      %1004 = vmatpush.bf16.msra.mxu0 0
      %1005 = vmatpush.bf16.msra.mxu0 0
      %1006 = vmatpush.bf16.msra.mxu0 0
      %1007 = vmatpush.bf16.msra.mxu0 0
      %1008 = vmatpush.bf16.msra.mxu0 0
      %1009 = vmatpush.bf16.msra.mxu0 0
      %1010 = vmatpush.bf16.msra.mxu0 %v719
      %1011 = vmatpush.bf16.msra.mxu0 %v718
      %1012 = vmatmul.bf16.gmra.mxu0 %v740
      %v1013 = vpop.f32.mrf.mxu0
      %v1014 = vadd.f32 %v910, %v1013
      %v1015 = vpop.f32.mrf.mxu0
      %v1016 = vadd.f32 %v912, %v1015
      %1017 = vmatmul.bf16.gmra.mxu0 %v743
      %v1018 = vpop.f32.mrf.mxu0
      %v1019 = vadd.f32 %v915, %v1018
      %v1020 = vpop.f32.mrf.mxu0
      %v1021 = vadd.f32 %v917, %v1020
      %1022 = vmatmul.bf16.gmra.mxu0 %v746
      %v1023 = vpop.f32.mrf.mxu0
      %v1024 = vadd.f32 %v920, %v1023
      %v1025 = vpop.f32.mrf.mxu0
      %v1026 = vadd.f32 %v922, %v1025
      %1027 = vmatmul.bf16.gmra.mxu0 %v749
      %v1028 = vpop.f32.mrf.mxu0
      %v1029 = vadd.f32 %v925, %v1028
      %v1030 = vpop.f32.mrf.mxu0
      %v1031 = vadd.f32 %v927, %v1030
      %1032 = vmatmul.bf16.gmra.mxu0 %v752
      %v1033 = vpop.f32.mrf.mxu0
      %v1034 = vadd.f32 %v930, %v1033
      %v1035 = vpop.f32.mrf.mxu0
      %v1036 = vadd.f32 %v932, %v1035
      %1037 = vmatmul.bf16.gmra.mxu0 %v755
      %v1038 = vpop.f32.mrf.mxu0
      %v1039 = vadd.f32 %v935, %v1038
      %v1040 = vpop.f32.mrf.mxu0
      %v1041 = vadd.f32 %v937, %v1040
      %1042 = vmatmul.bf16.gmra.mxu0 %v758
      %v1043 = vpop.f32.mrf.mxu0
      %v1044 = vadd.f32 %v940, %v1043
      %v1045 = vpop.f32.mrf.mxu0
      %v1046 = vadd.f32 %v942, %v1045
      %1047 = vmatmul.bf16.gmra.mxu0 %v761
      %v1048 = vpop.f32.mrf.mxu0
      %v1049 = vadd.f32 %v945, %v1048
      %v1050 = vpop.f32.mrf.mxu0
      %v1051 = vadd.f32 %v947, %v1050
      %1052 = vmatmul.bf16.gmra.mxu0 %v764
      %v1053 = vpop.f32.mrf.mxu0
      %v1054 = vadd.f32 %v950, %v1053
      %v1055 = vpop.f32.mrf.mxu0
      %v1056 = vadd.f32 %v952, %v1055
      %1057 = vmatmul.bf16.gmra.mxu0 %v767
      %v1058 = vpop.f32.mrf.mxu0
      %v1059 = vadd.f32 %v955, %v1058
      %v1060 = vpop.f32.mrf.mxu0
      %v1061 = vadd.f32 %v957, %v1060
      %1062 = vmatmul.bf16.gmra.mxu0 %v770
      %v1063 = vpop.f32.mrf.mxu0
      %v1064 = vadd.f32 %v960, %v1063
      %v1065 = vpop.f32.mrf.mxu0
      %v1066 = vadd.f32 %v962, %v1065
      %1067 = vmatmul.bf16.gmra.mxu0 %v773
      %v1068 = vpop.f32.mrf.mxu0
      %v1069 = vadd.f32 %v965, %v1068
      %v1070 = vpop.f32.mrf.mxu0
      %v1071 = vadd.f32 %v967, %v1070
      %1072 = vmatmul.bf16.gmra.mxu0 %v776
      %v1073 = vpop.f32.mrf.mxu0
      %v1074 = vadd.f32 %v970, %v1073
      %v1075 = vpop.f32.mrf.mxu0
      %v1076 = vadd.f32 %v972, %v1075
      %1077 = vmatmul.bf16.gmra.mxu0 %v779
      %v1078 = vpop.f32.mrf.mxu0
      %v1079 = vadd.f32 %v975, %v1078
      %v1080 = vpop.f32.mrf.mxu0
      %v1081 = vadd.f32 %v977, %v1080
      %1082 = vmatmul.bf16.gmra.mxu0 %v782
      %v1083 = vpop.f32.mrf.mxu0
      %v1084 = vadd.f32 %v980, %v1083
      %v1085 = vpop.f32.mrf.mxu0
      %v1086 = vadd.f32 %v982, %v1085
      %1087 = vmatmul.bf16.gmra.mxu0 %v785
      %v1088 = vpop.f32.mrf.mxu0
      %v1089 = vadd.f32 %v985, %v1088
      %v1090 = vpop.f32.mrf.mxu0
      %v1091 = vadd.f32 %v987, %v1090
      %1092 = vmatmul.bf16.gmra.mxu0 %v788
      %v1093 = vpop.f32.mrf.mxu0
      %v1094 = vadd.f32 %v990, %v1093
      %v1095 = vpop.f32.mrf.mxu0
      %v1096 = vadd.f32 %v992, %v1095
      %1097 = vmatmul.bf16.gmra.mxu0 %v791
      %v1098 = vpop.f32.mrf.mxu0
      %v1099 = vadd.f32 %v995, %v1098
      %v1100 = vpop.f32.mrf.mxu0
      %v1101 = vadd.f32 %v997, %v1100
      %1102 = vmatmul.bf16.gmra.mxu0 %v794
      %v1103 = vpop.f32.mrf.mxu0
      %v1104 = vadd.f32 %v1000, %v1103
      %v1105 = vpop.f32.mrf.mxu0
      %v1106 = vadd.f32 %v1002, %v1105
      %1107 = vdwg.mxu0
      %v1108 = vpack.c.bf16 %v1014, %v1014
      %v1109 = vpack.c.bf16 %v1016, %v1016
      %v1110 = vpack.c.bf16 %v1019, %v1019
      %v1111 = vpack.c.bf16 %v1021, %v1021
      %v1112 = vpack.c.bf16 %v1024, %v1024
      %v1113 = vpack.c.bf16 %v1026, %v1026
      %v1114 = vpack.c.bf16 %v1029, %v1029
      %v1115 = vpack.c.bf16 %v1031, %v1031
      %v1116 = vpack.c.bf16 %v1034, %v1034
      %v1117 = vpack.c.bf16 %v1036, %v1036
      %v1118 = vpack.c.bf16 %v1039, %v1039
      %v1119 = vpack.c.bf16 %v1041, %v1041
      %v1120 = vpack.c.bf16 %v1044, %v1044
      %v1121 = vpack.c.bf16 %v1046, %v1046
      %v1122 = vpack.c.bf16 %v1049, %v1049
      %v1123 = vpack.c.bf16 %v1051, %v1051
      %v1124 = vpack.c.bf16 %v1054, %v1054
      %v1125 = vpack.c.bf16 %v1056, %v1056
      %v1126 = vpack.c.bf16 %v1059, %v1059
      %v1127 = vpack.c.bf16 %v1061, %v1061
      %v1128 = vpack.c.bf16 %v1064, %v1064
      %v1129 = vpack.c.bf16 %v1066, %v1066
      %v1130 = vpack.c.bf16 %v1069, %v1069
      %v1131 = vpack.c.bf16 %v1071, %v1071
      %v1132 = vpack.c.bf16 %v1074, %v1074
      %v1133 = vpack.c.bf16 %v1076, %v1076
      %v1134 = vpack.c.bf16 %v1079, %v1079
      %v1135 = vpack.c.bf16 %v1081, %v1081
      %v1136 = vpack.c.bf16 %v1084, %v1084
      %v1137 = vpack.c.bf16 %v1086, %v1086
      %v1138 = vpack.c.bf16 %v1089, %v1089
      %v1139 = vpack.c.bf16 %v1091, %v1091
      %v1140 = vpack.c.bf16 %v1094, %v1094
      %v1141 = vpack.c.bf16 %v1096, %v1096
      %v1142 = vpack.c.bf16 %v1099, %v1099
      %v1143 = vpack.c.bf16 %v1101, %v1101
      %v1144 = vpack.c.bf16 %v1104, %v1104
      %v1145 = vpack.c.bf16 %v1106, %v1106
      %1146 = vst [vmem:[%s226] sm:$0xf] %v1108
      %1147 = vst [vmem:[%s226 + $0x4] sm:$0xf] %v1109
      %1148 = vst [vmem:[%s226 + $0x8] sm:$0xf] %v1110
      %1149 = vst [vmem:[%s226 + $0xc] sm:$0xf] %v1111
      %1150 = vst [vmem:[%s226 + $0x10] sm:$0xf] %v1112
      %1151 = vst [vmem:[%s226 + $0x14] sm:$0xf] %v1113
      %1152 = vst [vmem:[%s226 + $0x18] sm:$0xf] %v1114
      %1153 = vst [vmem:[%s226 + $0x1c] sm:$0xf] %v1115
      %1154 = vst [vmem:[%s226 + $0x20] sm:$0xf] %v1116
      %1155 = vst [vmem:[%s226 + $0x24] sm:$0xf] %v1117
      %1156 = vst [vmem:[%s226 + $0x28] sm:$0xf] %v1118
      %1157 = vst [vmem:[%s226 + $0x2c] sm:$0xf] %v1119
      %1158 = vst [vmem:[%s226 + $0x30] sm:$0xf] %v1120
      %1159 = vst [vmem:[%s226 + $0x34] sm:$0xf] %v1121
      %1160 = vst [vmem:[%s226 + $0x38] sm:$0xf] %v1122
      %1161 = vst [vmem:[%s226 + $0x3c] sm:$0xf] %v1123
      %1162 = vst [vmem:[%s226 + $0x40] sm:$0xf] %v1124
      %1163 = vst [vmem:[%s226 + $0x44] sm:$0xf] %v1125
      %1164 = vst [vmem:[%s226 + $0x48] sm:$0xf] %v1126
      %1165 = vst [vmem:[%s226 + $0x4c] sm:$0xf] %v1127
      %1166 = vst [vmem:[%s226 + $0x50] sm:$0xf] %v1128
      %1167 = vst [vmem:[%s226 + $0x54] sm:$0xf] %v1129
      %1168 = vst [vmem:[%s226 + $0x58] sm:$0xf] %v1130
      %1169 = vst [vmem:[%s226 + $0x5c] sm:$0xf] %v1131
      %1170 = vst [vmem:[%s226 + $0x60] sm:$0xf] %v1132
      %1171 = vst [vmem:[%s226 + $0x64] sm:$0xf] %v1133
      %1172 = vst [vmem:[%s226 + $0x68] sm:$0xf] %v1134
      %1173 = vst [vmem:[%s226 + $0x6c] sm:$0xf] %v1135
      %1174 = vst [vmem:[%s226 + $0x70] sm:$0xf] %v1136
      %1175 = vst [vmem:[%s226 + $0x74] sm:$0xf] %v1137
      %1176 = vst [vmem:[%s226 + $0x78] sm:$0xf] %v1138
      %1177 = vst [vmem:[%s226 + $0x7c] sm:$0xf] %v1139
      %1178 = vst [vmem:[%s226 + $0x80] sm:$0xf] %v1140
      %1179 = vst [vmem:[%s226 + $0x84] sm:$0xf] %v1141
      %1180 = vst [vmem:[%s226 + $0x88] sm:$0xf] %v1142
      %1181 = vst [vmem:[%s226 + $0x8c] sm:$0xf] %v1143
      %1182 = vst [vmem:[%s226 + $0x90] sm:$0xf] %v1144
      %1183 = vst [vmem:[%s226 + $0x94] sm:$0xf] %v1145
      %s1184 = smul.u32 38, %s18
      %p1185 = scmp.lt.s32.totalorder %s1184, 75
      %s1186 = scalar_select %p1185, %s1184, 75
      %p1187 = scmp.lt.s32.totalorder %s19, 0
      %s1188 = scalar_select %p1187, %s19, 0
      %s1189 = sadd.s32 %s1188, %s1186
      %s1190 = smul.addr %s1189, 4
      %s1191 = scalar_lea.vmem %s3, %s1190
      // Predicated region
      $region33: #{upsample_forward.3} parent=31 // pred_check
        %p1192 = pneg %p124
      $region34: #{upsample_forward.3} parent=31 // pred_check_branch
        %1194 = sbr.rel (%p1192) target = $region36
      $region35: #{upsample_forward.3} parent=31 // pred_region
        %s1195 = smul.u32 38, %s18
      $region36: #{upsample_forward.3} parent=31 // pred_fallthru
        _
    $region32: #{upsample_forward.3} parent=5 // pred_fallthru
      _
    %p1196 = scmp.le.s32.totalorder 2, %s9
    // Predicated region
    $region37: #{upsample_forward.3} parent=5 // pred_check
      %p1197 = pneg %p1196
    $region38: #{upsample_forward.3} parent=5 // pred_check_branch
      %1199 = sbr.rel (%p1197) target = $region40
    $region39: #{upsample_forward.3} parent=5 // pred_region
      %s1200 = ssub.s32 %s9, 2
      // Predicated region
      $region41: #{upsample_forward.3} parent=39 // pred_check
        %p1201 = pneg %p130
      $region42: #{upsample_forward.3} parent=39 // pred_check_branch
        %1203 = sbr.rel (%p1201) target = $region44
      $region43: #{upsample_forward.3} parent=39 // pred_region
        %s1204 = smul.u32 38, %s20
        %p1205 = scmp.lt.s32.totalorder %s1204, 75
        %s1206 = scalar_select %p1205, %s1204, 75
        %p1207 = scmp.lt.s32.totalorder %s21, 0
        %s1208 = scalar_select %p1207, %s21, 0
        %s1209 = sadd.s32 %s1208, %s1206
        %s1210 = smul.addr %s1209, 4
        %s1211 = scalar_lea.vmem %s3, %s1210
      $region44: #{upsample_forward.3} parent=39 // pred_fallthru
        _
    $region40: #{upsample_forward.3} parent=5 // pred_fallthru
      _
  $region6: #{upsample_forward.3} parent=0 // loop_footer
    %s13 = sadd.s32 1, %s9
  $region7: #{upsample_forward.3} parent=0 // loop_footer_branch
    %8 = sbr.rel target = $region3
  $region8: #{upsample_forward.3} parent=0 // loop_exit
    _

</llo_original>
